<compile_context>
chip_gen: v7x
topology: tpu7x:2x2x1
jax: 0.10.0
libtpu: 0.0.40
codegen_flags: <defaults>
</compile_context>

<pallas_src>
import functools

import jax
import jax.numpy as jnp
from jax import lax
from jax.experimental import pallas as pl
from jax.experimental.pallas import tpu as pltpu


def _round_up(x, m):
    return ((x + m - 1) // m) * m


# ----------------------------- Pallas kernels ------------------------------

def ln_matmul_kernel(x_ref, g_ref, b_ref, w_ref, o_ref):
    # x_ref: (TM, C); g/b: (1, C); w: (C, Cout) -> o: (TM, Cout)
    # WithBias LayerNorm over channels fused with the 1x1-conv matmul.
    x = x_ref[...].astype(jnp.float32)
    mu = jnp.mean(x, axis=-1, keepdims=True)
    var = jnp.mean((x - mu) ** 2, axis=-1, keepdims=True)      # unbiased=False
    y = (x - mu) / jnp.sqrt(var + 1e-5)
    y = y * g_ref[...].astype(jnp.float32) + b_ref[...].astype(jnp.float32)
    o_ref[...] = jnp.dot(
        y, w_ref[...].astype(jnp.float32), preferred_element_type=jnp.float32
    ).astype(o_ref.dtype)


def dwconv3x3_kernel(xp_ref, w_ref, o_ref):
    # xp_ref: (1, H+2, W+2, C) zero-padded; w_ref: (9, C); o_ref: (1, H, W, C)
    _, H, W, C = o_ref.shape
    xp = xp_ref[0].astype(jnp.float32)
    acc = jnp.zeros((H, W, C), jnp.float32)
    for t in range(9):
        di, dj = t // 3, t % 3
        wt = w_ref[t, :].astype(jnp.float32)
        acc = acc + xp[di:di + H, dj:dj + W, :] * wt[None, None, :]
    o_ref[0] = acc.astype(o_ref.dtype)
    # TODO(synk): for large H tile spatial rows with a 1-row halo instead of
    # one whole padded image per grid step (VMEM scaling).


def attn_kernel(temp_ref, xqkv_ref, yqkv_ref, yres_ref, wout_ref, o_ref, *,
                num_heads):
    # xqkv/yqkv: (1, HW, 3C) token-major qkv of x resp. y (same batched buffer,
    #            selected by index_map); yres: (1, HW, C) residual; wout: (C, C)
    # o_ref: (1, HW, C) = yres + project_out(attention)  (token-major -> no
    #        post-attention relayout needed).
    hw, c = o_ref.shape[1], o_ref.shape[2]
    ch = c // num_heads
    xq = xqkv_ref[0].astype(jnp.float32)          # (HW, 3C)
    yq = yqkv_ref[0].astype(jnp.float32)
    q_tok = yq[:, :c]                              # q comes from y path
    k_tok = xq[:, c:2 * c]                         # k, v come from x path
    v_tok = xq[:, 2 * c:]

    outs = []
    for h in range(num_heads):                     # heads are small & static
        sl = slice(h * ch, (h + 1) * ch)
        q = q_tok[:, sl].T                         # (ch, HW)
        k = k_tok[:, sl].T
        v = v_tok[:, sl].T
        # torch.nn.functional.normalize(dim=-1, eps=1e-12)
        qn = q / jnp.maximum(jnp.sqrt(jnp.sum(q * q, axis=-1, keepdims=True)), 1e-12)
        kn = k / jnp.maximum(jnp.sqrt(jnp.sum(k * k, axis=-1, keepdims=True)), 1e-12)
        attn = jnp.dot(qn, kn.T, preferred_element_type=jnp.float32) * temp_ref[h]
        attn = attn - jnp.max(attn, axis=-1, keepdims=True)
        e = jnp.exp(attn)
        p = e / jnp.sum(e, axis=-1, keepdims=True)
        outs.append(jnp.dot(p, v, preferred_element_type=jnp.float32))  # (ch, HW)

    out_tok = jnp.concatenate(outs, axis=0).T      # (HW, C), channel = head*ch + c
    proj = jnp.dot(out_tok, wout_ref[...].astype(jnp.float32),
                   preferred_element_type=jnp.float32)
    o_ref[0] = (yres_ref[0].astype(jnp.float32) + proj).astype(o_ref.dtype)


def ffn_out_kernel(f_ref, r_ref, w_ref, o_ref):
    # f_ref: (TM, 2*hidden) dwconv output; r_ref: (TM, C) residual;
    # w_ref: (hidden, C) -> o = r + (GELU(f1) * f2) @ w   (exact erf GELU)
    hidden = w_ref.shape[0]
    f = f_ref[...].astype(jnp.float32)
    f1 = f[:, :hidden]
    f2 = f[:, hidden:]
    g = 0.5 * f1 * (1.0 + lax.erf(f1 * jnp.float32(0.7071067811865476)))
    out = jnp.dot(g * f2, w_ref[...].astype(jnp.float32),
                  preferred_element_type=jnp.float32)
    o_ref[...] = (r_ref[...].astype(jnp.float32) + out).astype(o_ref.dtype)


# ----------------------------- kernel wrappers ------------------------------

_PARALLEL_1D = pltpu.CompilerParams(dimension_semantics=("parallel",))


def ln_matmul(x2d, gamma, beta, w, tm=512):
    # Fused LayerNorm(channels) -> 1x1 conv, row-tiled over tokens.
    n, c = x2d.shape
    cout = w.shape[1]
    tm = min(tm, _round_up(n, 8))
    return pl.pallas_call(
        ln_matmul_kernel,
        grid=(pl.cdiv(n, tm),),
        in_specs=[
            pl.BlockSpec((tm, c), lambda i: (i, 0)),
            pl.BlockSpec((1, c), lambda i: (0, 0)),
            pl.BlockSpec((1, c), lambda i: (0, 0)),
            pl.BlockSpec((c, cout), lambda i: (0, 0)),
        ],
        out_specs=pl.BlockSpec((tm, cout), lambda i: (i, 0)),
        out_shape=jax.ShapeDtypeStruct((n, cout), x2d.dtype),
        compiler_params=_PARALLEL_1D,
    )(x2d, gamma.reshape(1, c), beta.reshape(1, c), w)


def dwconv3x3(x_nhwc, w9):
    b, h, w, c = x_nhwc.shape
    xp = jnp.pad(x_nhwc, ((0, 0), (1, 1), (1, 1), (0, 0)))
    return pl.pallas_call(
        dwconv3x3_kernel,
        grid=(b,),
        in_specs=[
            pl.BlockSpec((1, h + 2, w + 2, c), lambda i: (i, 0, 0, 0)),
            pl.BlockSpec((9, c), lambda i: (0, 0)),
        ],
        out_specs=pl.BlockSpec((1, h, w, c), lambda i: (i, 0, 0, 0)),
        out_shape=jax.ShapeDtypeStruct((b, h, w, c), x_nhwc.dtype),
        compiler_params=_PARALLEL_1D,
    )(xp, w9)


def attention(qkv_tok, y_tok, temperature, w_out, *, num_heads, batch):
    # qkv_tok: (2B, HW, 3C) — first B entries are x's qkv, last B are y's qkv.
    # Returns x1 = y + project_out(attn) in token-major layout (B, HW, C).
    _, hw, c3 = qkv_tok.shape
    c = c3 // 3
    return pl.pallas_call(
        functools.partial(attn_kernel, num_heads=num_heads),
        grid=(batch,),
        in_specs=[
            pl.BlockSpec(memory_space=pltpu.MemorySpace.SMEM),          # temperature
            pl.BlockSpec((1, hw, c3), lambda i: (i, 0, 0)),             # x qkv
            pl.BlockSpec((1, hw, c3), lambda i: (i + batch, 0, 0)),     # y qkv
            pl.BlockSpec((1, hw, c), lambda i: (i, 0, 0)),              # y residual
            pl.BlockSpec((c, c), lambda i: (0, 0)),                     # project_out
        ],
        out_specs=pl.BlockSpec((1, hw, c), lambda i: (i, 0, 0)),
        out_shape=jax.ShapeDtypeStruct((batch, hw, c), y_tok.dtype),
        compiler_params=_PARALLEL_1D,
    )(temperature, qkv_tok, qkv_tok, y_tok, w_out)


def ffn_out(f2d, res2d, w, tm=512):
    # Fused GELU-gate -> project_out -> residual add, row-tiled over tokens.
    n, c2h = f2d.shape
    hidden, c = w.shape
    tm = min(tm, _round_up(n, 8))
    return pl.pallas_call(
        ffn_out_kernel,
        grid=(pl.cdiv(n, tm),),
        in_specs=[
            pl.BlockSpec((tm, c2h), lambda i: (i, 0)),
            pl.BlockSpec((tm, c), lambda i: (i, 0)),
            pl.BlockSpec((hidden, c), lambda i: (0, 0)),
        ],
        out_specs=pl.BlockSpec((tm, c), lambda i: (i, 0)),
        out_shape=jax.ShapeDtypeStruct((n, c), f2d.dtype),
        compiler_params=_PARALLEL_1D,
    )(f2d, res2d, w)


# ----------------------------- TransformerBlock -----------------------------

def init_params(key, dim, num_heads, ffn_expansion_factor):
    hidden = int(dim * ffn_expansion_factor)
    ks = jax.random.split(key, 8)
    s = 0.02

    def nrm(k, shape):
        return (s * jax.random.normal(k, shape)).astype(jnp.float32)

    params = {
        # LayerNorms (WithBias)
        "ln1_w": jnp.ones((dim,), jnp.float32),
        "ln1_b": jnp.zeros((dim,), jnp.float32),
        "ln2_w": jnp.ones((dim,), jnp.float32),
        "ln2_b": jnp.zeros((dim,), jnp.float32),
        # Attention (bias=False)
        "temperature": jnp.ones((num_heads,), jnp.float32),
        "w_qkv": nrm(ks[0], (dim, 3 * dim)),           # 1x1 conv dim -> 3*dim
        "w_qkv_dw": nrm(ks[1], (9, 3 * dim)),          # 3x3 depthwise (tap, channel)
        "w_attn_out": nrm(ks[2], (dim, dim)),          # 1x1 conv dim -> dim
        # FeedForward (bias=False)
        "w_ffn_in": nrm(ks[3], (dim, 2 * hidden)),     # 1x1 conv dim -> 2*hidden
        "w_ffn_dw": nrm(ks[4], (9, 2 * hidden)),       # 3x3 depthwise
        "w_ffn_out": nrm(ks[5], (hidden, dim)),        # 1x1 conv hidden -> dim
    }
    return params, hidden


def transformer_block_forward(x_nchw, y_nchw, params, *, num_heads, hidden):
    # NCHW in/out; NHWC / token-major inside.
    x = jnp.transpose(x_nchw, (0, 2, 3, 1))
    y = jnp.transpose(y_nchw, (0, 2, 3, 1))
    b, h, w, c = x.shape
    n = b * h * w
    hw = h * w

    # ---- norm1 + qkv 1x1-conv, batched over [x; y] (one LN+matmul, one dwconv) ----
    xy = jnp.concatenate([x, y], axis=0)                                   # (2B,H,W,C)
    qkv = ln_matmul(xy.reshape(2 * n, c), params["ln1_w"], params["ln1_b"],
                    params["w_qkv"])                                       # (2N, 3C)
    qkv = dwconv3x3(qkv.reshape(2 * b, h, w, 3 * c), params["w_qkv_dw"])   # (2B,H,W,3C)
    qkv_tok = qkv.reshape(2 * b, hw, 3 * c)

    # ---- attention (all heads per batch; L2-norm/softmax/project_out/residual fused) ----
    x1_tok = attention(qkv_tok, y.reshape(b, hw, c), params["temperature"],
                       params["w_attn_out"], num_heads=num_heads, batch=b)  # (B,HW,C)
    x1 = x1_tok.reshape(n, c)                       # x1 = y + attn(norm1(x), norm1(y))

    # ---- FFN: norm2+project_in fused, dwconv, gelu-gate+project_out+residual fused ----
    f = ln_matmul(x1, params["ln2_w"], params["ln2_b"], params["w_ffn_in"])  # (N, 2H)
    f = dwconv3x3(f.reshape(b, h, w, 2 * hidden), params["w_ffn_dw"])
    out = ffn_out(f.reshape(n, 2 * hidden), x1, params["w_ffn_out"])         # (N, C)

    return jnp.transpose(out.reshape(b, h, w, c), (0, 3, 1, 2))              # NCHW


# ----------------------------------- main -----------------------------------

if __name__ == "__main__":
    # TransformerBlock(dim=16, num_heads=2, ffn_expansion_factor=2.0,
    #                  bias=False, LayerNorm_type='WithBias')
    dim, num_heads, ffn_expansion_factor = 16, 2, 2.0
    B, H, W = 2, 8, 8

    key = jax.random.PRNGKey(0)
    kx, ky, kp = jax.random.split(key, 3)
    x = jax.random.normal(kx, (B, dim, H, W), jnp.float32)   # NCHW, like PyTorch
    y = jax.random.normal(ky, (B, dim, H, W), jnp.float32)

    params, hidden = init_params(kp, dim, num_heads, ffn_expansion_factor)

    fwd = jax.jit(functools.partial(
        transformer_block_forward, num_heads=num_heads, hidden=hidden))
    out = fwd(x, y, params)
    jax.block_until_ready(out)

    assert out.shape == (B, dim, H, W) and out.dtype == jnp.float32
    print("KERNEL_OK")
</pallas_src>

<mosaic_0001>
module attributes {stable_mosaic.version = 11 : i64} {
  func.func @dwconv3x3_kernel(%arg0: i32, %arg1: memref<1x10x10x48xf32, #tpu.memory_space<vmem>>, %arg2: memref<9x48xf32, #tpu.memory_space<vmem>>, %arg3: memref<1x8x8x48xf32, #tpu.memory_space<vmem>>) attributes {dimension_semantics = [#tpu.dimension_semantics<parallel>], iteration_bounds = array<i64: 4>, scalar_prefetch = 0 : i64, scratch_operands = 0 : i64, tpu.core_type = #tpu.core_type<tc>, window_params = [{transform_indices = @transform_0, window_bounds = array<i64: 1, 10, 10, 48>}, {pipeline_mode = #tpu.pipeline_mode<synchronous>, transform_indices = @transform_1, window_bounds = array<i64: 9, 48>}, {transform_indices = @transform_2, window_bounds = array<i64: 1, 8, 8, 48>}]} {
    %c0 = arith.constant 0 : index
    %c0_0 = arith.constant 0 : index
    %c0_1 = arith.constant 0 : index
    %c0_2 = arith.constant 0 : index
    %0 = vector.load %arg1[%c0, %c0_0, %c0_1, %c0_2] : memref<1x10x10x48xf32, #tpu.memory_space<vmem>>, vector<1x10x10x48xf32>
    %1 = vector.shape_cast %0 : vector<1x10x10x48xf32> to vector<10x10x48xf32>
    %cst = arith.constant 0.000000e+00 : f32
    %2 = vector.broadcast %cst : f32 to vector<8x8x48xf32>
    %c0_3 = arith.constant 0 : index
    %c0_4 = arith.constant 0 : index
    %3 = vector.load %arg2[%c0_3, %c0_4] : memref<9x48xf32, #tpu.memory_space<vmem>>, vector<1x48xf32>
    %4 = vector.shape_cast %3 : vector<1x48xf32> to vector<48xf32>
    %5 = vector.extract_strided_slice %1 {offsets = [0, 0, 0], sizes = [8, 8, 48], strides = [1, 1, 1]} : vector<10x10x48xf32> to vector<8x8x48xf32>
    %6 = vector.shape_cast %4 : vector<48xf32> to vector<1x1x48xf32>
    %7 = vector.broadcast %6 : vector<1x1x48xf32> to vector<8x8x48xf32>
    %8 = arith.mulf %5, %7 : vector<8x8x48xf32>
    %9 = arith.addf %2, %8 : vector<8x8x48xf32>
    %c1 = arith.constant 1 : index
    %c0_5 = arith.constant 0 : index
    %10 = vector.load %arg2[%c1, %c0_5] : memref<9x48xf32, #tpu.memory_space<vmem>>, vector<1x48xf32>
    %11 = vector.shape_cast %10 : vector<1x48xf32> to vector<48xf32>
    %12 = vector.extract_strided_slice %1 {offsets = [0, 1, 0], sizes = [8, 8, 48], strides = [1, 1, 1]} : vector<10x10x48xf32> to vector<8x8x48xf32>
    %13 = vector.shape_cast %11 : vector<48xf32> to vector<1x1x48xf32>
    %14 = vector.broadcast %13 : vector<1x1x48xf32> to vector<8x8x48xf32>
    %15 = arith.mulf %12, %14 : vector<8x8x48xf32>
    %16 = arith.addf %9, %15 : vector<8x8x48xf32>
    %c2 = arith.constant 2 : index
    %c0_6 = arith.constant 0 : index
    %17 = vector.load %arg2[%c2, %c0_6] : memref<9x48xf32, #tpu.memory_space<vmem>>, vector<1x48xf32>
    %18 = vector.shape_cast %17 : vector<1x48xf32> to vector<48xf32>
    %19 = vector.extract_strided_slice %1 {offsets = [0, 2, 0], sizes = [8, 8, 48], strides = [1, 1, 1]} : vector<10x10x48xf32> to vector<8x8x48xf32>
    %20 = vector.shape_cast %18 : vector<48xf32> to vector<1x1x48xf32>
    %21 = vector.broadcast %20 : vector<1x1x48xf32> to vector<8x8x48xf32>
    %22 = arith.mulf %19, %21 : vector<8x8x48xf32>
    %23 = arith.addf %16, %22 : vector<8x8x48xf32>
    %c3 = arith.constant 3 : index
    %c0_7 = arith.constant 0 : index
    %24 = vector.load %arg2[%c3, %c0_7] : memref<9x48xf32, #tpu.memory_space<vmem>>, vector<1x48xf32>
    %25 = vector.shape_cast %24 : vector<1x48xf32> to vector<48xf32>
    %26 = vector.extract_strided_slice %1 {offsets = [1, 0, 0], sizes = [8, 8, 48], strides = [1, 1, 1]} : vector<10x10x48xf32> to vector<8x8x48xf32>
    %27 = vector.shape_cast %25 : vector<48xf32> to vector<1x1x48xf32>
    %28 = vector.broadcast %27 : vector<1x1x48xf32> to vector<8x8x48xf32>
    %29 = arith.mulf %26, %28 : vector<8x8x48xf32>
    %30 = arith.addf %23, %29 : vector<8x8x48xf32>
    %c4 = arith.constant 4 : index
    %c0_8 = arith.constant 0 : index
    %31 = vector.load %arg2[%c4, %c0_8] : memref<9x48xf32, #tpu.memory_space<vmem>>, vector<1x48xf32>
    %32 = vector.shape_cast %31 : vector<1x48xf32> to vector<48xf32>
    %33 = vector.extract_strided_slice %1 {offsets = [1, 1, 0], sizes = [8, 8, 48], strides = [1, 1, 1]} : vector<10x10x48xf32> to vector<8x8x48xf32>
    %34 = vector.shape_cast %32 : vector<48xf32> to vector<1x1x48xf32>
    %35 = vector.broadcast %34 : vector<1x1x48xf32> to vector<8x8x48xf32>
    %36 = arith.mulf %33, %35 : vector<8x8x48xf32>
    %37 = arith.addf %30, %36 : vector<8x8x48xf32>
    %c5 = arith.constant 5 : index
    %c0_9 = arith.constant 0 : index
    %38 = vector.load %arg2[%c5, %c0_9] : memref<9x48xf32, #tpu.memory_space<vmem>>, vector<1x48xf32>
    %39 = vector.shape_cast %38 : vector<1x48xf32> to vector<48xf32>
    %40 = vector.extract_strided_slice %1 {offsets = [1, 2, 0], sizes = [8, 8, 48], strides = [1, 1, 1]} : vector<10x10x48xf32> to vector<8x8x48xf32>
    %41 = vector.shape_cast %39 : vector<48xf32> to vector<1x1x48xf32>
    %42 = vector.broadcast %41 : vector<1x1x48xf32> to vector<8x8x48xf32>
    %43 = arith.mulf %40, %42 : vector<8x8x48xf32>
    %44 = arith.addf %37, %43 : vector<8x8x48xf32>
    %c6 = arith.constant 6 : index
    %c0_10 = arith.constant 0 : index
    %45 = vector.load %arg2[%c6, %c0_10] : memref<9x48xf32, #tpu.memory_space<vmem>>, vector<1x48xf32>
    %46 = vector.shape_cast %45 : vector<1x48xf32> to vector<48xf32>
    %47 = vector.extract_strided_slice %1 {offsets = [2, 0, 0], sizes = [8, 8, 48], strides = [1, 1, 1]} : vector<10x10x48xf32> to vector<8x8x48xf32>
    %48 = vector.shape_cast %46 : vector<48xf32> to vector<1x1x48xf32>
    %49 = vector.broadcast %48 : vector<1x1x48xf32> to vector<8x8x48xf32>
    %50 = arith.mulf %47, %49 : vector<8x8x48xf32>
    %51 = arith.addf %44, %50 : vector<8x8x48xf32>
    %c7 = arith.constant 7 : index
    %c0_11 = arith.constant 0 : index
    %52 = vector.load %arg2[%c7, %c0_11] : memref<9x48xf32, #tpu.memory_space<vmem>>, vector<1x48xf32>
    %53 = vector.shape_cast %52 : vector<1x48xf32> to vector<48xf32>
    %54 = vector.extract_strided_slice %1 {offsets = [2, 1, 0], sizes = [8, 8, 48], strides = [1, 1, 1]} : vector<10x10x48xf32> to vector<8x8x48xf32>
    %55 = vector.shape_cast %53 : vector<48xf32> to vector<1x1x48xf32>
    %56 = vector.broadcast %55 : vector<1x1x48xf32> to vector<8x8x48xf32>
    %57 = arith.mulf %54, %56 : vector<8x8x48xf32>
    %58 = arith.addf %51, %57 : vector<8x8x48xf32>
    %c8 = arith.constant 8 : index
    %c0_12 = arith.constant 0 : index
    %59 = vector.load %arg2[%c8, %c0_12] : memref<9x48xf32, #tpu.memory_space<vmem>>, vector<1x48xf32>
    %60 = vector.shape_cast %59 : vector<1x48xf32> to vector<48xf32>
    %61 = vector.extract_strided_slice %1 {offsets = [2, 2, 0], sizes = [8, 8, 48], strides = [1, 1, 1]} : vector<10x10x48xf32> to vector<8x8x48xf32>
    %62 = vector.shape_cast %60 : vector<48xf32> to vector<1x1x48xf32>
    %63 = vector.broadcast %62 : vector<1x1x48xf32> to vector<8x8x48xf32>
    %64 = arith.mulf %61, %63 : vector<8x8x48xf32>
    %65 = arith.addf %58, %64 : vector<8x8x48xf32>
    %c0_13 = arith.constant 0 : index
    %c0_14 = arith.constant 0 : index
    %c0_15 = arith.constant 0 : index
    %c0_16 = arith.constant 0 : index
    %66 = vector.load %arg3[%c0_13, %c0_14, %c0_15, %c0_16] : memref<1x8x8x48xf32, #tpu.memory_space<vmem>>, vector<1x8x8x48xf32>
    %67 = vector.shape_cast %66 : vector<1x8x8x48xf32> to vector<8x8x48xf32>
    %68 = vector.shape_cast %65 : vector<8x8x48xf32> to vector<1x8x8x48xf32>
    tpu.vector_store %arg3[%c0_13, %c0_14, %c0_15, %c0_16], %68 {strides = array<i32>} : memref<1x8x8x48xf32, #tpu.memory_space<vmem>>, vector<1x8x8x48xf32>,
    return
  }
  func.func @transform_0(%arg0: i32) -> (i32, i32, i32, i32) {
    %c0_i32 = arith.constant 0 : i32
    %c0_i32_0 = arith.constant 0 : i32
    %c0_i32_1 = arith.constant 0 : i32
    %c0_i32_2 = arith.constant 0 : i32
    return %arg0, %c0_i32, %c0_i32_0, %c0_i32_1 : i32, i32, i32, i32
  }
  func.func @transform_1(%arg0: i32) -> (i32, i32) {
    %c0_i32 = arith.constant 0 : i32
    %c0_i32_0 = arith.constant 0 : i32
    %c0_i32_1 = arith.constant 0 : i32
    return %c0_i32, %c0_i32_0 : i32, i32
  }
  func.func @transform_2(%arg0: i32) -> (i32, i32, i32, i32) {
    %c0_i32 = arith.constant 0 : i32
    %c0_i32_0 = arith.constant 0 : i32
    %c0_i32_1 = arith.constant 0 : i32
    %c0_i32_2 = arith.constant 0 : i32
    return %arg0, %c0_i32, %c0_i32_0, %c0_i32_1 : i32, i32, i32, i32
  }
}

module attributes {stable_mosaic.version = 11 : i64} {
  func.func @ln_matmul_kernel(%arg0: i32, %arg1: memref<256x16xf32, #tpu.memory_space<vmem>>, %arg2: memref<1x16xf32, #tpu.memory_space<vmem>>, %arg3: memref<1x16xf32, #tpu.memory_space<vmem>>, %arg4: memref<16x48xf32, #tpu.memory_space<vmem>>, %arg5: memref<256x48xf32, #tpu.memory_space<vmem>>) attributes {dimension_semantics = [#tpu.dimension_semantics<parallel>], iteration_bounds = array<i64: 1>, scalar_prefetch = 0 : i64, scratch_operands = 0 : i64, tpu.core_type = #tpu.core_type<tc>, window_params = [{transform_indices = @transform_0, window_bounds = array<i64: 256, 16>}, {pipeline_mode = #tpu.pipeline_mode<synchronous>, transform_indices = @transform_1, window_bounds = array<i64: 1, 16>}, {pipeline_mode = #tpu.pipeline_mode<synchronous>, transform_indices = @transform_2, window_bounds = array<i64: 1, 16>}, {pipeline_mode = #tpu.pipeline_mode<synchronous>, transform_indices = @transform_3, window_bounds = array<i64: 16, 48>}, {transform_indices = @transform_4, window_bounds = array<i64: 256, 48>}]} {
    %c0 = arith.constant 0 : index
    %c0_0 = arith.constant 0 : index
    %0 = vector.load %arg1[%c0, %c0_0] : memref<256x16xf32, #tpu.memory_space<vmem>>, vector<256x16xf32>
    %cst = arith.constant dense<0.000000e+00> : vector<256xf32>
    %1 = vector.multi_reduction <add>, %0, %cst [1] : vector<256x16xf32> to vector<256xf32>
    %2 = vector.shape_cast %1 : vector<256xf32> to vector<256x1xf32>
    %cst_1 = arith.constant 1.600000e+01 : f32
    %3 = vector.broadcast %cst_1 : f32 to vector<256x1xf32>
    %4 = arith.divf %2, %3 : vector<256x1xf32>
    %5 = vector.broadcast %4 : vector<256x1xf32> to vector<256x16xf32>
    %6 = arith.subf %0, %5 : vector<256x16xf32>
    %7 = arith.mulf %6, %6 : vector<256x16xf32>
    %cst_2 = arith.constant dense<0.000000e+00> : vector<256xf32>
    %8 = vector.multi_reduction <add>, %7, %cst_2 [1] : vector<256x16xf32> to vector<256xf32>
    %9 = vector.shape_cast %8 : vector<256xf32> to vector<256x1xf32>
    %cst_3 = arith.constant 1.600000e+01 : f32
    %10 = vector.broadcast %cst_3 : f32 to vector<256x1xf32>
    %11 = arith.divf %9, %10 : vector<256x1xf32>
    %12 = vector.broadcast %4 : vector<256x1xf32> to vector<256x16xf32>
    %13 = arith.subf %0, %12 : vector<256x16xf32>
    %cst_4 = arith.constant 9.99999974E-6 : f32
    %14 = vector.broadcast %cst_4 : f32 to vector<256x1xf32>
    %15 = arith.addf %11, %14 : vector<256x1xf32>
    %16 = math.sqrt %15 : vector<256x1xf32>
    %17 = vector.broadcast %16 : vector<256x1xf32> to vector<256x16xf32>
    %18 = arith.divf %13, %17 : vector<256x16xf32>
    %c0_5 = arith.constant 0 : index
    %c0_6 = arith.constant 0 : index
    %19 = vector.load %arg2[%c0_5, %c0_6] : memref<1x16xf32, #tpu.memory_space<vmem>>, vector<1x16xf32>
    %20 = vector.broadcast %19 : vector<1x16xf32> to vector<256x16xf32>
    %21 = arith.mulf %18, %20 : vector<256x16xf32>
    %c0_7 = arith.constant 0 : index
    %c0_8 = arith.constant 0 : index
    %22 = vector.load %arg3[%c0_7, %c0_8] : memref<1x16xf32, #tpu.memory_space<vmem>>, vector<1x16xf32>
    %23 = vector.broadcast %22 : vector<1x16xf32> to vector<256x16xf32>
    %24 = arith.addf %21, %23 : vector<256x16xf32>
    %c0_9 = arith.constant 0 : index
    %c0_10 = arith.constant 0 : index
    %25 = vector.load %arg4[%c0_9, %c0_10] : memref<16x48xf32, #tpu.memory_space<vmem>>, vector<16x48xf32>
    %cst_11 = arith.constant dense<0.000000e+00> : vector<256x48xf32>
    %26 = tpu.matmul %24, %25, %cst_11 {dimension_numbers = #tpu.dot_dimension_numbers<[1], [0], [0], [1], [0, 0, 1, 1], [], []>} : vector<256x16xf32>, vector<16x48xf32>, vector<256x48xf32> -> vector<256x48xf32>
    %c0_12 = arith.constant 0 : index
    %c0_13 = arith.constant 0 : index
    %27 = vector.load %arg5[%c0_12, %c0_13] : memref<256x48xf32, #tpu.memory_space<vmem>>, vector<256x48xf32>
    tpu.vector_store %arg5[%c0_12, %c0_13], %26 {strides = array<i32>} : memref<256x48xf32, #tpu.memory_space<vmem>>, vector<256x48xf32>,
    return
  }
  func.func @transform_0(%arg0: i32) -> (i32, i32) {
    %c0_i32 = arith.constant 0 : i32
    %c0_i32_0 = arith.constant 0 : i32
    return %arg0, %c0_i32 : i32, i32
  }
  func.func @transform_1(%arg0: i32) -> (i32, i32) {
    %c0_i32 = arith.constant 0 : i32
    %c0_i32_0 = arith.constant 0 : i32
    %c0_i32_1 = arith.constant 0 : i32
    return %c0_i32, %c0_i32_0 : i32, i32
  }
  func.func @transform_2(%arg0: i32) -> (i32, i32) {
    %c0_i32 = arith.constant 0 : i32
    %c0_i32_0 = arith.constant 0 : i32
    %c0_i32_1 = arith.constant 0 : i32
    return %c0_i32, %c0_i32_0 : i32, i32
  }
  func.func @transform_3(%arg0: i32) -> (i32, i32) {
    %c0_i32 = arith.constant 0 : i32
    %c0_i32_0 = arith.constant 0 : i32
    %c0_i32_1 = arith.constant 0 : i32
    return %c0_i32, %c0_i32_0 : i32, i32
  }
  func.func @transform_4(%arg0: i32) -> (i32, i32) {
    %c0_i32 = arith.constant 0 : i32
    %c0_i32_0 = arith.constant 0 : i32
    return %arg0, %c0_i32 : i32, i32
  }
}

module attributes {stable_mosaic.version = 11 : i64} {
  func.func @ln_matmul_kernel(%arg0: i32, %arg1: memref<128x16xf32, #tpu.memory_space<vmem>>, %arg2: memref<1x16xf32, #tpu.memory_space<vmem>>, %arg3: memref<1x16xf32, #tpu.memory_space<vmem>>, %arg4: memref<16x64xf32, #tpu.memory_space<vmem>>, %arg5: memref<128x64xf32, #tpu.memory_space<vmem>>) attributes {dimension_semantics = [#tpu.dimension_semantics<parallel>], iteration_bounds = array<i64: 1>, scalar_prefetch = 0 : i64, scratch_operands = 0 : i64, tpu.core_type = #tpu.core_type<tc>, window_params = [{transform_indices = @transform_0, window_bounds = array<i64: 128, 16>}, {pipeline_mode = #tpu.pipeline_mode<synchronous>, transform_indices = @transform_1, window_bounds = array<i64: 1, 16>}, {pipeline_mode = #tpu.pipeline_mode<synchronous>, transform_indices = @transform_2, window_bounds = array<i64: 1, 16>}, {pipeline_mode = #tpu.pipeline_mode<synchronous>, transform_indices = @transform_3, window_bounds = array<i64: 16, 64>}, {transform_indices = @transform_4, window_bounds = array<i64: 128, 64>}]} {
    %c0 = arith.constant 0 : index
    %c0_0 = arith.constant 0 : index
    %0 = vector.load %arg1[%c0, %c0_0] : memref<128x16xf32, #tpu.memory_space<vmem>>, vector<128x16xf32>
    %cst = arith.constant dense<0.000000e+00> : vector<128xf32>
    %1 = vector.multi_reduction <add>, %0, %cst [1] : vector<128x16xf32> to vector<128xf32>
    %2 = vector.shape_cast %1 : vector<128xf32> to vector<128x1xf32>
    %cst_1 = arith.constant 1.600000e+01 : f32
    %3 = vector.broadcast %cst_1 : f32 to vector<128x1xf32>
    %4 = arith.divf %2, %3 : vector<128x1xf32>
    %5 = vector.broadcast %4 : vector<128x1xf32> to vector<128x16xf32>
    %6 = arith.subf %0, %5 : vector<128x16xf32>
    %7 = arith.mulf %6, %6 : vector<128x16xf32>
    %cst_2 = arith.constant dense<0.000000e+00> : vector<128xf32>
    %8 = vector.multi_reduction <add>, %7, %cst_2 [1] : vector<128x16xf32> to vector<128xf32>
    %9 = vector.shape_cast %8 : vector<128xf32> to vector<128x1xf32>
    %cst_3 = arith.constant 1.600000e+01 : f32
    %10 = vector.broadcast %cst_3 : f32 to vector<128x1xf32>
    %11 = arith.divf %9, %10 : vector<128x1xf32>
    %12 = vector.broadcast %4 : vector<128x1xf32> to vector<128x16xf32>
    %13 = arith.subf %0, %12 : vector<128x16xf32>
    %cst_4 = arith.constant 9.99999974E-6 : f32
    %14 = vector.broadcast %cst_4 : f32 to vector<128x1xf32>
    %15 = arith.addf %11, %14 : vector<128x1xf32>
    %16 = math.sqrt %15 : vector<128x1xf32>
    %17 = vector.broadcast %16 : vector<128x1xf32> to vector<128x16xf32>
    %18 = arith.divf %13, %17 : vector<128x16xf32>
    %c0_5 = arith.constant 0 : index
    %c0_6 = arith.constant 0 : index
    %19 = vector.load %arg2[%c0_5, %c0_6] : memref<1x16xf32, #tpu.memory_space<vmem>>, vector<1x16xf32>
    %20 = vector.broadcast %19 : vector<1x16xf32> to vector<128x16xf32>
    %21 = arith.mulf %18, %20 : vector<128x16xf32>
    %c0_7 = arith.constant 0 : index
    %c0_8 = arith.constant 0 : index
    %22 = vector.load %arg3[%c0_7, %c0_8] : memref<1x16xf32, #tpu.memory_space<vmem>>, vector<1x16xf32>
    %23 = vector.broadcast %22 : vector<1x16xf32> to vector<128x16xf32>
    %24 = arith.addf %21, %23 : vector<128x16xf32>
    %c0_9 = arith.constant 0 : index
    %c0_10 = arith.constant 0 : index
    %25 = vector.load %arg4[%c0_9, %c0_10] : memref<16x64xf32, #tpu.memory_space<vmem>>, vector<16x64xf32>
    %cst_11 = arith.constant dense<0.000000e+00> : vector<128x64xf32>
    %26 = tpu.matmul %24, %25, %cst_11 {dimension_numbers = #tpu.dot_dimension_numbers<[1], [0], [0], [1], [0, 0, 1, 1], [], []>} : vector<128x16xf32>, vector<16x64xf32>, vector<128x64xf32> -> vector<128x64xf32>
    %c0_12 = arith.constant 0 : index
    %c0_13 = arith.constant 0 : index
    %27 = vector.load %arg5[%c0_12, %c0_13] : memref<128x64xf32, #tpu.memory_space<vmem>>, vector<128x64xf32>
    tpu.vector_store %arg5[%c0_12, %c0_13], %26 {strides = array<i32>} : memref<128x64xf32, #tpu.memory_space<vmem>>, vector<128x64xf32>,
    return
  }
  func.func @transform_0(%arg0: i32) -> (i32, i32) {
    %c0_i32 = arith.constant 0 : i32
    %c0_i32_0 = arith.constant 0 : i32
    return %arg0, %c0_i32 : i32, i32
  }
  func.func @transform_1(%arg0: i32) -> (i32, i32) {
    %c0_i32 = arith.constant 0 : i32
    %c0_i32_0 = arith.constant 0 : i32
    %c0_i32_1 = arith.constant 0 : i32
    return %c0_i32, %c0_i32_0 : i32, i32
  }
  func.func @transform_2(%arg0: i32) -> (i32, i32) {
    %c0_i32 = arith.constant 0 : i32
    %c0_i32_0 = arith.constant 0 : i32
    %c0_i32_1 = arith.constant 0 : i32
    return %c0_i32, %c0_i32_0 : i32, i32
  }
  func.func @transform_3(%arg0: i32) -> (i32, i32) {
    %c0_i32 = arith.constant 0 : i32
    %c0_i32_0 = arith.constant 0 : i32
    %c0_i32_1 = arith.constant 0 : i32
    return %c0_i32, %c0_i32_0 : i32, i32
  }
  func.func @transform_4(%arg0: i32) -> (i32, i32) {
    %c0_i32 = arith.constant 0 : i32
    %c0_i32_0 = arith.constant 0 : i32
    return %arg0, %c0_i32 : i32, i32
  }
}

module attributes {stable_mosaic.version = 11 : i64} {
  func.func @attn_kernel(%arg0: i32, %arg1: memref<2xf32, #tpu.memory_space<smem>>, %arg2: memref<1x64x48xf32, #tpu.memory_space<vmem>>, %arg3: memref<1x64x48xf32, #tpu.memory_space<vmem>>, %arg4: memref<1x64x16xf32, #tpu.memory_space<vmem>>, %arg5: memref<16x16xf32, #tpu.memory_space<vmem>>, %arg6: memref<1x64x16xf32, #tpu.memory_space<vmem>>) attributes {dimension_semantics = [#tpu.dimension_semantics<parallel>], iteration_bounds = array<i64: 2>, scalar_prefetch = 0 : i64, scratch_operands = 0 : i64, tpu.core_type = #tpu.core_type<tc>, window_params = [{transform_indices = @transform_0, window_bounds = array<i64: 2>}, {transform_indices = @transform_1, window_bounds = array<i64: 1, 64, 48>}, {transform_indices = @transform_2, window_bounds = array<i64: 1, 64, 48>}, {transform_indices = @transform_3, window_bounds = array<i64: 1, 64, 16>}, {pipeline_mode = #tpu.pipeline_mode<synchronous>, transform_indices = @transform_4, window_bounds = array<i64: 16, 16>}, {transform_indices = @transform_5, window_bounds = array<i64: 1, 64, 16>}]} {
    %c0 = arith.constant 0 : index
    %c0_0 = arith.constant 0 : index
    %c0_1 = arith.constant 0 : index
    %0 = vector.load %arg2[%c0, %c0_0, %c0_1] : memref<1x64x48xf32, #tpu.memory_space<vmem>>, vector<1x64x48xf32>
    %1 = vector.shape_cast %0 : vector<1x64x48xf32> to vector<64x48xf32>
    %c0_2 = arith.constant 0 : index
    %c0_3 = arith.constant 0 : index
    %c0_4 = arith.constant 0 : index
    %2 = vector.load %arg3[%c0_2, %c0_3, %c0_4] : memref<1x64x48xf32, #tpu.memory_space<vmem>>, vector<1x64x48xf32>
    %3 = vector.shape_cast %2 : vector<1x64x48xf32> to vector<64x48xf32>
    %4 = vector.extract_strided_slice %3 {offsets = [0, 0], sizes = [64, 16], strides = [1, 1]} : vector<64x48xf32> to vector<64x16xf32>
    %5 = vector.extract_strided_slice %1 {offsets = [0, 16], sizes = [64, 16], strides = [1, 1]} : vector<64x48xf32> to vector<64x16xf32>
    %6 = vector.extract_strided_slice %1 {offsets = [0, 32], sizes = [64, 16], strides = [1, 1]} : vector<64x48xf32> to vector<64x16xf32>
    %7 = vector.extract_strided_slice %4 {offsets = [0, 0], sizes = [64, 8], strides = [1, 1]} : vector<64x16xf32> to vector<64x8xf32>
    %8 = tpu.transpose %7, [1, 0] : vector<64x8xf32> -> vector<8x64xf32>
    %9 = vector.extract_strided_slice %5 {offsets = [0, 0], sizes = [64, 8], strides = [1, 1]} : vector<64x16xf32> to vector<64x8xf32>
    %10 = tpu.transpose %9, [1, 0] : vector<64x8xf32> -> vector<8x64xf32>
    %11 = vector.extract_strided_slice %6 {offsets = [0, 0], sizes = [64, 8], strides = [1, 1]} : vector<64x16xf32> to vector<64x8xf32>
    %12 = tpu.transpose %11, [1, 0] : vector<64x8xf32> -> vector<8x64xf32>
    %13 = arith.mulf %8, %8 : vector<8x64xf32>
    %cst = arith.constant dense<0.000000e+00> : vector<8xf32>
    %14 = vector.multi_reduction <add>, %13, %cst [1] : vector<8x64xf32> to vector<8xf32>
    %15 = vector.shape_cast %14 : vector<8xf32> to vector<8x1xf32>
    %16 = math.sqrt %15 : vector<8x1xf32>
    %cst_5 = arith.constant 9.99999996E-13 : f32
    %17 = vector.broadcast %cst_5 : f32 to vector<8x1xf32>
    %18 = arith.maximumf %16, %17 : vector<8x1xf32>
    %19 = vector.broadcast %18 : vector<8x1xf32> to vector<8x64xf32>
    %20 = arith.divf %8, %19 : vector<8x64xf32>
    %21 = arith.mulf %10, %10 : vector<8x64xf32>
    %cst_6 = arith.constant dense<0.000000e+00> : vector<8xf32>
    %22 = vector.multi_reduction <add>, %21, %cst_6 [1] : vector<8x64xf32> to vector<8xf32>
    %23 = vector.shape_cast %22 : vector<8xf32> to vector<8x1xf32>
    %24 = math.sqrt %23 : vector<8x1xf32>
    %cst_7 = arith.constant 9.99999996E-13 : f32
    %25 = vector.broadcast %cst_7 : f32 to vector<8x1xf32>
    %26 = arith.maximumf %24, %25 : vector<8x1xf32>
    %27 = vector.broadcast %26 : vector<8x1xf32> to vector<8x64xf32>
    %28 = arith.divf %10, %27 : vector<8x64xf32>
    %29 = tpu.transpose %28, [1, 0] : vector<8x64xf32> -> vector<64x8xf32>
    %cst_8 = arith.constant dense<0.000000e+00> : vector<8x8xf32>
    %30 = tpu.matmul %20, %29, %cst_8 {dimension_numbers = #tpu.dot_dimension_numbers<[1], [0], [0], [1], [0, 0, 1, 1], [], []>} : vector<8x64xf32>, vector<64x8xf32>, vector<8x8xf32> -> vector<8x8xf32>
    %c0_9 = arith.constant 0 : index
    %31 = memref.load %arg1[%c0_9] : memref<2xf32, #tpu.memory_space<smem>>
    %32 = vector.broadcast %31 : f32 to vector<8x8xf32>
    %33 = arith.mulf %30, %32 : vector<8x8xf32>
    %cst_10 = arith.constant dense<0xFF800000> : vector<8xf32>
    %34 = vector.multi_reduction <maximumf>, %33, %cst_10 [1] : vector<8x8xf32> to vector<8xf32>
    %35 = vector.shape_cast %34 : vector<8xf32> to vector<8x1xf32>
    %36 = vector.broadcast %35 : vector<8x1xf32> to vector<8x8xf32>
    %37 = arith.subf %33, %36 : vector<8x8xf32>
    %38 = math.exp %37 : vector<8x8xf32>
    %cst_11 = arith.constant dense<0.000000e+00> : vector<8xf32>
    %39 = vector.multi_reduction <add>, %38, %cst_11 [1] : vector<8x8xf32> to vector<8xf32>
    %40 = vector.shape_cast %39 : vector<8xf32> to vector<8x1xf32>
    %41 = vector.broadcast %40 : vector<8x1xf32> to vector<8x8xf32>
    %42 = arith.divf %38, %41 : vector<8x8xf32>
    %cst_12 = arith.constant dense<0.000000e+00> : vector<8x64xf32>
    %43 = tpu.matmul %42, %12, %cst_12 {dimension_numbers = #tpu.dot_dimension_numbers<[1], [0], [0], [1], [0, 0, 1, 1], [], []>} : vector<8x8xf32>, vector<8x64xf32>, vector<8x64xf32> -> vector<8x64xf32>
    %44 = vector.extract_strided_slice %4 {offsets = [0, 8], sizes = [64, 8], strides = [1, 1]} : vector<64x16xf32> to vector<64x8xf32>
    %45 = tpu.transpose %44, [1, 0] : vector<64x8xf32> -> vector<8x64xf32>
    %46 = vector.extract_strided_slice %5 {offsets = [0, 8], sizes = [64, 8], strides = [1, 1]} : vector<64x16xf32> to vector<64x8xf32>
    %47 = tpu.transpose %46, [1, 0] : vector<64x8xf32> -> vector<8x64xf32>
    %48 = vector.extract_strided_slice %6 {offsets = [0, 8], sizes = [64, 8], strides = [1, 1]} : vector<64x16xf32> to vector<64x8xf32>
    %49 = tpu.transpose %48, [1, 0] : vector<64x8xf32> -> vector<8x64xf32>
    %50 = arith.mulf %45, %45 : vector<8x64xf32>
    %cst_13 = arith.constant dense<0.000000e+00> : vector<8xf32>
    %51 = vector.multi_reduction <add>, %50, %cst_13 [1] : vector<8x64xf32> to vector<8xf32>
    %52 = vector.shape_cast %51 : vector<8xf32> to vector<8x1xf32>
    %53 = math.sqrt %52 : vector<8x1xf32>
    %cst_14 = arith.constant 9.99999996E-13 : f32
    %54 = vector.broadcast %cst_14 : f32 to vector<8x1xf32>
    %55 = arith.maximumf %53, %54 : vector<8x1xf32>
    %56 = vector.broadcast %55 : vector<8x1xf32> to vector<8x64xf32>
    %57 = arith.divf %45, %56 : vector<8x64xf32>
    %58 = arith.mulf %47, %47 : vector<8x64xf32>
    %cst_15 = arith.constant dense<0.000000e+00> : vector<8xf32>
    %59 = vector.multi_reduction <add>, %58, %cst_15 [1] : vector<8x64xf32> to vector<8xf32>
    %60 = vector.shape_cast %59 : vector<8xf32> to vector<8x1xf32>
    %61 = math.sqrt %60 : vector<8x1xf32>
    %cst_16 = arith.constant 9.99999996E-13 : f32
    %62 = vector.broadcast %cst_16 : f32 to vector<8x1xf32>
    %63 = arith.maximumf %61, %62 : vector<8x1xf32>
    %64 = vector.broadcast %63 : vector<8x1xf32> to vector<8x64xf32>
    %65 = arith.divf %47, %64 : vector<8x64xf32>
    %66 = tpu.transpose %65, [1, 0] : vector<8x64xf32> -> vector<64x8xf32>
    %cst_17 = arith.constant dense<0.000000e+00> : vector<8x8xf32>
    %67 = tpu.matmul %57, %66, %cst_17 {dimension_numbers = #tpu.dot_dimension_numbers<[1], [0], [0], [1], [0, 0, 1, 1], [], []>} : vector<8x64xf32>, vector<64x8xf32>, vector<8x8xf32> -> vector<8x8xf32>
    %c1 = arith.constant 1 : index
    %68 = memref.load %arg1[%c1] : memref<2xf32, #tpu.memory_space<smem>>
    %69 = vector.broadcast %68 : f32 to vector<8x8xf32>
    %70 = arith.mulf %67, %69 : vector<8x8xf32>
    %cst_18 = arith.constant dense<0xFF800000> : vector<8xf32>
    %71 = vector.multi_reduction <maximumf>, %70, %cst_18 [1] : vector<8x8xf32> to vector<8xf32>
    %72 = vector.shape_cast %71 : vector<8xf32> to vector<8x1xf32>
    %73 = vector.broadcast %72 : vector<8x1xf32> to vector<8x8xf32>
    %74 = arith.subf %70, %73 : vector<8x8xf32>
    %75 = math.exp %74 : vector<8x8xf32>
    %cst_19 = arith.constant dense<0.000000e+00> : vector<8xf32>
    %76 = vector.multi_reduction <add>, %75, %cst_19 [1] : vector<8x8xf32> to vector<8xf32>
    %77 = vector.shape_cast %76 : vector<8xf32> to vector<8x1xf32>
    %78 = vector.broadcast %77 : vector<8x1xf32> to vector<8x8xf32>
    %79 = arith.divf %75, %78 : vector<8x8xf32>
    %cst_20 = arith.constant dense<0.000000e+00> : vector<8x64xf32>
    %80 = tpu.matmul %79, %49, %cst_20 {dimension_numbers = #tpu.dot_dimension_numbers<[1], [0], [0], [1], [0, 0, 1, 1], [], []>} : vector<8x8xf32>, vector<8x64xf32>, vector<8x64xf32> -> vector<8x64xf32>
    %81 = tpu.concatenate %43, %80 in 0 : vector<8x64xf32>, vector<8x64xf32> -> vector<16x64xf32>
    %82 = tpu.transpose %81, [1, 0] : vector<16x64xf32> -> vector<64x16xf32>
    %c0_21 = arith.constant 0 : index
    %c0_22 = arith.constant 0 : index
    %83 = vector.load %arg5[%c0_21, %c0_22] : memref<16x16xf32, #tpu.memory_space<vmem>>, vector<16x16xf32>
    %cst_23 = arith.constant dense<0.000000e+00> : vector<64x16xf32>
    %84 = tpu.matmul %82, %83, %cst_23 {dimension_numbers = #tpu.dot_dimension_numbers<[1], [0], [0], [1], [0, 0, 1, 1], [], []>} : vector<64x16xf32>, vector<16x16xf32>, vector<64x16xf32> -> vector<64x16xf32>
    %c0_24 = arith.constant 0 : index
    %c0_25 = arith.constant 0 : index
    %c0_26 = arith.constant 0 : index
    %85 = vector.load %arg4[%c0_24, %c0_25, %c0_26] : memref<1x64x16xf32, #tpu.memory_space<vmem>>, vector<1x64x16xf32>
    %86 = vector.shape_cast %85 : vector<1x64x16xf32> to vector<64x16xf32>
    %87 = arith.addf %86, %84 : vector<64x16xf32>
    %c0_27 = arith.constant 0 : index
    %c0_28 = arith.constant 0 : index
    %c0_29 = arith.constant 0 : index
    %88 = vector.load %arg6[%c0_27, %c0_28, %c0_29] : memref<1x64x16xf32, #tpu.memory_space<vmem>>, vector<1x64x16xf32>
    %89 = vector.shape_cast %88 : vector<1x64x16xf32> to vector<64x16xf32>
    %90 = vector.shape_cast %87 : vector<64x16xf32> to vector<1x64x16xf32>
    tpu.vector_store %arg6[%c0_27, %c0_28, %c0_29], %90 {strides = array<i32>} : memref<1x64x16xf32, #tpu.memory_space<vmem>>, vector<1x64x16xf32>,
    return
  }
  func.func @transform_0(%arg0: i32) -> i32 {
    %c0_i32 = arith.constant 0 : i32
    %c0_i32_0 = arith.constant 0 : i32
    return %c0_i32 : i32
  }
  func.func @transform_1(%arg0: i32) -> (i32, i32, i32) {
    %c0_i32 = arith.constant 0 : i32
    %c0_i32_0 = arith.constant 0 : i32
    %c0_i32_1 = arith.constant 0 : i32
    return %arg0, %c0_i32, %c0_i32_0 : i32, i32, i32
  }
  func.func @transform_2(%arg0: i32) -> (i32, i32, i32) {
    %c2_i32 = arith.constant 2 : i32
    %0 = arith.addi %arg0, %c2_i32 : i32
    %c0_i32 = arith.constant 0 : i32
    %c0_i32_0 = arith.constant 0 : i32
    %c0_i32_1 = arith.constant 0 : i32
    return %0, %c0_i32, %c0_i32_0 : i32, i32, i32
  }
  func.func @transform_3(%arg0: i32) -> (i32, i32, i32) {
    %c0_i32 = arith.constant 0 : i32
    %c0_i32_0 = arith.constant 0 : i32
    %c0_i32_1 = arith.constant 0 : i32
    return %arg0, %c0_i32, %c0_i32_0 : i32, i32, i32
  }
  func.func @transform_4(%arg0: i32) -> (i32, i32) {
    %c0_i32 = arith.constant 0 : i32
    %c0_i32_0 = arith.constant 0 : i32
    %c0_i32_1 = arith.constant 0 : i32
    return %c0_i32, %c0_i32_0 : i32, i32
  }
  func.func @transform_5(%arg0: i32) -> (i32, i32, i32) {
    %c0_i32 = arith.constant 0 : i32
    %c0_i32_0 = arith.constant 0 : i32
    %c0_i32_1 = arith.constant 0 : i32
    return %arg0, %c0_i32, %c0_i32_0 : i32, i32, i32
  }
}

module attributes {stable_mosaic.version = 11 : i64} {
  func.func @dwconv3x3_kernel(%arg0: i32, %arg1: memref<1x10x10x64xf32, #tpu.memory_space<vmem>>, %arg2: memref<9x64xf32, #tpu.memory_space<vmem>>, %arg3: memref<1x8x8x64xf32, #tpu.memory_space<vmem>>) attributes {dimension_semantics = [#tpu.dimension_semantics<parallel>], iteration_bounds = array<i64: 2>, scalar_prefetch = 0 : i64, scratch_operands = 0 : i64, tpu.core_type = #tpu.core_type<tc>, window_params = [{transform_indices = @transform_0, window_bounds = array<i64: 1, 10, 10, 64>}, {pipeline_mode = #tpu.pipeline_mode<synchronous>, transform_indices = @transform_1, window_bounds = array<i64: 9, 64>}, {transform_indices = @transform_2, window_bounds = array<i64: 1, 8, 8, 64>}]} {
    %c0 = arith.constant 0 : index
    %c0_0 = arith.constant 0 : index
    %c0_1 = arith.constant 0 : index
    %c0_2 = arith.constant 0 : index
    %0 = vector.load %arg1[%c0, %c0_0, %c0_1, %c0_2] : memref<1x10x10x64xf32, #tpu.memory_space<vmem>>, vector<1x10x10x64xf32>
    %1 = vector.shape_cast %0 : vector<1x10x10x64xf32> to vector<10x10x64xf32>
    %cst = arith.constant 0.000000e+00 : f32
    %2 = vector.broadcast %cst : f32 to vector<8x8x64xf32>
    %c0_3 = arith.constant 0 : index
    %c0_4 = arith.constant 0 : index
    %3 = vector.load %arg2[%c0_3, %c0_4] : memref<9x64xf32, #tpu.memory_space<vmem>>, vector<1x64xf32>
    %4 = vector.shape_cast %3 : vector<1x64xf32> to vector<64xf32>
    %5 = vector.extract_strided_slice %1 {offsets = [0, 0, 0], sizes = [8, 8, 64], strides = [1, 1, 1]} : vector<10x10x64xf32> to vector<8x8x64xf32>
    %6 = vector.shape_cast %4 : vector<64xf32> to vector<1x1x64xf32>
    %7 = vector.broadcast %6 : vector<1x1x64xf32> to vector<8x8x64xf32>
    %8 = arith.mulf %5, %7 : vector<8x8x64xf32>
    %9 = arith.addf %2, %8 : vector<8x8x64xf32>
    %c1 = arith.constant 1 : index
    %c0_5 = arith.constant 0 : index
    %10 = vector.load %arg2[%c1, %c0_5] : memref<9x64xf32, #tpu.memory_space<vmem>>, vector<1x64xf32>
    %11 = vector.shape_cast %10 : vector<1x64xf32> to vector<64xf32>
    %12 = vector.extract_strided_slice %1 {offsets = [0, 1, 0], sizes = [8, 8, 64], strides = [1, 1, 1]} : vector<10x10x64xf32> to vector<8x8x64xf32>
    %13 = vector.shape_cast %11 : vector<64xf32> to vector<1x1x64xf32>
    %14 = vector.broadcast %13 : vector<1x1x64xf32> to vector<8x8x64xf32>
    %15 = arith.mulf %12, %14 : vector<8x8x64xf32>
    %16 = arith.addf %9, %15 : vector<8x8x64xf32>
    %c2 = arith.constant 2 : index
    %c0_6 = arith.constant 0 : index
    %17 = vector.load %arg2[%c2, %c0_6] : memref<9x64xf32, #tpu.memory_space<vmem>>, vector<1x64xf32>
    %18 = vector.shape_cast %17 : vector<1x64xf32> to vector<64xf32>
    %19 = vector.extract_strided_slice %1 {offsets = [0, 2, 0], sizes = [8, 8, 64], strides = [1, 1, 1]} : vector<10x10x64xf32> to vector<8x8x64xf32>
    %20 = vector.shape_cast %18 : vector<64xf32> to vector<1x1x64xf32>
    %21 = vector.broadcast %20 : vector<1x1x64xf32> to vector<8x8x64xf32>
    %22 = arith.mulf %19, %21 : vector<8x8x64xf32>
    %23 = arith.addf %16, %22 : vector<8x8x64xf32>
    %c3 = arith.constant 3 : index
    %c0_7 = arith.constant 0 : index
    %24 = vector.load %arg2[%c3, %c0_7] : memref<9x64xf32, #tpu.memory_space<vmem>>, vector<1x64xf32>
    %25 = vector.shape_cast %24 : vector<1x64xf32> to vector<64xf32>
    %26 = vector.extract_strided_slice %1 {offsets = [1, 0, 0], sizes = [8, 8, 64], strides = [1, 1, 1]} : vector<10x10x64xf32> to vector<8x8x64xf32>
    %27 = vector.shape_cast %25 : vector<64xf32> to vector<1x1x64xf32>
    %28 = vector.broadcast %27 : vector<1x1x64xf32> to vector<8x8x64xf32>
    %29 = arith.mulf %26, %28 : vector<8x8x64xf32>
    %30 = arith.addf %23, %29 : vector<8x8x64xf32>
    %c4 = arith.constant 4 : index
    %c0_8 = arith.constant 0 : index
    %31 = vector.load %arg2[%c4, %c0_8] : memref<9x64xf32, #tpu.memory_space<vmem>>, vector<1x64xf32>
    %32 = vector.shape_cast %31 : vector<1x64xf32> to vector<64xf32>
    %33 = vector.extract_strided_slice %1 {offsets = [1, 1, 0], sizes = [8, 8, 64], strides = [1, 1, 1]} : vector<10x10x64xf32> to vector<8x8x64xf32>
    %34 = vector.shape_cast %32 : vector<64xf32> to vector<1x1x64xf32>
    %35 = vector.broadcast %34 : vector<1x1x64xf32> to vector<8x8x64xf32>
    %36 = arith.mulf %33, %35 : vector<8x8x64xf32>
    %37 = arith.addf %30, %36 : vector<8x8x64xf32>
    %c5 = arith.constant 5 : index
    %c0_9 = arith.constant 0 : index
    %38 = vector.load %arg2[%c5, %c0_9] : memref<9x64xf32, #tpu.memory_space<vmem>>, vector<1x64xf32>
    %39 = vector.shape_cast %38 : vector<1x64xf32> to vector<64xf32>
    %40 = vector.extract_strided_slice %1 {offsets = [1, 2, 0], sizes = [8, 8, 64], strides = [1, 1, 1]} : vector<10x10x64xf32> to vector<8x8x64xf32>
    %41 = vector.shape_cast %39 : vector<64xf32> to vector<1x1x64xf32>
    %42 = vector.broadcast %41 : vector<1x1x64xf32> to vector<8x8x64xf32>
    %43 = arith.mulf %40, %42 : vector<8x8x64xf32>
    %44 = arith.addf %37, %43 : vector<8x8x64xf32>
    %c6 = arith.constant 6 : index
    %c0_10 = arith.constant 0 : index
    %45 = vector.load %arg2[%c6, %c0_10] : memref<9x64xf32, #tpu.memory_space<vmem>>, vector<1x64xf32>
    %46 = vector.shape_cast %45 : vector<1x64xf32> to vector<64xf32>
    %47 = vector.extract_strided_slice %1 {offsets = [2, 0, 0], sizes = [8, 8, 64], strides = [1, 1, 1]} : vector<10x10x64xf32> to vector<8x8x64xf32>
    %48 = vector.shape_cast %46 : vector<64xf32> to vector<1x1x64xf32>
    %49 = vector.broadcast %48 : vector<1x1x64xf32> to vector<8x8x64xf32>
    %50 = arith.mulf %47, %49 : vector<8x8x64xf32>
    %51 = arith.addf %44, %50 : vector<8x8x64xf32>
    %c7 = arith.constant 7 : index
    %c0_11 = arith.constant 0 : index
    %52 = vector.load %arg2[%c7, %c0_11] : memref<9x64xf32, #tpu.memory_space<vmem>>, vector<1x64xf32>
    %53 = vector.shape_cast %52 : vector<1x64xf32> to vector<64xf32>
    %54 = vector.extract_strided_slice %1 {offsets = [2, 1, 0], sizes = [8, 8, 64], strides = [1, 1, 1]} : vector<10x10x64xf32> to vector<8x8x64xf32>
    %55 = vector.shape_cast %53 : vector<64xf32> to vector<1x1x64xf32>
    %56 = vector.broadcast %55 : vector<1x1x64xf32> to vector<8x8x64xf32>
    %57 = arith.mulf %54, %56 : vector<8x8x64xf32>
    %58 = arith.addf %51, %57 : vector<8x8x64xf32>
    %c8 = arith.constant 8 : index
    %c0_12 = arith.constant 0 : index
    %59 = vector.load %arg2[%c8, %c0_12] : memref<9x64xf32, #tpu.memory_space<vmem>>, vector<1x64xf32>
    %60 = vector.shape_cast %59 : vector<1x64xf32> to vector<64xf32>
    %61 = vector.extract_strided_slice %1 {offsets = [2, 2, 0], sizes = [8, 8, 64], strides = [1, 1, 1]} : vector<10x10x64xf32> to vector<8x8x64xf32>
    %62 = vector.shape_cast %60 : vector<64xf32> to vector<1x1x64xf32>
    %63 = vector.broadcast %62 : vector<1x1x64xf32> to vector<8x8x64xf32>
    %64 = arith.mulf %61, %63 : vector<8x8x64xf32>
    %65 = arith.addf %58, %64 : vector<8x8x64xf32>
    %c0_13 = arith.constant 0 : index
    %c0_14 = arith.constant 0 : index
    %c0_15 = arith.constant 0 : index
    %c0_16 = arith.constant 0 : index
    %66 = vector.load %arg3[%c0_13, %c0_14, %c0_15, %c0_16] : memref<1x8x8x64xf32, #tpu.memory_space<vmem>>, vector<1x8x8x64xf32>
    %67 = vector.shape_cast %66 : vector<1x8x8x64xf32> to vector<8x8x64xf32>
    %68 = vector.shape_cast %65 : vector<8x8x64xf32> to vector<1x8x8x64xf32>
    tpu.vector_store %arg3[%c0_13, %c0_14, %c0_15, %c0_16], %68 {strides = array<i32>} : memref<1x8x8x64xf32, #tpu.memory_space<vmem>>, vector<1x8x8x64xf32>,
    return
  }
  func.func @transform_0(%arg0: i32) -> (i32, i32, i32, i32) {
    %c0_i32 = arith.constant 0 : i32
    %c0_i32_0 = arith.constant 0 : i32
    %c0_i32_1 = arith.constant 0 : i32
    %c0_i32_2 = arith.constant 0 : i32
    return %arg0, %c0_i32, %c0_i32_0, %c0_i32_1 : i32, i32, i32, i32
  }
  func.func @transform_1(%arg0: i32) -> (i32, i32) {
    %c0_i32 = arith.constant 0 : i32
    %c0_i32_0 = arith.constant 0 : i32
    %c0_i32_1 = arith.constant 0 : i32
    return %c0_i32, %c0_i32_0 : i32, i32
  }
  func.func @transform_2(%arg0: i32) -> (i32, i32, i32, i32) {
    %c0_i32 = arith.constant 0 : i32
    %c0_i32_0 = arith.constant 0 : i32
    %c0_i32_1 = arith.constant 0 : i32
    %c0_i32_2 = arith.constant 0 : i32
    return %arg0, %c0_i32, %c0_i32_0, %c0_i32_1 : i32, i32, i32, i32
  }
}

module attributes {stable_mosaic.version = 11 : i64} {
  func.func @ffn_out_kernel(%arg0: i32, %arg1: memref<128x64xf32, #tpu.memory_space<vmem>>, %arg2: memref<128x16xf32, #tpu.memory_space<vmem>>, %arg3: memref<32x16xf32, #tpu.memory_space<vmem>>, %arg4: memref<128x16xf32, #tpu.memory_space<vmem>>) attributes {dimension_semantics = [#tpu.dimension_semantics<parallel>], iteration_bounds = array<i64: 1>, scalar_prefetch = 0 : i64, scratch_operands = 0 : i64, tpu.core_type = #tpu.core_type<tc>, window_params = [{transform_indices = @transform_0, window_bounds = array<i64: 128, 64>}, {transform_indices = @transform_1, window_bounds = array<i64: 128, 16>}, {pipeline_mode = #tpu.pipeline_mode<synchronous>, transform_indices = @transform_2, window_bounds = array<i64: 32, 16>}, {transform_indices = @transform_3, window_bounds = array<i64: 128, 16>}]} {
    %c0 = arith.constant 0 : index
    %c0_0 = arith.constant 0 : index
    %0 = vector.load %arg1[%c0, %c0_0] : memref<128x64xf32, #tpu.memory_space<vmem>>, vector<128x64xf32>
    %1 = vector.extract_strided_slice %0 {offsets = [0, 0], sizes = [128, 32], strides = [1, 1]} : vector<128x64xf32> to vector<128x32xf32>
    %2 = vector.extract_strided_slice %0 {offsets = [0, 32], sizes = [128, 32], strides = [1, 1]} : vector<128x64xf32> to vector<128x32xf32>
    %cst = arith.constant 5.000000e-01 : f32
    %3 = vector.broadcast %cst : f32 to vector<128x32xf32>
    %4 = arith.mulf %3, %1 : vector<128x32xf32>
    %cst_1 = arith.constant 0.707106769 : f32
    %5 = vector.broadcast %cst_1 : f32 to vector<128x32xf32>
    %6 = arith.mulf %1, %5 : vector<128x32xf32>
    %7 = math.erf %6 : vector<128x32xf32>
    %cst_2 = arith.constant 1.000000e+00 : f32
    %8 = vector.broadcast %cst_2 : f32 to vector<128x32xf32>
    %9 = arith.addf %8, %7 : vector<128x32xf32>
    %10 = arith.mulf %4, %9 : vector<128x32xf32>
    %11 = arith.mulf %10, %2 : vector<128x32xf32>
    %c0_3 = arith.constant 0 : index
    %c0_4 = arith.constant 0 : index
    %12 = vector.load %arg3[%c0_3, %c0_4] : memref<32x16xf32, #tpu.memory_space<vmem>>, vector<32x16xf32>
    %cst_5 = arith.constant dense<0.000000e+00> : vector<128x16xf32>
    %13 = tpu.matmul %11, %12, %cst_5 {dimension_numbers = #tpu.dot_dimension_numbers<[1], [0], [0], [1], [0, 0, 1, 1], [], []>} : vector<128x32xf32>, vector<32x16xf32>, vector<128x16xf32> -> vector<128x16xf32>
    %c0_6 = arith.constant 0 : index
    %c0_7 = arith.constant 0 : index
    %14 = vector.load %arg2[%c0_6, %c0_7] : memref<128x16xf32, #tpu.memory_space<vmem>>, vector<128x16xf32>
    %15 = arith.addf %14, %13 : vector<128x16xf32>
    %c0_8 = arith.constant 0 : index
    %c0_9 = arith.constant 0 : index
    %16 = vector.load %arg4[%c0_8, %c0_9] : memref<128x16xf32, #tpu.memory_space<vmem>>, vector<128x16xf32>
    tpu.vector_store %arg4[%c0_8, %c0_9], %15 {strides = array<i32>} : memref<128x16xf32, #tpu.memory_space<vmem>>, vector<128x16xf32>,
    return
  }
  func.func @transform_0(%arg0: i32) -> (i32, i32) {
    %c0_i32 = arith.constant 0 : i32
    %c0_i32_0 = arith.constant 0 : i32
    return %arg0, %c0_i32 : i32, i32
  }
  func.func @transform_1(%arg0: i32) -> (i32, i32) {
    %c0_i32 = arith.constant 0 : i32
    %c0_i32_0 = arith.constant 0 : i32
    return %arg0, %c0_i32 : i32, i32
  }
  func.func @transform_2(%arg0: i32) -> (i32, i32) {
    %c0_i32 = arith.constant 0 : i32
    %c0_i32_0 = arith.constant 0 : i32
    %c0_i32_1 = arith.constant 0 : i32
    return %c0_i32, %c0_i32_0 : i32, i32
  }
  func.func @transform_3(%arg0: i32) -> (i32, i32) {
    %c0_i32 = arith.constant 0 : i32
    %c0_i32_0 = arith.constant 0 : i32
    return %arg0, %c0_i32 : i32, i32
  }
}

</mosaic_0001>

<llo_original>
// kernel: transformer_block_forward.7
$region0: #{transformer_block_forward.7}
  #allocation0 [shape = 'u32[]', space=smem, size = 0x4, offset = 0x4, fixed_abs, tag = 'smem constant byte address 0x4 - core index']
  #allocation1 [shape = 'u32[144,128]{1,0:T(1,128)}', space=vmem, size = 0x12000, scoped, tag = 'internal scratch']
  %s0 = inlined_call_operand.vmem [shape: f32[4,10,10,48], index: 0, kind: input, shape index: {}]
  %s1 = inlined_call_operand.vmem [shape: f32[9,48], index: 1, kind: input, shape index: {}]
  %s2 = inlined_call_operand.vmem [shape: f32[4,8,8,48], index: 2, kind: output, shape index: {}]
  %s3 = sld [smem:[#allocation0]]
  $region41: #{transformer_block_forward.7} parent=0
    _
  %s5 = ssub.s32 1, %s3
  %s6 = scalar_select 0, %s5, %s3
  loop: start=0, step=1, limit=6
  $region2: #{transformer_block_forward.7} parent=0 // loop_pre_header
    _
  $region3: #{transformer_block_forward.7} parent=0 // loop_header
    %s8 = sphi 0, %s12
    %p9 = scmp.ge.s32.totalorder %s8, 6
    %s18 = sphi 0, %s20
    %s21 = sphi 0, %s18
    %s22 = sphi 0, %s21
    %s38 = sphi 0, %s22
    %s42 = sphi 0, %s42
    %s44 = sphi 0, %s42
    %s45 = sphi 0, %s44
    %s59 = sphi 0, %s45
    %s65 = sphi 0, %s67
    %s68 = sphi 0, %s65
    %s69 = sphi 0, %s68
    %s85 = sphi 0, %s69
  $region4: #{transformer_block_forward.7} parent=0 // loop_header_branch
    %11 = sbr.rel (%p9) target = $region8
  $region5: #{transformer_block_forward.7} parent=0 // loop_body
    %s13 = ssub.s32 %s8, 1
    %s14 = ssub.s32 %s8, 2
    %s15 = sadd.s32 %s8, 1
    %s16 = ssub.s32 %s8, %s15
    %p17 = scmp.eq.s32.totalorder %s16, 0
    %s19 = sadd.s32 %s18, 1
    %s20 = scalar_select %p17, %s18, %s19
    %p23 = pneg %p17
    %p24 = scmp.eq.s32.totalorder %s8, 3
    %p25 = por %p23, %p24
    %p26 = scmp.ne.s32.totalorder %s18, %s21
    %p27 = scmp.eq.s32.totalorder %s8, 0
    %p28 = por %p26, %p27
    %p29 = scmp.ne.s32.totalorder %s18, %s21
    %p30 = scmp.eq.s32.totalorder %s13, 3
    %p31 = por %p29, %p30
    %p32 = scmp.ne.s32.totalorder %s21, %s22
    %p33 = scmp.eq.s32.totalorder %s13, 0
    %p34 = por %p32, %p33
    %p35 = scmp.ne.s32.totalorder %s21, %s22
    %p36 = scmp.eq.s32.totalorder %s14, 3
    %p37 = por %p35, %p36
    %p39 = scmp.ne.s32.totalorder %s22, %s38
    %p40 = scmp.eq.s32.totalorder %s14, 0
    %p41 = por %p39, %p40
    %s43 = sadd.s32 %s42, 1
    %p46 = scmp.eq.s32.totalorder %s8, 3
    %p47 = scmp.ne.s32.totalorder %s42, %s44
    %p48 = scmp.eq.s32.totalorder %s8, 0
    %p49 = por %p47, %p48
    %p50 = scmp.ne.s32.totalorder %s42, %s44
    %p51 = scmp.eq.s32.totalorder %s13, 3
    %p52 = por %p50, %p51
    %p53 = scmp.ne.s32.totalorder %s44, %s45
    %p54 = scmp.eq.s32.totalorder %s13, 0
    %p55 = por %p53, %p54
    %p56 = scmp.ne.s32.totalorder %s44, %s45
    %p57 = scmp.eq.s32.totalorder %s14, 3
    %p58 = por %p56, %p57
    %p60 = scmp.ne.s32.totalorder %s45, %s59
    %p61 = scmp.eq.s32.totalorder %s14, 0
    %p62 = por %p60, %p61
    %s63 = ssub.s32 %s8, %s15
    %p64 = scmp.eq.s32.totalorder %s63, 0
    %s66 = sadd.s32 %s65, 1
    %s67 = scalar_select %p64, %s65, %s66
    %p70 = pneg %p64
    %p71 = scmp.eq.s32.totalorder %s8, 3
    %p72 = por %p70, %p71
    %p73 = scmp.ne.s32.totalorder %s65, %s68
    %p74 = scmp.eq.s32.totalorder %s8, 0
    %p75 = por %p73, %p74
    %p76 = scmp.ne.s32.totalorder %s65, %s68
    %p77 = scmp.eq.s32.totalorder %s13, 3
    %p78 = por %p76, %p77
    %p79 = scmp.ne.s32.totalorder %s68, %s69
    %p80 = scmp.eq.s32.totalorder %s13, 0
    %p81 = por %p79, %p80
    %p82 = scmp.ne.s32.totalorder %s68, %s69
    %p83 = scmp.eq.s32.totalorder %s14, 3
    %p84 = por %p82, %p83
    %p86 = scmp.ne.s32.totalorder %s69, %s85
    %p87 = scmp.eq.s32.totalorder %s14, 0
    %p88 = por %p86, %p87
    %p89 = scmp.le.s32.totalorder 1, %s8
    %p90 = scmp.lt.s32.totalorder %s8, 5
    %p91 = pnand %p89, %p90
    %p92 = pneg %p91
    // Predicated region
    $region9: #{transformer_block_forward.7} parent=5 // pred_check
      _
    $region10: #{transformer_block_forward.7} parent=5 // pred_check_branch
      %94 = sbr.rel (%p91) target = $region12
    $region11: #{transformer_block_forward.7} parent=5 // pred_region
      %s95 = ssub.s32 %s8, 1
      // Predicated region
      $region13: #{transformer_block_forward.7} parent=11 // pred_check
        %p96 = pneg %p55
      $region14: #{transformer_block_forward.7} parent=11 // pred_check_branch
        %98 = sbr.rel (%p96) target = $region16
      $region15: #{transformer_block_forward.7} parent=11 // pred_region
        _
      $region16: #{transformer_block_forward.7} parent=11 // pred_fallthru
        _
    $region12: #{transformer_block_forward.7} parent=5 // pred_fallthru
      _
    %p99 = scmp.lt.s32.totalorder %s8, 4
    // Predicated region
    $region17: #{transformer_block_forward.7} parent=5 // pred_check
      %p100 = pneg %p99
    $region18: #{transformer_block_forward.7} parent=5 // pred_check_branch
      %102 = sbr.rel (%p100) target = $region20
    $region19: #{transformer_block_forward.7} parent=5 // pred_region
      // Predicated region
      $region21: #{transformer_block_forward.7} parent=19 // pred_check
        %p103 = pneg %p28
      $region22: #{transformer_block_forward.7} parent=19 // pred_check_branch
        %105 = sbr.rel (%p103) target = $region24
      $region23: #{transformer_block_forward.7} parent=19 // pred_region
        %p106 = scmp.lt.s32.totalorder %s8, 3
        %s107 = scalar_select %p106, %s8, 3
        %s108 = smul.addr %s107, 20
        %s109 = smul.addr %s108, 8
        %s110 = scalar_lea.vmem %s0, %s109
      $region24: #{transformer_block_forward.7} parent=19 // pred_fallthru
        _
    $region20: #{transformer_block_forward.7} parent=5 // pred_fallthru
      _
    %p111 = scmp.le.s32.totalorder 1, %s8
    %p112 = scmp.lt.s32.totalorder %s8, 5
    %p113 = pnand %p111, %p112
    %p114 = pneg %p113
    // Predicated region
    $region25: #{transformer_block_forward.7} parent=5 // pred_check
      _
    $region26: #{transformer_block_forward.7} parent=5 // pred_check_branch
      %116 = sbr.rel (%p113) target = $region28
    $region27: #{transformer_block_forward.7} parent=5 // pred_region
      %s117 = ssub.s32 %s8, 1
      %p118 = scmp.lt.s32.totalorder %s13, 3
      %s119 = scalar_select %p118, %s13, 3
      %s120 = smul.addr %s119, 20
      %s121 = smul.addr %s120, 8
      %s122 = scalar_lea.vmem %s0, %s121
      %p123 = pneg %p34
      %p124 = pneg %p31
      %p125 = pneg %p55
      %p126 = pneg %p52
      %p127 = pneg %p81
      %p128 = pneg %p78
      %p129 = scmp.lt.s32.totalorder %s13, 3
      %s130 = scalar_select %p129, %s13, 3
      %s131 = smul.addr %s130, 8
      %s132 = smul.addr %s131, 8
      %s133 = scalar_lea.vmem %s2, %s132
      %p134 = scmp.lt.s32.totalorder %s13, 3
      %s135 = scalar_select %p134, %s13, 3
      %s136 = smul.addr %s135, 20
      %s137 = smul.addr %s136, 8
      %s138 = scalar_lea.vmem %s0, %s137
      %p139 = scmp.lt.s32.totalorder %s13, 3
      %s140 = scalar_select %p139, %s13, 3
      %s141 = smul.addr %s140, 8
      %s142 = smul.addr %s141, 8
      %s143 = scalar_lea.vmem %s2, %s142
      %v144 = vld [vmem:[%s138] sm:$0xff]
      %v145 = vld [vmem:[%s138 + $0x8] sm:$0x3]
      %v146 = vld [vmem:[%s138 + $0x10] sm:$0xff]
      %v147 = vld [vmem:[%s138 + $0x18] sm:$0x3]
      %v148 = vld [vmem:[%s138 + $0x20] sm:$0xff]
      %v149 = vld [vmem:[%s138 + $0x28] sm:$0x3]
      %v150 = vld [vmem:[%s138 + $0x30] sm:$0xff]
      %v151 = vld [vmem:[%s138 + $0x38] sm:$0x3]
      %v152 = vld [vmem:[%s138 + $0x40] sm:$0xff]
      %v153 = vld [vmem:[%s138 + $0x48] sm:$0x3]
      %v154 = vld [vmem:[%s138 + $0x50] sm:$0xff]
      %v155 = vld [vmem:[%s138 + $0x58] sm:$0x3]
      %v156 = vld [vmem:[%s138 + $0x60] sm:$0xff]
      %v157 = vld [vmem:[%s138 + $0x68] sm:$0x3]
      %v158 = vld [vmem:[%s138 + $0x70] sm:$0xff]
      %v159 = vld [vmem:[%s138 + $0x78] sm:$0x3]
      %v160 = vld [vmem:[%s138 + $0x80] sm:$0xff]
      %v161 = vld [vmem:[%s138 + $0x88] sm:$0x3]
      %v162 = vld [vmem:[%s138 + $0x90] sm:$0xff]
      %v163 = vld [vmem:[%s138 + $0x98] sm:$0x3]
      %v164 = vld [vmem:[%s1] sm:$0x1]
      %v165 = vlaneseq
      %v166 = vshrl.u32 %v165, 7
      %v167 = vsub.s32 0, %v166
      %v168 = vrot.slane %v164, %v167
      %v169 = vmul.f32 %v144, %v168
      %v170 = vmul.f32 %v146, %v168
      %v171 = vmul.f32 %v148, %v168
      %v172 = vmul.f32 %v150, %v168
      %v173 = vmul.f32 %v152, %v168
      %v174 = vmul.f32 %v154, %v168
      %v175 = vmul.f32 %v156, %v168
      %v176 = vmul.f32 %v158, %v168
      %v177 = vadd.f32 %v169, 0.0
      %v178 = vadd.f32 %v170, 0.0
      %v179 = vadd.f32 %v171, 0.0
      %v180 = vadd.f32 %v172, 0.0
      %v181 = vadd.f32 %v173, 0.0
      %v182 = vadd.f32 %v174, 0.0
      %v183 = vadd.f32 %v175, 0.0
      %v184 = vadd.f32 %v176, 0.0
      %v185 = vld [vmem:[%s1 + $0x1] sm:$0x1]
      %v186 = vlaneseq
      %v187 = vshrl.u32 %v186, 7
      %v188 = vsub.s32 0, %v187
      %v189 = vrot.slane %v185, %v188
      %v190 = vmul.f32 %v144, %v189
      %v191 = vmul.f32 %v145, %v189
      %v192 = vmul.f32 %v146, %v189
      %v193 = vmul.f32 %v147, %v189
      %v194 = vmul.f32 %v148, %v189
      %v195 = vmul.f32 %v149, %v189
      %v196 = vmul.f32 %v150, %v189
      %v197 = vmul.f32 %v151, %v189
      %v198 = vmul.f32 %v152, %v189
      %v199 = vmul.f32 %v153, %v189
      %v200 = vmul.f32 %v154, %v189
      %v201 = vmul.f32 %v155, %v189
      %v202 = vmul.f32 %v156, %v189
      %v203 = vmul.f32 %v157, %v189
      %v204 = vmul.f32 %v158, %v189
      %v205 = vmul.f32 %v159, %v189
      %vm222 = vcmask 1046528
      %v223 = vrot.slane %v190, 1
      %v224 = vrot.slane %v191, 1
      %v225 = vsel %vm222, %v223, %v224
      %v226 = vrot.slane %v192, 1
      %v227 = vrot.slane %v193, 1
      %v228 = vsel %vm222, %v226, %v227
      %v229 = vrot.slane %v194, 1
      %v230 = vrot.slane %v195, 1
      %v231 = vsel %vm222, %v229, %v230
      %v232 = vrot.slane %v196, 1
      %v233 = vrot.slane %v197, 1
      %v234 = vsel %vm222, %v232, %v233
      %v235 = vrot.slane %v198, 1
      %v236 = vrot.slane %v199, 1
      %v237 = vsel %vm222, %v235, %v236
      %v238 = vrot.slane %v200, 1
      %v239 = vrot.slane %v201, 1
      %v240 = vsel %vm222, %v238, %v239
      %v241 = vrot.slane %v202, 1
      %v242 = vrot.slane %v203, 1
      %v243 = vsel %vm222, %v241, %v242
      %v244 = vrot.slane %v204, 1
      %v245 = vrot.slane %v205, 1
      %v246 = vsel %vm222, %v244, %v245
      %v255 = vadd.f32 %v177, %v225
      %v256 = vadd.f32 %v178, %v228
      %v257 = vadd.f32 %v179, %v231
      %v258 = vadd.f32 %v180, %v234
      %v259 = vadd.f32 %v181, %v237
      %v260 = vadd.f32 %v182, %v240
      %v261 = vadd.f32 %v183, %v243
      %v262 = vadd.f32 %v184, %v246
      %v263 = vld [vmem:[%s1 + $0x2] sm:$0x1]
      %v264 = vlaneseq
      %v265 = vshrl.u32 %v264, 7
      %v266 = vsub.s32 0, %v265
      %v267 = vrot.slane %v263, %v266
      %v268 = vmul.f32 %v144, %v267
      %v269 = vmul.f32 %v145, %v267
      %v270 = vmul.f32 %v146, %v267
      %v271 = vmul.f32 %v147, %v267
      %v272 = vmul.f32 %v148, %v267
      %v273 = vmul.f32 %v149, %v267
      %v274 = vmul.f32 %v150, %v267
      %v275 = vmul.f32 %v151, %v267
      %v276 = vmul.f32 %v152, %v267
      %v277 = vmul.f32 %v153, %v267
      %v278 = vmul.f32 %v154, %v267
      %v279 = vmul.f32 %v155, %v267
      %v280 = vmul.f32 %v156, %v267
      %v281 = vmul.f32 %v157, %v267
      %v282 = vmul.f32 %v158, %v267
      %v283 = vmul.f32 %v159, %v267
      %vm300 = vcmask 1045504
      %v301 = vrot.slane %v268, 2
      %v302 = vrot.slane %v269, 2
      %v303 = vsel %vm300, %v301, %v302
      %v304 = vrot.slane %v270, 2
      %v305 = vrot.slane %v271, 2
      %v306 = vsel %vm300, %v304, %v305
      %v307 = vrot.slane %v272, 2
      %v308 = vrot.slane %v273, 2
      %v309 = vsel %vm300, %v307, %v308
      %v310 = vrot.slane %v274, 2
      %v311 = vrot.slane %v275, 2
      %v312 = vsel %vm300, %v310, %v311
      %v313 = vrot.slane %v276, 2
      %v314 = vrot.slane %v277, 2
      %v315 = vsel %vm300, %v313, %v314
      %v316 = vrot.slane %v278, 2
      %v317 = vrot.slane %v279, 2
      %v318 = vsel %vm300, %v316, %v317
      %v319 = vrot.slane %v280, 2
      %v320 = vrot.slane %v281, 2
      %v321 = vsel %vm300, %v319, %v320
      %v322 = vrot.slane %v282, 2
      %v323 = vrot.slane %v283, 2
      %v324 = vsel %vm300, %v322, %v323
      %v333 = vadd.f32 %v255, %v303
      %v334 = vadd.f32 %v256, %v306
      %v335 = vadd.f32 %v257, %v309
      %v336 = vadd.f32 %v258, %v312
      %v337 = vadd.f32 %v259, %v315
      %v338 = vadd.f32 %v260, %v318
      %v339 = vadd.f32 %v261, %v321
      %v340 = vadd.f32 %v262, %v324
      %v341 = vld [vmem:[%s1 + $0x3] sm:$0x1]
      %v342 = vlaneseq
      %v343 = vshrl.u32 %v342, 7
      %v344 = vsub.s32 0, %v343
      %v345 = vrot.slane %v341, %v344
      %v346 = vmul.f32 %v146, %v345
      %v347 = vmul.f32 %v148, %v345
      %v348 = vmul.f32 %v150, %v345
      %v349 = vmul.f32 %v152, %v345
      %v350 = vmul.f32 %v154, %v345
      %v351 = vmul.f32 %v156, %v345
      %v352 = vmul.f32 %v158, %v345
      %v353 = vmul.f32 %v160, %v345
      %v354 = vadd.f32 %v333, %v346
      %v355 = vadd.f32 %v334, %v347
      %v356 = vadd.f32 %v335, %v348
      %v357 = vadd.f32 %v336, %v349
      %v358 = vadd.f32 %v337, %v350
      %v359 = vadd.f32 %v338, %v351
      %v360 = vadd.f32 %v339, %v352
      %v361 = vadd.f32 %v340, %v353
      %v362 = vld [vmem:[%s1 + $0x4] sm:$0x1]
      %v363 = vlaneseq
      %v364 = vshrl.u32 %v363, 7
      %v365 = vsub.s32 0, %v364
      %v366 = vrot.slane %v362, %v365
      %v367 = vmul.f32 %v146, %v366
      %v368 = vmul.f32 %v147, %v366
      %v369 = vmul.f32 %v148, %v366
      %v370 = vmul.f32 %v149, %v366
      %v371 = vmul.f32 %v150, %v366
      %v372 = vmul.f32 %v151, %v366
      %v373 = vmul.f32 %v152, %v366
      %v374 = vmul.f32 %v153, %v366
      %v375 = vmul.f32 %v154, %v366
      %v376 = vmul.f32 %v155, %v366
      %v377 = vmul.f32 %v156, %v366
      %v378 = vmul.f32 %v157, %v366
      %v379 = vmul.f32 %v158, %v366
      %v380 = vmul.f32 %v159, %v366
      %v381 = vmul.f32 %v160, %v366
      %v382 = vmul.f32 %v161, %v366
      %v399 = vrot.slane %v367, 1
      %v400 = vrot.slane %v368, 1
      %v401 = vsel %vm222, %v399, %v400
      %v402 = vrot.slane %v369, 1
      %v403 = vrot.slane %v370, 1
      %v404 = vsel %vm222, %v402, %v403
      %v405 = vrot.slane %v371, 1
      %v406 = vrot.slane %v372, 1
      %v407 = vsel %vm222, %v405, %v406
      %v408 = vrot.slane %v373, 1
      %v409 = vrot.slane %v374, 1
      %v410 = vsel %vm222, %v408, %v409
      %v411 = vrot.slane %v375, 1
      %v412 = vrot.slane %v376, 1
      %v413 = vsel %vm222, %v411, %v412
      %v414 = vrot.slane %v377, 1
      %v415 = vrot.slane %v378, 1
      %v416 = vsel %vm222, %v414, %v415
      %v417 = vrot.slane %v379, 1
      %v418 = vrot.slane %v380, 1
      %v419 = vsel %vm222, %v417, %v418
      %v420 = vrot.slane %v381, 1
      %v421 = vrot.slane %v382, 1
      %v422 = vsel %vm222, %v420, %v421
      %v431 = vadd.f32 %v354, %v401
      %v432 = vadd.f32 %v355, %v404
      %v433 = vadd.f32 %v356, %v407
      %v434 = vadd.f32 %v357, %v410
      %v435 = vadd.f32 %v358, %v413
      %v436 = vadd.f32 %v359, %v416
      %v437 = vadd.f32 %v360, %v419
      %v438 = vadd.f32 %v361, %v422
      %v439 = vld [vmem:[%s1 + $0x5] sm:$0x1]
      %v440 = vlaneseq
      %v441 = vshrl.u32 %v440, 7
      %v442 = vsub.s32 0, %v441
      %v443 = vrot.slane %v439, %v442
      %v444 = vmul.f32 %v146, %v443
      %v445 = vmul.f32 %v147, %v443
      %v446 = vmul.f32 %v148, %v443
      %v447 = vmul.f32 %v149, %v443
      %v448 = vmul.f32 %v150, %v443
      %v449 = vmul.f32 %v151, %v443
      %v450 = vmul.f32 %v152, %v443
      %v451 = vmul.f32 %v153, %v443
      %v452 = vmul.f32 %v154, %v443
      %v453 = vmul.f32 %v155, %v443
      %v454 = vmul.f32 %v156, %v443
      %v455 = vmul.f32 %v157, %v443
      %v456 = vmul.f32 %v158, %v443
      %v457 = vmul.f32 %v159, %v443
      %v458 = vmul.f32 %v160, %v443
      %v459 = vmul.f32 %v161, %v443
      %v476 = vrot.slane %v444, 2
      %v477 = vrot.slane %v445, 2
      %v478 = vsel %vm300, %v476, %v477
      %v479 = vrot.slane %v446, 2
      %v480 = vrot.slane %v447, 2
      %v481 = vsel %vm300, %v479, %v480
      %v482 = vrot.slane %v448, 2
      %v483 = vrot.slane %v449, 2
      %v484 = vsel %vm300, %v482, %v483
      %v485 = vrot.slane %v450, 2
      %v486 = vrot.slane %v451, 2
      %v487 = vsel %vm300, %v485, %v486
      %v488 = vrot.slane %v452, 2
      %v489 = vrot.slane %v453, 2
      %v490 = vsel %vm300, %v488, %v489
      %v491 = vrot.slane %v454, 2
      %v492 = vrot.slane %v455, 2
      %v493 = vsel %vm300, %v491, %v492
      %v494 = vrot.slane %v456, 2
      %v495 = vrot.slane %v457, 2
      %v496 = vsel %vm300, %v494, %v495
      %v497 = vrot.slane %v458, 2
      %v498 = vrot.slane %v459, 2
      %v499 = vsel %vm300, %v497, %v498
      %v508 = vadd.f32 %v431, %v478
      %v509 = vadd.f32 %v432, %v481
      %v510 = vadd.f32 %v433, %v484
      %v511 = vadd.f32 %v434, %v487
      %v512 = vadd.f32 %v435, %v490
      %v513 = vadd.f32 %v436, %v493
      %v514 = vadd.f32 %v437, %v496
      %v515 = vadd.f32 %v438, %v499
      %v516 = vld [vmem:[%s1 + $0x6] sm:$0x1]
      %v517 = vlaneseq
      %v518 = vshrl.u32 %v517, 7
      %v519 = vsub.s32 0, %v518
      %v520 = vrot.slane %v516, %v519
      %v521 = vmul.f32 %v148, %v520
      %v522 = vmul.f32 %v150, %v520
      %v523 = vmul.f32 %v152, %v520
      %v524 = vmul.f32 %v154, %v520
      %v525 = vmul.f32 %v156, %v520
      %v526 = vmul.f32 %v158, %v520
      %v527 = vmul.f32 %v160, %v520
      %v528 = vmul.f32 %v162, %v520
      %v529 = vadd.f32 %v508, %v521
      %v530 = vadd.f32 %v509, %v522
      %v531 = vadd.f32 %v510, %v523
      %v532 = vadd.f32 %v511, %v524
      %v533 = vadd.f32 %v512, %v525
      %v534 = vadd.f32 %v513, %v526
      %v535 = vadd.f32 %v514, %v527
      %v536 = vadd.f32 %v515, %v528
      %v537 = vld [vmem:[%s1 + $0x7] sm:$0x1]
      %v538 = vlaneseq
      %v539 = vshrl.u32 %v538, 7
      %v540 = vsub.s32 0, %v539
      %v541 = vrot.slane %v537, %v540
      %v542 = vmul.f32 %v148, %v541
      %v543 = vmul.f32 %v149, %v541
      %v544 = vmul.f32 %v150, %v541
      %v545 = vmul.f32 %v151, %v541
      %v546 = vmul.f32 %v152, %v541
      %v547 = vmul.f32 %v153, %v541
      %v548 = vmul.f32 %v154, %v541
      %v549 = vmul.f32 %v155, %v541
      %v550 = vmul.f32 %v156, %v541
      %v551 = vmul.f32 %v157, %v541
      %v552 = vmul.f32 %v158, %v541
      %v553 = vmul.f32 %v159, %v541
      %v554 = vmul.f32 %v160, %v541
      %v555 = vmul.f32 %v161, %v541
      %v556 = vmul.f32 %v162, %v541
      %v557 = vmul.f32 %v163, %v541
      %v574 = vrot.slane %v542, 1
      %v575 = vrot.slane %v543, 1
      %v576 = vsel %vm222, %v574, %v575
      %v577 = vrot.slane %v544, 1
      %v578 = vrot.slane %v545, 1
      %v579 = vsel %vm222, %v577, %v578
      %v580 = vrot.slane %v546, 1
      %v581 = vrot.slane %v547, 1
      %v582 = vsel %vm222, %v580, %v581
      %v583 = vrot.slane %v548, 1
      %v584 = vrot.slane %v549, 1
      %v585 = vsel %vm222, %v583, %v584
      %v586 = vrot.slane %v550, 1
      %v587 = vrot.slane %v551, 1
      %v588 = vsel %vm222, %v586, %v587
      %v589 = vrot.slane %v552, 1
      %v590 = vrot.slane %v553, 1
      %v591 = vsel %vm222, %v589, %v590
      %v592 = vrot.slane %v554, 1
      %v593 = vrot.slane %v555, 1
      %v594 = vsel %vm222, %v592, %v593
      %v595 = vrot.slane %v556, 1
      %v596 = vrot.slane %v557, 1
      %v597 = vsel %vm222, %v595, %v596
      %v606 = vadd.f32 %v529, %v576
      %v607 = vadd.f32 %v530, %v579
      %v608 = vadd.f32 %v531, %v582
      %v609 = vadd.f32 %v532, %v585
      %v610 = vadd.f32 %v533, %v588
      %v611 = vadd.f32 %v534, %v591
      %v612 = vadd.f32 %v535, %v594
      %v613 = vadd.f32 %v536, %v597
      %v614 = vld [vmem:[%s1 + $0x8] sm:$0x1]
      %v615 = vlaneseq
      %v616 = vshrl.u32 %v615, 7
      %v617 = vsub.s32 0, %v616
      %v618 = vrot.slane %v614, %v617
      %v619 = vmul.f32 %v148, %v618
      %v620 = vmul.f32 %v149, %v618
      %v621 = vmul.f32 %v150, %v618
      %v622 = vmul.f32 %v151, %v618
      %v623 = vmul.f32 %v152, %v618
      %v624 = vmul.f32 %v153, %v618
      %v625 = vmul.f32 %v154, %v618
      %v626 = vmul.f32 %v155, %v618
      %v627 = vmul.f32 %v156, %v618
      %v628 = vmul.f32 %v157, %v618
      %v629 = vmul.f32 %v158, %v618
      %v630 = vmul.f32 %v159, %v618
      %v631 = vmul.f32 %v160, %v618
      %v632 = vmul.f32 %v161, %v618
      %v633 = vmul.f32 %v162, %v618
      %v634 = vmul.f32 %v163, %v618
      %v651 = vrot.slane %v619, 2
      %v652 = vrot.slane %v620, 2
      %v653 = vsel %vm300, %v651, %v652
      %v654 = vrot.slane %v621, 2
      %v655 = vrot.slane %v622, 2
      %v656 = vsel %vm300, %v654, %v655
      %v657 = vrot.slane %v623, 2
      %v658 = vrot.slane %v624, 2
      %v659 = vsel %vm300, %v657, %v658
      %v660 = vrot.slane %v625, 2
      %v661 = vrot.slane %v626, 2
      %v662 = vsel %vm300, %v660, %v661
      %v663 = vrot.slane %v627, 2
      %v664 = vrot.slane %v628, 2
      %v665 = vsel %vm300, %v663, %v664
      %v666 = vrot.slane %v629, 2
      %v667 = vrot.slane %v630, 2
      %v668 = vsel %vm300, %v666, %v667
      %v669 = vrot.slane %v631, 2
      %v670 = vrot.slane %v632, 2
      %v671 = vsel %vm300, %v669, %v670
      %v672 = vrot.slane %v633, 2
      %v673 = vrot.slane %v634, 2
      %v674 = vsel %vm300, %v672, %v673
      %v683 = vadd.f32 %v606, %v653
      %v684 = vadd.f32 %v607, %v656
      %v685 = vadd.f32 %v608, %v659
      %v686 = vadd.f32 %v609, %v662
      %v687 = vadd.f32 %v610, %v665
      %v688 = vadd.f32 %v611, %v668
      %v689 = vadd.f32 %v612, %v671
      %v690 = vadd.f32 %v613, %v674
      %vm691 = vcmask 392192
      %692 = vst.msk [vmem:[%s143] sm:$0xff] %vm691, %v683
      %693 = vst.msk [vmem:[%s143 + $0x8] sm:$0xff] %vm691, %v684
      %694 = vst.msk [vmem:[%s143 + $0x10] sm:$0xff] %vm691, %v685
      %695 = vst.msk [vmem:[%s143 + $0x18] sm:$0xff] %vm691, %v686
      %696 = vst.msk [vmem:[%s143 + $0x20] sm:$0xff] %vm691, %v687
      %697 = vst.msk [vmem:[%s143 + $0x28] sm:$0xff] %vm691, %v688
      %698 = vst.msk [vmem:[%s143 + $0x30] sm:$0xff] %vm691, %v689
      %699 = vst.msk [vmem:[%s143 + $0x38] sm:$0xff] %vm691, %v690
      %p700 = scmp.lt.s32.totalorder %s13, 3
      %s701 = scalar_select %p700, %s13, 3
      %s702 = smul.addr %s701, 8
      %s703 = smul.addr %s702, 8
      %s704 = scalar_lea.vmem %s2, %s703
      // Predicated region
      $region29: #{transformer_block_forward.7} parent=27 // pred_check
        %p705 = pneg %p78
      $region30: #{transformer_block_forward.7} parent=27 // pred_check_branch
        %707 = sbr.rel (%p705) target = $region32
      $region31: #{transformer_block_forward.7} parent=27 // pred_region
        _
      $region32: #{transformer_block_forward.7} parent=27 // pred_fallthru
        _
    $region28: #{transformer_block_forward.7} parent=5 // pred_fallthru
      _
    %p708 = scmp.le.s32.totalorder 2, %s8
    // Predicated region
    $region33: #{transformer_block_forward.7} parent=5 // pred_check
      %p709 = pneg %p708
    $region34: #{transformer_block_forward.7} parent=5 // pred_check_branch
      %711 = sbr.rel (%p709) target = $region36
    $region35: #{transformer_block_forward.7} parent=5 // pred_region
      %s712 = ssub.s32 %s8, 2
      // Predicated region
      $region37: #{transformer_block_forward.7} parent=35 // pred_check
        %p713 = pneg %p84
      $region38: #{transformer_block_forward.7} parent=35 // pred_check_branch
        %715 = sbr.rel (%p713) target = $region40
      $region39: #{transformer_block_forward.7} parent=35 // pred_region
        %p716 = scmp.lt.s32.totalorder %s14, 3
        %s717 = scalar_select %p716, %s14, 3
        %s718 = smul.addr %s717, 8
        %s719 = smul.addr %s718, 8
        %s720 = scalar_lea.vmem %s2, %s719
      $region40: #{transformer_block_forward.7} parent=35 // pred_fallthru
        _
    $region36: #{transformer_block_forward.7} parent=5 // pred_fallthru
      _
  $region6: #{transformer_block_forward.7} parent=0 // loop_footer
    %s12 = sadd.s32 1, %s8
  $region7: #{transformer_block_forward.7} parent=0 // loop_footer_branch
    %7 = sbr.rel target = $region3
  $region8: #{transformer_block_forward.7} parent=0 // loop_exit
    _

// kernel: transformer_block_forward.6
$region0: #{transformer_block_forward.6}
  #allocation0 [shape = 'u32[]', space=smem, size = 0x4, offset = 0x4, fixed_abs, tag = 'smem constant byte address 0x4 - core index']
  #allocation1 [shape = 'u32[144,128]{1,0:T(1,128)}', space=vmem, size = 0x12000, scoped, tag = 'internal scratch']
  %s0 = inlined_call_operand.vmem [shape: f32[256,16], index: 0, kind: input, shape index: {}]
  %s1 = inlined_call_operand.vmem [shape: f32[1,16], index: 1, kind: input, shape index: {}]
  %s2 = inlined_call_operand.vmem [shape: f32[1,16], index: 2, kind: input, shape index: {}]
  %s3 = inlined_call_operand.vmem [shape: f32[16,48], index: 3, kind: input, shape index: {}]
  %s4 = inlined_call_operand.vmem [shape: f32[256,48], index: 4, kind: output, shape index: {}]
  %s5 = sld [smem:[#allocation0]]
  $region26: #{transformer_block_forward.6} parent=0
    _
  %s7 = ssub.s32 1, %s5
  %s8 = scalar_select 0, %s7, %s5
  // Predicated region
  $region2: #{transformer_block_forward.6} parent=0 // pred_check
    _
  $region3: #{transformer_block_forward.6} parent=0 // pred_check_branch
    %10 = sbr.rel (0) target = $region5
  $region4: #{transformer_block_forward.6} parent=0 // pred_region
    _
  $region5: #{transformer_block_forward.6} parent=0 // pred_fallthru
    _
  // Predicated region
  $region6: #{transformer_block_forward.6} parent=0 // pred_check
    _
  $region7: #{transformer_block_forward.6} parent=0 // pred_check_branch
    %12 = sbr.rel (0) target = $region9
  $region8: #{transformer_block_forward.6} parent=0 // pred_region
    _
  $region9: #{transformer_block_forward.6} parent=0 // pred_fallthru
    _
  // Predicated region
  $region10: #{transformer_block_forward.6} parent=0 // pred_check
    _
  $region11: #{transformer_block_forward.6} parent=0 // pred_check_branch
    %14 = sbr.rel (0) target = $region13
  $region12: #{transformer_block_forward.6} parent=0 // pred_region
    _
  $region13: #{transformer_block_forward.6} parent=0 // pred_fallthru
    _
  // Predicated region
  $region14: #{transformer_block_forward.6} parent=0 // pred_check
    _
  $region15: #{transformer_block_forward.6} parent=0 // pred_check_branch
    %16 = sbr.rel (0) target = $region17
  $region16: #{transformer_block_forward.6} parent=0 // pred_region
    _
  $region17: #{transformer_block_forward.6} parent=0 // pred_fallthru
    _
  %v17 = vld [vmem:[%s0] sm:$0xff]
  %v18 = vld [vmem:[%s0 + $0x8] sm:$0xff]
  %v19 = vld [vmem:[%s0 + $0x10] sm:$0xff]
  %v20 = vld [vmem:[%s0 + $0x18] sm:$0xff]
  %v21 = vld [vmem:[%s0 + $0x20] sm:$0xff]
  %v22 = vld [vmem:[%s0 + $0x28] sm:$0xff]
  %v23 = vld [vmem:[%s0 + $0x30] sm:$0xff]
  %v24 = vld [vmem:[%s0 + $0x38] sm:$0xff]
  %v25 = vld [vmem:[%s0 + $0x40] sm:$0xff]
  %v26 = vld [vmem:[%s0 + $0x48] sm:$0xff]
  %v27 = vld [vmem:[%s0 + $0x50] sm:$0xff]
  %v28 = vld [vmem:[%s0 + $0x58] sm:$0xff]
  %v29 = vld [vmem:[%s0 + $0x60] sm:$0xff]
  %v30 = vld [vmem:[%s0 + $0x68] sm:$0xff]
  %v31 = vld [vmem:[%s0 + $0x70] sm:$0xff]
  %v32 = vld [vmem:[%s0 + $0x78] sm:$0xff]
  %v33 = vld [vmem:[%s0 + $0x80] sm:$0xff]
  %v34 = vld [vmem:[%s0 + $0x88] sm:$0xff]
  %v35 = vld [vmem:[%s0 + $0x90] sm:$0xff]
  %v36 = vld [vmem:[%s0 + $0x98] sm:$0xff]
  %v37 = vld [vmem:[%s0 + $0xa0] sm:$0xff]
  %v38 = vld [vmem:[%s0 + $0xa8] sm:$0xff]
  %v39 = vld [vmem:[%s0 + $0xb0] sm:$0xff]
  %v40 = vld [vmem:[%s0 + $0xb8] sm:$0xff]
  %v41 = vld [vmem:[%s0 + $0xc0] sm:$0xff]
  %v42 = vld [vmem:[%s0 + $0xc8] sm:$0xff]
  %v43 = vld [vmem:[%s0 + $0xd0] sm:$0xff]
  %v44 = vld [vmem:[%s0 + $0xd8] sm:$0xff]
  %v45 = vld [vmem:[%s0 + $0xe0] sm:$0xff]
  %v46 = vld [vmem:[%s0 + $0xe8] sm:$0xff]
  %v47 = vld [vmem:[%s0 + $0xf0] sm:$0xff]
  %v48 = vld [vmem:[%s0 + $0xf8] sm:$0xff]
  %vm49 = vcmask 130048
  %v50 = vsel %vm49, %v17, 0.0
  %51 = vadd.xlane.f32.xlu0 %v50
  %v52 = vpop.xlane.xlu0 %51
  %v53 = vsel %vm49, %v18, 0.0
  %54 = vadd.xlane.f32.xlu0 %v53
  %v55 = vpop.xlane.xlu0 %54
  %v56 = vsel %vm49, %v19, 0.0
  %57 = vadd.xlane.f32.xlu0 %v56
  %v58 = vpop.xlane.xlu0 %57
  %v59 = vsel %vm49, %v20, 0.0
  %60 = vadd.xlane.f32.xlu0 %v59
  %v61 = vpop.xlane.xlu0 %60
  %v62 = vsel %vm49, %v21, 0.0
  %63 = vadd.xlane.f32.xlu0 %v62
  %v64 = vpop.xlane.xlu0 %63
  %v65 = vsel %vm49, %v22, 0.0
  %66 = vadd.xlane.f32.xlu0 %v65
  %v67 = vpop.xlane.xlu0 %66
  %v68 = vsel %vm49, %v23, 0.0
  %69 = vadd.xlane.f32.xlu0 %v68
  %v70 = vpop.xlane.xlu0 %69
  %v71 = vsel %vm49, %v24, 0.0
  %72 = vadd.xlane.f32.xlu0 %v71
  %v73 = vpop.xlane.xlu0 %72
  %v74 = vsel %vm49, %v25, 0.0
  %75 = vadd.xlane.f32.xlu0 %v74
  %v76 = vpop.xlane.xlu0 %75
  %v77 = vsel %vm49, %v26, 0.0
  %78 = vadd.xlane.f32.xlu0 %v77
  %v79 = vpop.xlane.xlu0 %78
  %v80 = vsel %vm49, %v27, 0.0
  %81 = vadd.xlane.f32.xlu0 %v80
  %v82 = vpop.xlane.xlu0 %81
  %v83 = vsel %vm49, %v28, 0.0
  %84 = vadd.xlane.f32.xlu0 %v83
  %v85 = vpop.xlane.xlu0 %84
  %v86 = vsel %vm49, %v29, 0.0
  %87 = vadd.xlane.f32.xlu0 %v86
  %v88 = vpop.xlane.xlu0 %87
  %v89 = vsel %vm49, %v30, 0.0
  %90 = vadd.xlane.f32.xlu0 %v89
  %v91 = vpop.xlane.xlu0 %90
  %v92 = vsel %vm49, %v31, 0.0
  %93 = vadd.xlane.f32.xlu0 %v92
  %v94 = vpop.xlane.xlu0 %93
  %v95 = vsel %vm49, %v32, 0.0
  %96 = vadd.xlane.f32.xlu0 %v95
  %v97 = vpop.xlane.xlu0 %96
  %v98 = vsel %vm49, %v33, 0.0
  %99 = vadd.xlane.f32.xlu0 %v98
  %v100 = vpop.xlane.xlu0 %99
  %v101 = vsel %vm49, %v34, 0.0
  %102 = vadd.xlane.f32.xlu0 %v101
  %v103 = vpop.xlane.xlu0 %102
  %v104 = vsel %vm49, %v35, 0.0
  %105 = vadd.xlane.f32.xlu0 %v104
  %v106 = vpop.xlane.xlu0 %105
  %v107 = vsel %vm49, %v36, 0.0
  %108 = vadd.xlane.f32.xlu0 %v107
  %v109 = vpop.xlane.xlu0 %108
  %v110 = vsel %vm49, %v37, 0.0
  %111 = vadd.xlane.f32.xlu0 %v110
  %v112 = vpop.xlane.xlu0 %111
  %v113 = vsel %vm49, %v38, 0.0
  %114 = vadd.xlane.f32.xlu0 %v113
  %v115 = vpop.xlane.xlu0 %114
  %v116 = vsel %vm49, %v39, 0.0
  %117 = vadd.xlane.f32.xlu0 %v116
  %v118 = vpop.xlane.xlu0 %117
  %v119 = vsel %vm49, %v40, 0.0
  %120 = vadd.xlane.f32.xlu0 %v119
  %v121 = vpop.xlane.xlu0 %120
  %v122 = vsel %vm49, %v41, 0.0
  %123 = vadd.xlane.f32.xlu0 %v122
  %v124 = vpop.xlane.xlu0 %123
  %v125 = vsel %vm49, %v42, 0.0
  %126 = vadd.xlane.f32.xlu0 %v125
  %v127 = vpop.xlane.xlu0 %126
  %v128 = vsel %vm49, %v43, 0.0
  %129 = vadd.xlane.f32.xlu0 %v128
  %v130 = vpop.xlane.xlu0 %129
  %v131 = vsel %vm49, %v44, 0.0
  %132 = vadd.xlane.f32.xlu0 %v131
  %v133 = vpop.xlane.xlu0 %132
  %v134 = vsel %vm49, %v45, 0.0
  %135 = vadd.xlane.f32.xlu0 %v134
  %v136 = vpop.xlane.xlu0 %135
  %v137 = vsel %vm49, %v46, 0.0
  %138 = vadd.xlane.f32.xlu0 %v137
  %v139 = vpop.xlane.xlu0 %138
  %v140 = vsel %vm49, %v47, 0.0
  %141 = vadd.xlane.f32.xlu0 %v140
  %v142 = vpop.xlane.xlu0 %141
  %v143 = vsel %vm49, %v48, 0.0
  %144 = vadd.xlane.f32.xlu0 %v143
  %v145 = vpop.xlane.xlu0 %144
  %v146 = vrcp.pop 16.0
  %v147 = vmul.f32 %v52, %v146
  %v148 = vmul.f32 %v55, %v146
  %v149 = vmul.f32 %v58, %v146
  %v150 = vmul.f32 %v61, %v146
  %v151 = vmul.f32 %v64, %v146
  %v152 = vmul.f32 %v67, %v146
  %v153 = vmul.f32 %v70, %v146
  %v154 = vmul.f32 %v73, %v146
  %v155 = vmul.f32 %v76, %v146
  %v156 = vmul.f32 %v79, %v146
  %v157 = vmul.f32 %v82, %v146
  %v158 = vmul.f32 %v85, %v146
  %v159 = vmul.f32 %v88, %v146
  %v160 = vmul.f32 %v91, %v146
  %v161 = vmul.f32 %v94, %v146
  %v162 = vmul.f32 %v97, %v146
  %v163 = vmul.f32 %v100, %v146
  %v164 = vmul.f32 %v103, %v146
  %v165 = vmul.f32 %v106, %v146
  %v166 = vmul.f32 %v109, %v146
  %v167 = vmul.f32 %v112, %v146
  %v168 = vmul.f32 %v115, %v146
  %v169 = vmul.f32 %v118, %v146
  %v170 = vmul.f32 %v121, %v146
  %v171 = vmul.f32 %v124, %v146
  %v172 = vmul.f32 %v127, %v146
  %v173 = vmul.f32 %v130, %v146
  %v174 = vmul.f32 %v133, %v146
  %v175 = vmul.f32 %v136, %v146
  %v176 = vmul.f32 %v139, %v146
  %v177 = vmul.f32 %v142, %v146
  %v178 = vmul.f32 %v145, %v146
  %v179 = vsub.f32 %v17, %v147
  %v180 = vsub.f32 %v18, %v148
  %v181 = vsub.f32 %v19, %v149
  %v182 = vsub.f32 %v20, %v150
  %v183 = vsub.f32 %v21, %v151
  %v184 = vsub.f32 %v22, %v152
  %v185 = vsub.f32 %v23, %v153
  %v186 = vsub.f32 %v24, %v154
  %v187 = vsub.f32 %v25, %v155
  %v188 = vsub.f32 %v26, %v156
  %v189 = vsub.f32 %v27, %v157
  %v190 = vsub.f32 %v28, %v158
  %v191 = vsub.f32 %v29, %v159
  %v192 = vsub.f32 %v30, %v160
  %v193 = vsub.f32 %v31, %v161
  %v194 = vsub.f32 %v32, %v162
  %v195 = vsub.f32 %v33, %v163
  %v196 = vsub.f32 %v34, %v164
  %v197 = vsub.f32 %v35, %v165
  %v198 = vsub.f32 %v36, %v166
  %v199 = vsub.f32 %v37, %v167
  %v200 = vsub.f32 %v38, %v168
  %v201 = vsub.f32 %v39, %v169
  %v202 = vsub.f32 %v40, %v170
  %v203 = vsub.f32 %v41, %v171
  %v204 = vsub.f32 %v42, %v172
  %v205 = vsub.f32 %v43, %v173
  %v206 = vsub.f32 %v44, %v174
  %v207 = vsub.f32 %v45, %v175
  %v208 = vsub.f32 %v46, %v176
  %v209 = vsub.f32 %v47, %v177
  %v210 = vsub.f32 %v48, %v178
  %v211 = vmul.f32 %v179, %v179
  %v212 = vmul.f32 %v180, %v180
  %v213 = vmul.f32 %v181, %v181
  %v214 = vmul.f32 %v182, %v182
  %v215 = vmul.f32 %v183, %v183
  %v216 = vmul.f32 %v184, %v184
  %v217 = vmul.f32 %v185, %v185
  %v218 = vmul.f32 %v186, %v186
  %v219 = vmul.f32 %v187, %v187
  %v220 = vmul.f32 %v188, %v188
  %v221 = vmul.f32 %v189, %v189
  %v222 = vmul.f32 %v190, %v190
  %v223 = vmul.f32 %v191, %v191
  %v224 = vmul.f32 %v192, %v192
  %v225 = vmul.f32 %v193, %v193
  %v226 = vmul.f32 %v194, %v194
  %v227 = vmul.f32 %v195, %v195
  %v228 = vmul.f32 %v196, %v196
  %v229 = vmul.f32 %v197, %v197
  %v230 = vmul.f32 %v198, %v198
  %v231 = vmul.f32 %v199, %v199
  %v232 = vmul.f32 %v200, %v200
  %v233 = vmul.f32 %v201, %v201
  %v234 = vmul.f32 %v202, %v202
  %v235 = vmul.f32 %v203, %v203
  %v236 = vmul.f32 %v204, %v204
  %v237 = vmul.f32 %v205, %v205
  %v238 = vmul.f32 %v206, %v206
  %v239 = vmul.f32 %v207, %v207
  %v240 = vmul.f32 %v208, %v208
  %v241 = vmul.f32 %v209, %v209
  %v242 = vmul.f32 %v210, %v210
  %v243 = vsel %vm49, %v211, 0.0
  %244 = vadd.xlane.f32.xlu0 %v243
  %v245 = vpop.xlane.xlu0 %244
  %v246 = vsel %vm49, %v212, 0.0
  %247 = vadd.xlane.f32.xlu0 %v246
  %v248 = vpop.xlane.xlu0 %247
  %v249 = vsel %vm49, %v213, 0.0
  %250 = vadd.xlane.f32.xlu0 %v249
  %v251 = vpop.xlane.xlu0 %250
  %v252 = vsel %vm49, %v214, 0.0
  %253 = vadd.xlane.f32.xlu0 %v252
  %v254 = vpop.xlane.xlu0 %253
  %v255 = vsel %vm49, %v215, 0.0
  %256 = vadd.xlane.f32.xlu0 %v255
  %v257 = vpop.xlane.xlu0 %256
  %v258 = vsel %vm49, %v216, 0.0
  %259 = vadd.xlane.f32.xlu0 %v258
  %v260 = vpop.xlane.xlu0 %259
  %v261 = vsel %vm49, %v217, 0.0
  %262 = vadd.xlane.f32.xlu0 %v261
  %v263 = vpop.xlane.xlu0 %262
  %v264 = vsel %vm49, %v218, 0.0
  %265 = vadd.xlane.f32.xlu0 %v264
  %v266 = vpop.xlane.xlu0 %265
  %v267 = vsel %vm49, %v219, 0.0
  %268 = vadd.xlane.f32.xlu0 %v267
  %v269 = vpop.xlane.xlu0 %268
  %v270 = vsel %vm49, %v220, 0.0
  %271 = vadd.xlane.f32.xlu0 %v270
  %v272 = vpop.xlane.xlu0 %271
  %v273 = vsel %vm49, %v221, 0.0
  %274 = vadd.xlane.f32.xlu0 %v273
  %v275 = vpop.xlane.xlu0 %274
  %v276 = vsel %vm49, %v222, 0.0
  %277 = vadd.xlane.f32.xlu0 %v276
  %v278 = vpop.xlane.xlu0 %277
  %v279 = vsel %vm49, %v223, 0.0
  %280 = vadd.xlane.f32.xlu0 %v279
  %v281 = vpop.xlane.xlu0 %280
  %v282 = vsel %vm49, %v224, 0.0
  %283 = vadd.xlane.f32.xlu0 %v282
  %v284 = vpop.xlane.xlu0 %283
  %v285 = vsel %vm49, %v225, 0.0
  %286 = vadd.xlane.f32.xlu0 %v285
  %v287 = vpop.xlane.xlu0 %286
  %v288 = vsel %vm49, %v226, 0.0
  %289 = vadd.xlane.f32.xlu0 %v288
  %v290 = vpop.xlane.xlu0 %289
  %v291 = vsel %vm49, %v227, 0.0
  %292 = vadd.xlane.f32.xlu0 %v291
  %v293 = vpop.xlane.xlu0 %292
  %v294 = vsel %vm49, %v228, 0.0
  %295 = vadd.xlane.f32.xlu0 %v294
  %v296 = vpop.xlane.xlu0 %295
  %v297 = vsel %vm49, %v229, 0.0
  %298 = vadd.xlane.f32.xlu0 %v297
  %v299 = vpop.xlane.xlu0 %298
  %v300 = vsel %vm49, %v230, 0.0
  %301 = vadd.xlane.f32.xlu0 %v300
  %v302 = vpop.xlane.xlu0 %301
  %v303 = vsel %vm49, %v231, 0.0
  %304 = vadd.xlane.f32.xlu0 %v303
  %v305 = vpop.xlane.xlu0 %304
  %v306 = vsel %vm49, %v232, 0.0
  %307 = vadd.xlane.f32.xlu0 %v306
  %v308 = vpop.xlane.xlu0 %307
  %v309 = vsel %vm49, %v233, 0.0
  %310 = vadd.xlane.f32.xlu0 %v309
  %v311 = vpop.xlane.xlu0 %310
  %v312 = vsel %vm49, %v234, 0.0
  %313 = vadd.xlane.f32.xlu0 %v312
  %v314 = vpop.xlane.xlu0 %313
  %v315 = vsel %vm49, %v235, 0.0
  %316 = vadd.xlane.f32.xlu0 %v315
  %v317 = vpop.xlane.xlu0 %316
  %v318 = vsel %vm49, %v236, 0.0
  %319 = vadd.xlane.f32.xlu0 %v318
  %v320 = vpop.xlane.xlu0 %319
  %v321 = vsel %vm49, %v237, 0.0
  %322 = vadd.xlane.f32.xlu0 %v321
  %v323 = vpop.xlane.xlu0 %322
  %v324 = vsel %vm49, %v238, 0.0
  %325 = vadd.xlane.f32.xlu0 %v324
  %v326 = vpop.xlane.xlu0 %325
  %v327 = vsel %vm49, %v239, 0.0
  %328 = vadd.xlane.f32.xlu0 %v327
  %v329 = vpop.xlane.xlu0 %328
  %v330 = vsel %vm49, %v240, 0.0
  %331 = vadd.xlane.f32.xlu0 %v330
  %v332 = vpop.xlane.xlu0 %331
  %v333 = vsel %vm49, %v241, 0.0
  %334 = vadd.xlane.f32.xlu0 %v333
  %v335 = vpop.xlane.xlu0 %334
  %v336 = vsel %vm49, %v242, 0.0
  %337 = vadd.xlane.f32.xlu0 %v336
  %v338 = vpop.xlane.xlu0 %337
  %v339 = vmul.f32 %v245, %v146
  %v340 = vmul.f32 %v248, %v146
  %v341 = vmul.f32 %v251, %v146
  %v342 = vmul.f32 %v254, %v146
  %v343 = vmul.f32 %v257, %v146
  %v344 = vmul.f32 %v260, %v146
  %v345 = vmul.f32 %v263, %v146
  %v346 = vmul.f32 %v266, %v146
  %v347 = vmul.f32 %v269, %v146
  %v348 = vmul.f32 %v272, %v146
  %v349 = vmul.f32 %v275, %v146
  %v350 = vmul.f32 %v278, %v146
  %v351 = vmul.f32 %v281, %v146
  %v352 = vmul.f32 %v284, %v146
  %v353 = vmul.f32 %v287, %v146
  %v354 = vmul.f32 %v290, %v146
  %v355 = vmul.f32 %v293, %v146
  %v356 = vmul.f32 %v296, %v146
  %v357 = vmul.f32 %v299, %v146
  %v358 = vmul.f32 %v302, %v146
  %v359 = vmul.f32 %v305, %v146
  %v360 = vmul.f32 %v308, %v146
  %v361 = vmul.f32 %v311, %v146
  %v362 = vmul.f32 %v314, %v146
  %v363 = vmul.f32 %v317, %v146
  %v364 = vmul.f32 %v320, %v146
  %v365 = vmul.f32 %v323, %v146
  %v366 = vmul.f32 %v326, %v146
  %v367 = vmul.f32 %v329, %v146
  %v368 = vmul.f32 %v332, %v146
  %v369 = vmul.f32 %v335, %v146
  %v370 = vmul.f32 %v338, %v146
  %v371 = vadd.f32 %v339, 1e-05
  %v372 = vadd.f32 %v340, 1e-05
  %v373 = vadd.f32 %v341, 1e-05
  %v374 = vadd.f32 %v342, 1e-05
  %v375 = vadd.f32 %v343, 1e-05
  %v376 = vadd.f32 %v344, 1e-05
  %v377 = vadd.f32 %v345, 1e-05
  %v378 = vadd.f32 %v346, 1e-05
  %v379 = vadd.f32 %v347, 1e-05
  %v380 = vadd.f32 %v348, 1e-05
  %v381 = vadd.f32 %v349, 1e-05
  %v382 = vadd.f32 %v350, 1e-05
  %v383 = vadd.f32 %v351, 1e-05
  %v384 = vadd.f32 %v352, 1e-05
  %v385 = vadd.f32 %v353, 1e-05
  %v386 = vadd.f32 %v354, 1e-05
  %v387 = vadd.f32 %v355, 1e-05
  %v388 = vadd.f32 %v356, 1e-05
  %v389 = vadd.f32 %v357, 1e-05
  %v390 = vadd.f32 %v358, 1e-05
  %v391 = vadd.f32 %v359, 1e-05
  %v392 = vadd.f32 %v360, 1e-05
  %v393 = vadd.f32 %v361, 1e-05
  %v394 = vadd.f32 %v362, 1e-05
  %v395 = vadd.f32 %v363, 1e-05
  %v396 = vadd.f32 %v364, 1e-05
  %v397 = vadd.f32 %v365, 1e-05
  %v398 = vadd.f32 %v366, 1e-05
  %v399 = vadd.f32 %v367, 1e-05
  %v400 = vadd.f32 %v368, 1e-05
  %v401 = vadd.f32 %v369, 1e-05
  %v402 = vadd.f32 %v370, 1e-05
  %v403 = vrsqrt.pop %v371
  %v404 = vmul.f32 %v371, %v403
  %vm405 = vcmp.eq.f32.partialorder %v371, inf
  %v406 = vsel %vm405, %v371, %v404
  %vm407 = vcmp.eq.f32.partialorder %v371, 0.0
  %v408 = vand.u32 %v371, 2147483648
  %v409 = vsel %vm407, %v408, %v406
  %v410 = vrsqrt.pop %v372
  %v411 = vmul.f32 %v372, %v410
  %vm412 = vcmp.eq.f32.partialorder %v372, inf
  %v413 = vsel %vm412, %v372, %v411
  %vm414 = vcmp.eq.f32.partialorder %v372, 0.0
  %v415 = vand.u32 %v372, 2147483648
  %v416 = vsel %vm414, %v415, %v413
  %v417 = vrsqrt.pop %v373
  %v418 = vmul.f32 %v373, %v417
  %vm419 = vcmp.eq.f32.partialorder %v373, inf
  %v420 = vsel %vm419, %v373, %v418
  %vm421 = vcmp.eq.f32.partialorder %v373, 0.0
  %v422 = vand.u32 %v373, 2147483648
  %v423 = vsel %vm421, %v422, %v420
  %v424 = vrsqrt.pop %v374
  %v425 = vmul.f32 %v374, %v424
  %vm426 = vcmp.eq.f32.partialorder %v374, inf
  %v427 = vsel %vm426, %v374, %v425
  %vm428 = vcmp.eq.f32.partialorder %v374, 0.0
  %v429 = vand.u32 %v374, 2147483648
  %v430 = vsel %vm428, %v429, %v427
  %v431 = vrsqrt.pop %v375
  %v432 = vmul.f32 %v375, %v431
  %vm433 = vcmp.eq.f32.partialorder %v375, inf
  %v434 = vsel %vm433, %v375, %v432
  %vm435 = vcmp.eq.f32.partialorder %v375, 0.0
  %v436 = vand.u32 %v375, 2147483648
  %v437 = vsel %vm435, %v436, %v434
  %v438 = vrsqrt.pop %v376
  %v439 = vmul.f32 %v376, %v438
  %vm440 = vcmp.eq.f32.partialorder %v376, inf
  %v441 = vsel %vm440, %v376, %v439
  %vm442 = vcmp.eq.f32.partialorder %v376, 0.0
  %v443 = vand.u32 %v376, 2147483648
  %v444 = vsel %vm442, %v443, %v441
  %v445 = vrsqrt.pop %v377
  %v446 = vmul.f32 %v377, %v445
  %vm447 = vcmp.eq.f32.partialorder %v377, inf
  %v448 = vsel %vm447, %v377, %v446
  %vm449 = vcmp.eq.f32.partialorder %v377, 0.0
  %v450 = vand.u32 %v377, 2147483648
  %v451 = vsel %vm449, %v450, %v448
  %v452 = vrsqrt.pop %v378
  %v453 = vmul.f32 %v378, %v452
  %vm454 = vcmp.eq.f32.partialorder %v378, inf
  %v455 = vsel %vm454, %v378, %v453
  %vm456 = vcmp.eq.f32.partialorder %v378, 0.0
  %v457 = vand.u32 %v378, 2147483648
  %v458 = vsel %vm456, %v457, %v455
  %v459 = vrsqrt.pop %v379
  %v460 = vmul.f32 %v379, %v459
  %vm461 = vcmp.eq.f32.partialorder %v379, inf
  %v462 = vsel %vm461, %v379, %v460
  %vm463 = vcmp.eq.f32.partialorder %v379, 0.0
  %v464 = vand.u32 %v379, 2147483648
  %v465 = vsel %vm463, %v464, %v462
  %v466 = vrsqrt.pop %v380
  %v467 = vmul.f32 %v380, %v466
  %vm468 = vcmp.eq.f32.partialorder %v380, inf
  %v469 = vsel %vm468, %v380, %v467
  %vm470 = vcmp.eq.f32.partialorder %v380, 0.0
  %v471 = vand.u32 %v380, 2147483648
  %v472 = vsel %vm470, %v471, %v469
  %v473 = vrsqrt.pop %v381
  %v474 = vmul.f32 %v381, %v473
  %vm475 = vcmp.eq.f32.partialorder %v381, inf
  %v476 = vsel %vm475, %v381, %v474
  %vm477 = vcmp.eq.f32.partialorder %v381, 0.0
  %v478 = vand.u32 %v381, 2147483648
  %v479 = vsel %vm477, %v478, %v476
  %v480 = vrsqrt.pop %v382
  %v481 = vmul.f32 %v382, %v480
  %vm482 = vcmp.eq.f32.partialorder %v382, inf
  %v483 = vsel %vm482, %v382, %v481
  %vm484 = vcmp.eq.f32.partialorder %v382, 0.0
  %v485 = vand.u32 %v382, 2147483648
  %v486 = vsel %vm484, %v485, %v483
  %v487 = vrsqrt.pop %v383
  %v488 = vmul.f32 %v383, %v487
  %vm489 = vcmp.eq.f32.partialorder %v383, inf
  %v490 = vsel %vm489, %v383, %v488
  %vm491 = vcmp.eq.f32.partialorder %v383, 0.0
  %v492 = vand.u32 %v383, 2147483648
  %v493 = vsel %vm491, %v492, %v490
  %v494 = vrsqrt.pop %v384
  %v495 = vmul.f32 %v384, %v494
  %vm496 = vcmp.eq.f32.partialorder %v384, inf
  %v497 = vsel %vm496, %v384, %v495
  %vm498 = vcmp.eq.f32.partialorder %v384, 0.0
  %v499 = vand.u32 %v384, 2147483648
  %v500 = vsel %vm498, %v499, %v497
  %v501 = vrsqrt.pop %v385
  %v502 = vmul.f32 %v385, %v501
  %vm503 = vcmp.eq.f32.partialorder %v385, inf
  %v504 = vsel %vm503, %v385, %v502
  %vm505 = vcmp.eq.f32.partialorder %v385, 0.0
  %v506 = vand.u32 %v385, 2147483648
  %v507 = vsel %vm505, %v506, %v504
  %v508 = vrsqrt.pop %v386
  %v509 = vmul.f32 %v386, %v508
  %vm510 = vcmp.eq.f32.partialorder %v386, inf
  %v511 = vsel %vm510, %v386, %v509
  %vm512 = vcmp.eq.f32.partialorder %v386, 0.0
  %v513 = vand.u32 %v386, 2147483648
  %v514 = vsel %vm512, %v513, %v511
  %v515 = vrsqrt.pop %v387
  %v516 = vmul.f32 %v387, %v515
  %vm517 = vcmp.eq.f32.partialorder %v387, inf
  %v518 = vsel %vm517, %v387, %v516
  %vm519 = vcmp.eq.f32.partialorder %v387, 0.0
  %v520 = vand.u32 %v387, 2147483648
  %v521 = vsel %vm519, %v520, %v518
  %v522 = vrsqrt.pop %v388
  %v523 = vmul.f32 %v388, %v522
  %vm524 = vcmp.eq.f32.partialorder %v388, inf
  %v525 = vsel %vm524, %v388, %v523
  %vm526 = vcmp.eq.f32.partialorder %v388, 0.0
  %v527 = vand.u32 %v388, 2147483648
  %v528 = vsel %vm526, %v527, %v525
  %v529 = vrsqrt.pop %v389
  %v530 = vmul.f32 %v389, %v529
  %vm531 = vcmp.eq.f32.partialorder %v389, inf
  %v532 = vsel %vm531, %v389, %v530
  %vm533 = vcmp.eq.f32.partialorder %v389, 0.0
  %v534 = vand.u32 %v389, 2147483648
  %v535 = vsel %vm533, %v534, %v532
  %v536 = vrsqrt.pop %v390
  %v537 = vmul.f32 %v390, %v536
  %vm538 = vcmp.eq.f32.partialorder %v390, inf
  %v539 = vsel %vm538, %v390, %v537
  %vm540 = vcmp.eq.f32.partialorder %v390, 0.0
  %v541 = vand.u32 %v390, 2147483648
  %v542 = vsel %vm540, %v541, %v539
  %v543 = vrsqrt.pop %v391
  %v544 = vmul.f32 %v391, %v543
  %vm545 = vcmp.eq.f32.partialorder %v391, inf
  %v546 = vsel %vm545, %v391, %v544
  %vm547 = vcmp.eq.f32.partialorder %v391, 0.0
  %v548 = vand.u32 %v391, 2147483648
  %v549 = vsel %vm547, %v548, %v546
  %v550 = vrsqrt.pop %v392
  %v551 = vmul.f32 %v392, %v550
  %vm552 = vcmp.eq.f32.partialorder %v392, inf
  %v553 = vsel %vm552, %v392, %v551
  %vm554 = vcmp.eq.f32.partialorder %v392, 0.0
  %v555 = vand.u32 %v392, 2147483648
  %v556 = vsel %vm554, %v555, %v553
  %v557 = vrsqrt.pop %v393
  %v558 = vmul.f32 %v393, %v557
  %vm559 = vcmp.eq.f32.partialorder %v393, inf
  %v560 = vsel %vm559, %v393, %v558
  %vm561 = vcmp.eq.f32.partialorder %v393, 0.0
  %v562 = vand.u32 %v393, 2147483648
  %v563 = vsel %vm561, %v562, %v560
  %v564 = vrsqrt.pop %v394
  %v565 = vmul.f32 %v394, %v564
  %vm566 = vcmp.eq.f32.partialorder %v394, inf
  %v567 = vsel %vm566, %v394, %v565
  %vm568 = vcmp.eq.f32.partialorder %v394, 0.0
  %v569 = vand.u32 %v394, 2147483648
  %v570 = vsel %vm568, %v569, %v567
  %v571 = vrsqrt.pop %v395
  %v572 = vmul.f32 %v395, %v571
  %vm573 = vcmp.eq.f32.partialorder %v395, inf
  %v574 = vsel %vm573, %v395, %v572
  %vm575 = vcmp.eq.f32.partialorder %v395, 0.0
  %v576 = vand.u32 %v395, 2147483648
  %v577 = vsel %vm575, %v576, %v574
  %v578 = vrsqrt.pop %v396
  %v579 = vmul.f32 %v396, %v578
  %vm580 = vcmp.eq.f32.partialorder %v396, inf
  %v581 = vsel %vm580, %v396, %v579
  %vm582 = vcmp.eq.f32.partialorder %v396, 0.0
  %v583 = vand.u32 %v396, 2147483648
  %v584 = vsel %vm582, %v583, %v581
  %v585 = vrsqrt.pop %v397
  %v586 = vmul.f32 %v397, %v585
  %vm587 = vcmp.eq.f32.partialorder %v397, inf
  %v588 = vsel %vm587, %v397, %v586
  %vm589 = vcmp.eq.f32.partialorder %v397, 0.0
  %v590 = vand.u32 %v397, 2147483648
  %v591 = vsel %vm589, %v590, %v588
  %v592 = vrsqrt.pop %v398
  %v593 = vmul.f32 %v398, %v592
  %vm594 = vcmp.eq.f32.partialorder %v398, inf
  %v595 = vsel %vm594, %v398, %v593
  %vm596 = vcmp.eq.f32.partialorder %v398, 0.0
  %v597 = vand.u32 %v398, 2147483648
  %v598 = vsel %vm596, %v597, %v595
  %v599 = vrsqrt.pop %v399
  %v600 = vmul.f32 %v399, %v599
  %vm601 = vcmp.eq.f32.partialorder %v399, inf
  %v602 = vsel %vm601, %v399, %v600
  %vm603 = vcmp.eq.f32.partialorder %v399, 0.0
  %v604 = vand.u32 %v399, 2147483648
  %v605 = vsel %vm603, %v604, %v602
  %v606 = vrsqrt.pop %v400
  %v607 = vmul.f32 %v400, %v606
  %vm608 = vcmp.eq.f32.partialorder %v400, inf
  %v609 = vsel %vm608, %v400, %v607
  %vm610 = vcmp.eq.f32.partialorder %v400, 0.0
  %v611 = vand.u32 %v400, 2147483648
  %v612 = vsel %vm610, %v611, %v609
  %v613 = vrsqrt.pop %v401
  %v614 = vmul.f32 %v401, %v613
  %vm615 = vcmp.eq.f32.partialorder %v401, inf
  %v616 = vsel %vm615, %v401, %v614
  %vm617 = vcmp.eq.f32.partialorder %v401, 0.0
  %v618 = vand.u32 %v401, 2147483648
  %v619 = vsel %vm617, %v618, %v616
  %v620 = vrsqrt.pop %v402
  %v621 = vmul.f32 %v402, %v620
  %vm622 = vcmp.eq.f32.partialorder %v402, inf
  %v623 = vsel %vm622, %v402, %v621
  %vm624 = vcmp.eq.f32.partialorder %v402, 0.0
  %v625 = vand.u32 %v402, 2147483648
  %v626 = vsel %vm624, %v625, %v623
  %v627 = vrcp.pop %v409
  %v628 = vmul.f32 %v179, %v627
  %v629 = vrcp.pop %v416
  %v630 = vmul.f32 %v180, %v629
  %v631 = vrcp.pop %v423
  %v632 = vmul.f32 %v181, %v631
  %v633 = vrcp.pop %v430
  %v634 = vmul.f32 %v182, %v633
  %v635 = vrcp.pop %v437
  %v636 = vmul.f32 %v183, %v635
  %v637 = vrcp.pop %v444
  %v638 = vmul.f32 %v184, %v637
  %v639 = vrcp.pop %v451
  %v640 = vmul.f32 %v185, %v639
  %v641 = vrcp.pop %v458
  %v642 = vmul.f32 %v186, %v641
  %v643 = vrcp.pop %v465
  %v644 = vmul.f32 %v187, %v643
  %v645 = vrcp.pop %v472
  %v646 = vmul.f32 %v188, %v645
  %v647 = vrcp.pop %v479
  %v648 = vmul.f32 %v189, %v647
  %v649 = vrcp.pop %v486
  %v650 = vmul.f32 %v190, %v649
  %v651 = vrcp.pop %v493
  %v652 = vmul.f32 %v191, %v651
  %v653 = vrcp.pop %v500
  %v654 = vmul.f32 %v192, %v653
  %v655 = vrcp.pop %v507
  %v656 = vmul.f32 %v193, %v655
  %v657 = vrcp.pop %v514
  %v658 = vmul.f32 %v194, %v657
  %v659 = vrcp.pop %v521
  %v660 = vmul.f32 %v195, %v659
  %v661 = vrcp.pop %v528
  %v662 = vmul.f32 %v196, %v661
  %v663 = vrcp.pop %v535
  %v664 = vmul.f32 %v197, %v663
  %v665 = vrcp.pop %v542
  %v666 = vmul.f32 %v198, %v665
  %v667 = vrcp.pop %v549
  %v668 = vmul.f32 %v199, %v667
  %v669 = vrcp.pop %v556
  %v670 = vmul.f32 %v200, %v669
  %v671 = vrcp.pop %v563
  %v672 = vmul.f32 %v201, %v671
  %v673 = vrcp.pop %v570
  %v674 = vmul.f32 %v202, %v673
  %v675 = vrcp.pop %v577
  %v676 = vmul.f32 %v203, %v675
  %v677 = vrcp.pop %v584
  %v678 = vmul.f32 %v204, %v677
  %v679 = vrcp.pop %v591
  %v680 = vmul.f32 %v205, %v679
  %v681 = vrcp.pop %v598
  %v682 = vmul.f32 %v206, %v681
  %v683 = vrcp.pop %v605
  %v684 = vmul.f32 %v207, %v683
  %v685 = vrcp.pop %v612
  %v686 = vmul.f32 %v208, %v685
  %v687 = vrcp.pop %v619
  %v688 = vmul.f32 %v209, %v687
  %v689 = vrcp.pop %v626
  %v690 = vmul.f32 %v210, %v689
  %v691 = vld [vmem:[%s1] sm:$0x1]
  %v693 = vlaneseq
  %v694 = vshrl.u32 %v693, 7
  %v695 = vsub.s32 0, %v694
  %v696 = vrot.slane %v691, %v695
  %v698 = vmul.f32 %v628, %v696
  %v699 = vmul.f32 %v630, %v696
  %v700 = vmul.f32 %v632, %v696
  %v701 = vmul.f32 %v634, %v696
  %v702 = vmul.f32 %v636, %v696
  %v703 = vmul.f32 %v638, %v696
  %v704 = vmul.f32 %v640, %v696
  %v705 = vmul.f32 %v642, %v696
  %v706 = vmul.f32 %v644, %v696
  %v707 = vmul.f32 %v646, %v696
  %v708 = vmul.f32 %v648, %v696
  %v709 = vmul.f32 %v650, %v696
  %v710 = vmul.f32 %v652, %v696
  %v711 = vmul.f32 %v654, %v696
  %v712 = vmul.f32 %v656, %v696
  %v713 = vmul.f32 %v658, %v696
  %v714 = vmul.f32 %v660, %v696
  %v715 = vmul.f32 %v662, %v696
  %v716 = vmul.f32 %v664, %v696
  %v717 = vmul.f32 %v666, %v696
  %v718 = vmul.f32 %v668, %v696
  %v719 = vmul.f32 %v670, %v696
  %v720 = vmul.f32 %v672, %v696
  %v721 = vmul.f32 %v674, %v696
  %v722 = vmul.f32 %v676, %v696
  %v723 = vmul.f32 %v678, %v696
  %v724 = vmul.f32 %v680, %v696
  %v725 = vmul.f32 %v682, %v696
  %v726 = vmul.f32 %v684, %v696
  %v727 = vmul.f32 %v686, %v696
  %v728 = vmul.f32 %v688, %v696
  %v729 = vmul.f32 %v690, %v696
  %v730 = vld [vmem:[%s2] sm:$0x1]
  %v732 = vlaneseq
  %v733 = vshrl.u32 %v732, 7
  %v734 = vsub.s32 0, %v733
  %v735 = vrot.slane %v730, %v734
  %v737 = vadd.f32 %v698, %v735
  %v738 = vadd.f32 %v699, %v735
  %v739 = vadd.f32 %v700, %v735
  %v740 = vadd.f32 %v701, %v735
  %v741 = vadd.f32 %v702, %v735
  %v742 = vadd.f32 %v703, %v735
  %v743 = vadd.f32 %v704, %v735
  %v744 = vadd.f32 %v705, %v735
  %v745 = vadd.f32 %v706, %v735
  %v746 = vadd.f32 %v707, %v735
  %v747 = vadd.f32 %v708, %v735
  %v748 = vadd.f32 %v709, %v735
  %v749 = vadd.f32 %v710, %v735
  %v750 = vadd.f32 %v711, %v735
  %v751 = vadd.f32 %v712, %v735
  %v752 = vadd.f32 %v713, %v735
  %v753 = vadd.f32 %v714, %v735
  %v754 = vadd.f32 %v715, %v735
  %v755 = vadd.f32 %v716, %v735
  %v756 = vadd.f32 %v717, %v735
  %v757 = vadd.f32 %v718, %v735
  %v758 = vadd.f32 %v719, %v735
  %v759 = vadd.f32 %v720, %v735
  %v760 = vadd.f32 %v721, %v735
  %v761 = vadd.f32 %v722, %v735
  %v762 = vadd.f32 %v723, %v735
  %v763 = vadd.f32 %v724, %v735
  %v764 = vadd.f32 %v725, %v735
  %v765 = vadd.f32 %v726, %v735
  %v766 = vadd.f32 %v727, %v735
  %v767 = vadd.f32 %v728, %v735
  %v768 = vadd.f32 %v729, %v735
  %v769 = vld [vmem:[%s3] sm:$0xff]
  %v770 = vld [vmem:[%s3 + $0x8] sm:$0xff]
  %v772 = vsel %vm49, %v737, 0
  %v775 = vsel %vm49, %v738, 0
  %v778 = vsel %vm49, %v739, 0
  %v781 = vsel %vm49, %v740, 0
  %v784 = vsel %vm49, %v741, 0
  %v787 = vsel %vm49, %v742, 0
  %v790 = vsel %vm49, %v743, 0
  %v793 = vsel %vm49, %v744, 0
  %v796 = vsel %vm49, %v745, 0
  %v799 = vsel %vm49, %v746, 0
  %v802 = vsel %vm49, %v747, 0
  %v805 = vsel %vm49, %v748, 0
  %v808 = vsel %vm49, %v749, 0
  %v811 = vsel %vm49, %v750, 0
  %v814 = vsel %vm49, %v751, 0
  %v817 = vsel %vm49, %v752, 0
  %v820 = vsel %vm49, %v753, 0
  %v823 = vsel %vm49, %v754, 0
  %v826 = vsel %vm49, %v755, 0
  %v829 = vsel %vm49, %v756, 0
  %v832 = vsel %vm49, %v757, 0
  %v835 = vsel %vm49, %v758, 0
  %v838 = vsel %vm49, %v759, 0
  %v841 = vsel %vm49, %v760, 0
  %v844 = vsel %vm49, %v761, 0
  %v847 = vsel %vm49, %v762, 0
  %v850 = vsel %vm49, %v763, 0
  %v853 = vsel %vm49, %v764, 0
  %v856 = vsel %vm49, %v765, 0
  %v859 = vsel %vm49, %v766, 0
  %v862 = vsel %vm49, %v767, 0
  %v865 = vsel %vm49, %v768, 0
  %867 = vmatprep.subr.mxu0 0.0
  %868 = vmatpush1.msra.mxu0 %v769
  %869 = vmatprep.subr.mxu0 0.0
  %870 = vmatpush1.msra.mxu0 %v770
  %871 = vmatprep.subr.mxu0 0.0
  %872 = vmatpush1.msra.mxu0 0.0
  %873 = vmatprep.subr.mxu0 0.0
  %874 = vmatpush1.msra.mxu0 0.0
  %875 = vmatprep.subr.mxu0 0.0
  %876 = vmatpush1.msra.mxu0 0.0
  %877 = vmatprep.subr.mxu0 0.0
  %878 = vmatpush1.msra.mxu0 0.0
  %879 = vmatprep.subr.mxu0 0.0
  %880 = vmatpush1.msra.mxu0 0.0
  %881 = vmatprep.subr.mxu0 0.0
  %882 = vmatpush1.msra.mxu0 0.0
  %883 = vmatprep.subr.mxu0 0.0
  %884 = vmatpush1.msra.mxu0 0.0
  %885 = vmatprep.subr.mxu0 0.0
  %886 = vmatpush1.msra.mxu0 0.0
  %887 = vmatprep.subr.mxu0 0.0
  %888 = vmatpush1.msra.mxu0 0.0
  %889 = vmatprep.subr.mxu0 0.0
  %890 = vmatpush1.msra.mxu0 0.0
  %891 = vmatprep.subr.mxu0 0.0
  %892 = vmatpush1.msra.mxu0 0.0
  %893 = vmatprep.subr.mxu0 0.0
  %894 = vmatpush1.msra.mxu0 0.0
  %895 = vmatprep.subr.mxu0 0.0
  %896 = vmatpush1.msra.mxu0 0.0
  %897 = vmatprep.subr.mxu0 0.0
  %898 = vmatpush1.msra.mxu0 0.0
  %899 = vmatprep.subr.mxu0 0.0
  %900 = vmatpush1.msra.mxu0 0.0
  %901 = vmatprep.subr.mxu0 0.0
  %902 = vmatpush1.msra.mxu0 0.0
  %903 = vmatprep.subr.mxu0 0.0
  %904 = vmatpush1.msra.mxu0 0.0
  %905 = vmatprep.subr.mxu0 0.0
  %906 = vmatpush1.msra.mxu0 0.0
  %907 = vmatprep.subr.mxu0 0.0
  %908 = vmatpush1.msra.mxu0 0.0
  %909 = vmatprep.subr.mxu0 0.0
  %910 = vmatpush1.msra.mxu0 0.0
  %911 = vmatprep.subr.mxu0 0.0
  %912 = vmatpush1.msra.mxu0 0.0
  %913 = vmatprep.subr.mxu0 0.0
  %914 = vmatpush1.msra.mxu0 0.0
  %915 = vmatprep.subr.mxu0 0.0
  %916 = vmatpush1.msra.mxu0 0.0
  %917 = vmatprep.subr.mxu0 0.0
  %918 = vmatpush1.msra.mxu0 0.0
  %919 = vmatprep.subr.mxu0 0.0
  %920 = vmatpush1.msra.mxu0 0.0
  %921 = vmatprep.subr.mxu0 0.0
  %922 = vmatpush1.msra.mxu0 0.0
  %923 = vmatprep.subr.mxu0 0.0
  %924 = vmatpush1.msra.mxu0 0.0
  %925 = vmatprep.subr.mxu0 0.0
  %926 = vmatpush1.msra.mxu0 0.0
  %927 = vmatprep.subr.mxu0 0.0
  %928 = vmatpush1.msra.mxu0 0.0
  %929 = vmatprep.subr.mxu0 0.0
  %930 = vmatpush1.msra.mxu0 0.0
  %931 = vmatprep.mubr.f32.mxu0 0.0
  %932 = vmatmul.mubr.f32.gmra.mrb[0].mxu0 %v772
  %v933 = vpop.f32.mrb[0].mxu0
  %v934 = vadd.f32 0.0, %v933
  %v935 = vpop.f32.mrb[0].mxu0
  %936 = vmatprep.mubr.f32.mxu0 0.0
  %937 = vmatmul.mubr.f32.gmra.mrb[0].mxu0 %v775
  %v938 = vpop.f32.mrb[0].mxu0
  %v939 = vadd.f32 0.0, %v938
  %v940 = vpop.f32.mrb[0].mxu0
  %941 = vmatprep.mubr.f32.mxu0 0.0
  %942 = vmatmul.mubr.f32.gmra.mrb[0].mxu0 %v778
  %v943 = vpop.f32.mrb[0].mxu0
  %v944 = vadd.f32 0.0, %v943
  %v945 = vpop.f32.mrb[0].mxu0
  %946 = vmatprep.mubr.f32.mxu0 0.0
  %947 = vmatmul.mubr.f32.gmra.mrb[0].mxu0 %v781
  %v948 = vpop.f32.mrb[0].mxu0
  %v949 = vadd.f32 0.0, %v948
  %v950 = vpop.f32.mrb[0].mxu0
  %951 = vmatprep.mubr.f32.mxu0 0.0
  %952 = vmatmul.mubr.f32.gmra.mrb[0].mxu0 %v784
  %v953 = vpop.f32.mrb[0].mxu0
  %v954 = vadd.f32 0.0, %v953
  %v955 = vpop.f32.mrb[0].mxu0
  %956 = vmatprep.mubr.f32.mxu0 0.0
  %957 = vmatmul.mubr.f32.gmra.mrb[0].mxu0 %v787
  %v958 = vpop.f32.mrb[0].mxu0
  %v959 = vadd.f32 0.0, %v958
  %v960 = vpop.f32.mrb[0].mxu0
  %961 = vmatprep.mubr.f32.mxu0 0.0
  %962 = vmatmul.mubr.f32.gmra.mrb[0].mxu0 %v790
  %v963 = vpop.f32.mrb[0].mxu0
  %v964 = vadd.f32 0.0, %v963
  %v965 = vpop.f32.mrb[0].mxu0
  %966 = vmatprep.mubr.f32.mxu0 0.0
  %967 = vmatmul.mubr.f32.gmra.mrb[0].mxu0 %v793
  %v968 = vpop.f32.mrb[0].mxu0
  %v969 = vadd.f32 0.0, %v968
  %v970 = vpop.f32.mrb[0].mxu0
  %971 = vmatprep.mubr.f32.mxu0 0.0
  %972 = vmatmul.mubr.f32.gmra.mrb[0].mxu0 %v796
  %v973 = vpop.f32.mrb[0].mxu0
  %v974 = vadd.f32 0.0, %v973
  %v975 = vpop.f32.mrb[0].mxu0
  %976 = vmatprep.mubr.f32.mxu0 0.0
  %977 = vmatmul.mubr.f32.gmra.mrb[0].mxu0 %v799
  %v978 = vpop.f32.mrb[0].mxu0
  %v979 = vadd.f32 0.0, %v978
  %v980 = vpop.f32.mrb[0].mxu0
  %981 = vmatprep.mubr.f32.mxu0 0.0
  %982 = vmatmul.mubr.f32.gmra.mrb[0].mxu0 %v802
  %v983 = vpop.f32.mrb[0].mxu0
  %v984 = vadd.f32 0.0, %v983
  %v985 = vpop.f32.mrb[0].mxu0
  %986 = vmatprep.mubr.f32.mxu0 0.0
  %987 = vmatmul.mubr.f32.gmra.mrb[0].mxu0 %v805
  %v988 = vpop.f32.mrb[0].mxu0
  %v989 = vadd.f32 0.0, %v988
  %v990 = vpop.f32.mrb[0].mxu0
  %991 = vmatprep.mubr.f32.mxu0 0.0
  %992 = vmatmul.mubr.f32.gmra.mrb[0].mxu0 %v808
  %v993 = vpop.f32.mrb[0].mxu0
  %v994 = vadd.f32 0.0, %v993
  %v995 = vpop.f32.mrb[0].mxu0
  %996 = vmatprep.mubr.f32.mxu0 0.0
  %997 = vmatmul.mubr.f32.gmra.mrb[0].mxu0 %v811
  %v998 = vpop.f32.mrb[0].mxu0
  %v999 = vadd.f32 0.0, %v998
  %v1000 = vpop.f32.mrb[0].mxu0
  %1001 = vmatprep.mubr.f32.mxu0 0.0
  %1002 = vmatmul.mubr.f32.gmra.mrb[0].mxu0 %v814
  %v1003 = vpop.f32.mrb[0].mxu0
  %v1004 = vadd.f32 0.0, %v1003
  %v1005 = vpop.f32.mrb[0].mxu0
  %1006 = vmatprep.mubr.f32.mxu0 0.0
  %1007 = vmatmul.mubr.f32.gmra.mrb[0].mxu0 %v817
  %v1008 = vpop.f32.mrb[0].mxu0
  %v1009 = vadd.f32 0.0, %v1008
  %v1010 = vpop.f32.mrb[0].mxu0
  %1011 = vmatprep.mubr.f32.mxu0 0.0
  %1012 = vmatmul.mubr.f32.gmra.mrb[0].mxu0 %v820
  %v1013 = vpop.f32.mrb[0].mxu0
  %v1014 = vadd.f32 0.0, %v1013
  %v1015 = vpop.f32.mrb[0].mxu0
  %1016 = vmatprep.mubr.f32.mxu0 0.0
  %1017 = vmatmul.mubr.f32.gmra.mrb[0].mxu0 %v823
  %v1018 = vpop.f32.mrb[0].mxu0
  %v1019 = vadd.f32 0.0, %v1018
  %v1020 = vpop.f32.mrb[0].mxu0
  %1021 = vmatprep.mubr.f32.mxu0 0.0
  %1022 = vmatmul.mubr.f32.gmra.mrb[0].mxu0 %v826
  %v1023 = vpop.f32.mrb[0].mxu0
  %v1024 = vadd.f32 0.0, %v1023
  %v1025 = vpop.f32.mrb[0].mxu0
  %1026 = vmatprep.mubr.f32.mxu0 0.0
  %1027 = vmatmul.mubr.f32.gmra.mrb[0].mxu0 %v829
  %v1028 = vpop.f32.mrb[0].mxu0
  %v1029 = vadd.f32 0.0, %v1028
  %v1030 = vpop.f32.mrb[0].mxu0
  %1031 = vmatprep.mubr.f32.mxu0 0.0
  %1032 = vmatmul.mubr.f32.gmra.mrb[0].mxu0 %v832
  %v1033 = vpop.f32.mrb[0].mxu0
  %v1034 = vadd.f32 0.0, %v1033
  %v1035 = vpop.f32.mrb[0].mxu0
  %1036 = vmatprep.mubr.f32.mxu0 0.0
  %1037 = vmatmul.mubr.f32.gmra.mrb[0].mxu0 %v835
  %v1038 = vpop.f32.mrb[0].mxu0
  %v1039 = vadd.f32 0.0, %v1038
  %v1040 = vpop.f32.mrb[0].mxu0
  %1041 = vmatprep.mubr.f32.mxu0 0.0
  %1042 = vmatmul.mubr.f32.gmra.mrb[0].mxu0 %v838
  %v1043 = vpop.f32.mrb[0].mxu0
  %v1044 = vadd.f32 0.0, %v1043
  %v1045 = vpop.f32.mrb[0].mxu0
  %1046 = vmatprep.mubr.f32.mxu0 0.0
  %1047 = vmatmul.mubr.f32.gmra.mrb[0].mxu0 %v841
  %v1048 = vpop.f32.mrb[0].mxu0
  %v1049 = vadd.f32 0.0, %v1048
  %v1050 = vpop.f32.mrb[0].mxu0
  %1051 = vmatprep.mubr.f32.mxu0 0.0
  %1052 = vmatmul.mubr.f32.gmra.mrb[0].mxu0 %v844
  %v1053 = vpop.f32.mrb[0].mxu0
  %v1054 = vadd.f32 0.0, %v1053
  %v1055 = vpop.f32.mrb[0].mxu0
  %1056 = vmatprep.mubr.f32.mxu0 0.0
  %1057 = vmatmul.mubr.f32.gmra.mrb[0].mxu0 %v847
  %v1058 = vpop.f32.mrb[0].mxu0
  %v1059 = vadd.f32 0.0, %v1058
  %v1060 = vpop.f32.mrb[0].mxu0
  %1061 = vmatprep.mubr.f32.mxu0 0.0
  %1062 = vmatmul.mubr.f32.gmra.mrb[0].mxu0 %v850
  %v1063 = vpop.f32.mrb[0].mxu0
  %v1064 = vadd.f32 0.0, %v1063
  %v1065 = vpop.f32.mrb[0].mxu0
  %1066 = vmatprep.mubr.f32.mxu0 0.0
  %1067 = vmatmul.mubr.f32.gmra.mrb[0].mxu0 %v853
  %v1068 = vpop.f32.mrb[0].mxu0
  %v1069 = vadd.f32 0.0, %v1068
  %v1070 = vpop.f32.mrb[0].mxu0
  %1071 = vmatprep.mubr.f32.mxu0 0.0
  %1072 = vmatmul.mubr.f32.gmra.mrb[0].mxu0 %v856
  %v1073 = vpop.f32.mrb[0].mxu0
  %v1074 = vadd.f32 0.0, %v1073
  %v1075 = vpop.f32.mrb[0].mxu0
  %1076 = vmatprep.mubr.f32.mxu0 0.0
  %1077 = vmatmul.mubr.f32.gmra.mrb[0].mxu0 %v859
  %v1078 = vpop.f32.mrb[0].mxu0
  %v1079 = vadd.f32 0.0, %v1078
  %v1080 = vpop.f32.mrb[0].mxu0
  %1081 = vmatprep.mubr.f32.mxu0 0.0
  %1082 = vmatmul.mubr.f32.gmra.mrb[0].mxu0 %v862
  %v1083 = vpop.f32.mrb[0].mxu0
  %v1084 = vadd.f32 0.0, %v1083
  %v1085 = vpop.f32.mrb[0].mxu0
  %1086 = vmatprep.mubr.f32.mxu0 0.0
  %1087 = vmatmul.mubr.f32.gmra.mrb[0].mxu0 %v865
  %v1088 = vpop.f32.mrb[0].mxu0
  %v1089 = vadd.f32 0.0, %v1088
  %v1090 = vpop.f32.mrb[0].mxu0
  %1091 = vdwg.mxu0
  %vm1092 = vcmask 392192
  %1093 = vst.msk [vmem:[%s4] sm:$0xff] %vm1092, %v934
  %1094 = vst.msk [vmem:[%s4 + $0x8] sm:$0xff] %vm1092, %v939
  %1095 = vst.msk [vmem:[%s4 + $0x10] sm:$0xff] %vm1092, %v944
  %1096 = vst.msk [vmem:[%s4 + $0x18] sm:$0xff] %vm1092, %v949
  %1097 = vst.msk [vmem:[%s4 + $0x20] sm:$0xff] %vm1092, %v954
  %1098 = vst.msk [vmem:[%s4 + $0x28] sm:$0xff] %vm1092, %v959
  %1099 = vst.msk [vmem:[%s4 + $0x30] sm:$0xff] %vm1092, %v964
  %1100 = vst.msk [vmem:[%s4 + $0x38] sm:$0xff] %vm1092, %v969
  %1101 = vst.msk [vmem:[%s4 + $0x40] sm:$0xff] %vm1092, %v974
  %1102 = vst.msk [vmem:[%s4 + $0x48] sm:$0xff] %vm1092, %v979
  %1103 = vst.msk [vmem:[%s4 + $0x50] sm:$0xff] %vm1092, %v984
  %1104 = vst.msk [vmem:[%s4 + $0x58] sm:$0xff] %vm1092, %v989
  %1105 = vst.msk [vmem:[%s4 + $0x60] sm:$0xff] %vm1092, %v994
  %1106 = vst.msk [vmem:[%s4 + $0x68] sm:$0xff] %vm1092, %v999
  %1107 = vst.msk [vmem:[%s4 + $0x70] sm:$0xff] %vm1092, %v1004
  %1108 = vst.msk [vmem:[%s4 + $0x78] sm:$0xff] %vm1092, %v1009
  %1109 = vst.msk [vmem:[%s4 + $0x80] sm:$0xff] %vm1092, %v1014
  %1110 = vst.msk [vmem:[%s4 + $0x88] sm:$0xff] %vm1092, %v1019
  %1111 = vst.msk [vmem:[%s4 + $0x90] sm:$0xff] %vm1092, %v1024
  %1112 = vst.msk [vmem:[%s4 + $0x98] sm:$0xff] %vm1092, %v1029
  %1113 = vst.msk [vmem:[%s4 + $0xa0] sm:$0xff] %vm1092, %v1034
  %1114 = vst.msk [vmem:[%s4 + $0xa8] sm:$0xff] %vm1092, %v1039
  %1115 = vst.msk [vmem:[%s4 + $0xb0] sm:$0xff] %vm1092, %v1044
  %1116 = vst.msk [vmem:[%s4 + $0xb8] sm:$0xff] %vm1092, %v1049
  %1117 = vst.msk [vmem:[%s4 + $0xc0] sm:$0xff] %vm1092, %v1054
  %1118 = vst.msk [vmem:[%s4 + $0xc8] sm:$0xff] %vm1092, %v1059
  %1119 = vst.msk [vmem:[%s4 + $0xd0] sm:$0xff] %vm1092, %v1064
  %1120 = vst.msk [vmem:[%s4 + $0xd8] sm:$0xff] %vm1092, %v1069
  %1121 = vst.msk [vmem:[%s4 + $0xe0] sm:$0xff] %vm1092, %v1074
  %1122 = vst.msk [vmem:[%s4 + $0xe8] sm:$0xff] %vm1092, %v1079
  %1123 = vst.msk [vmem:[%s4 + $0xf0] sm:$0xff] %vm1092, %v1084
  %1124 = vst.msk [vmem:[%s4 + $0xf8] sm:$0xff] %vm1092, %v1089
  // Predicated region
  $region18: #{transformer_block_forward.6} parent=0 // pred_check
    _
  $region19: #{transformer_block_forward.6} parent=0 // pred_check_branch
    %1126 = sbr.rel (0) target = $region21
  $region20: #{transformer_block_forward.6} parent=0 // pred_region
    _
  $region21: #{transformer_block_forward.6} parent=0 // pred_fallthru
    _
  // Predicated region
  $region22: #{transformer_block_forward.6} parent=0 // pred_check
    _
  $region23: #{transformer_block_forward.6} parent=0 // pred_check_branch
    %1128 = sbr.rel (0) target = $region25
  $region24: #{transformer_block_forward.6} parent=0 // pred_region
    _
  $region25: #{transformer_block_forward.6} parent=0 // pred_fallthru
    _

// kernel: transformer_block_forward.9
$region0: #{transformer_block_forward.9}
  #allocation0 [shape = 'u32[]', space=smem, size = 0x4, offset = 0x4, fixed_abs, tag = 'smem constant byte address 0x4 - core index']
  #allocation1 [shape = 'u32[144,128]{1,0:T(1,128)}', space=vmem, size = 0x12000, scoped, tag = 'internal scratch']
  %s0 = inlined_call_operand.vmem [shape: f32[128,16], index: 0, kind: input, shape index: {}]
  %s1 = inlined_call_operand.vmem [shape: f32[1,16], index: 1, kind: input, shape index: {}]
  %s2 = inlined_call_operand.vmem [shape: f32[1,16], index: 2, kind: input, shape index: {}]
  %s3 = inlined_call_operand.vmem [shape: f32[16,64], index: 3, kind: input, shape index: {}]
  %s4 = inlined_call_operand.vmem [shape: f32[128,64], index: 4, kind: output, shape index: {}]
  %s5 = sld [smem:[#allocation0]]
  $region26: #{transformer_block_forward.9} parent=0
    _
  %s7 = ssub.s32 1, %s5
  %s8 = scalar_select 0, %s7, %s5
  // Predicated region
  $region2: #{transformer_block_forward.9} parent=0 // pred_check
    _
  $region3: #{transformer_block_forward.9} parent=0 // pred_check_branch
    %10 = sbr.rel (0) target = $region5
  $region4: #{transformer_block_forward.9} parent=0 // pred_region
    _
  $region5: #{transformer_block_forward.9} parent=0 // pred_fallthru
    _
  // Predicated region
  $region6: #{transformer_block_forward.9} parent=0 // pred_check
    _
  $region7: #{transformer_block_forward.9} parent=0 // pred_check_branch
    %12 = sbr.rel (0) target = $region9
  $region8: #{transformer_block_forward.9} parent=0 // pred_region
    _
  $region9: #{transformer_block_forward.9} parent=0 // pred_fallthru
    _
  // Predicated region
  $region10: #{transformer_block_forward.9} parent=0 // pred_check
    _
  $region11: #{transformer_block_forward.9} parent=0 // pred_check_branch
    %14 = sbr.rel (0) target = $region13
  $region12: #{transformer_block_forward.9} parent=0 // pred_region
    _
  $region13: #{transformer_block_forward.9} parent=0 // pred_fallthru
    _
  // Predicated region
  $region14: #{transformer_block_forward.9} parent=0 // pred_check
    _
  $region15: #{transformer_block_forward.9} parent=0 // pred_check_branch
    %16 = sbr.rel (0) target = $region17
  $region16: #{transformer_block_forward.9} parent=0 // pred_region
    _
  $region17: #{transformer_block_forward.9} parent=0 // pred_fallthru
    _
  %v17 = vld [vmem:[%s0] sm:$0xff]
  %v18 = vld [vmem:[%s0 + $0x8] sm:$0xff]
  %v19 = vld [vmem:[%s0 + $0x10] sm:$0xff]
  %v20 = vld [vmem:[%s0 + $0x18] sm:$0xff]
  %v21 = vld [vmem:[%s0 + $0x20] sm:$0xff]
  %v22 = vld [vmem:[%s0 + $0x28] sm:$0xff]
  %v23 = vld [vmem:[%s0 + $0x30] sm:$0xff]
  %v24 = vld [vmem:[%s0 + $0x38] sm:$0xff]
  %v25 = vld [vmem:[%s0 + $0x40] sm:$0xff]
  %v26 = vld [vmem:[%s0 + $0x48] sm:$0xff]
  %v27 = vld [vmem:[%s0 + $0x50] sm:$0xff]
  %v28 = vld [vmem:[%s0 + $0x58] sm:$0xff]
  %v29 = vld [vmem:[%s0 + $0x60] sm:$0xff]
  %v30 = vld [vmem:[%s0 + $0x68] sm:$0xff]
  %v31 = vld [vmem:[%s0 + $0x70] sm:$0xff]
  %v32 = vld [vmem:[%s0 + $0x78] sm:$0xff]
  %vm33 = vcmask 130048
  %v34 = vsel %vm33, %v17, 0.0
  %35 = vadd.xlane.f32.xlu0 %v34
  %v36 = vpop.xlane.xlu0 %35
  %v37 = vsel %vm33, %v18, 0.0
  %38 = vadd.xlane.f32.xlu0 %v37
  %v39 = vpop.xlane.xlu0 %38
  %v40 = vsel %vm33, %v19, 0.0
  %41 = vadd.xlane.f32.xlu0 %v40
  %v42 = vpop.xlane.xlu0 %41
  %v43 = vsel %vm33, %v20, 0.0
  %44 = vadd.xlane.f32.xlu0 %v43
  %v45 = vpop.xlane.xlu0 %44
  %v46 = vsel %vm33, %v21, 0.0
  %47 = vadd.xlane.f32.xlu0 %v46
  %v48 = vpop.xlane.xlu0 %47
  %v49 = vsel %vm33, %v22, 0.0
  %50 = vadd.xlane.f32.xlu0 %v49
  %v51 = vpop.xlane.xlu0 %50
  %v52 = vsel %vm33, %v23, 0.0
  %53 = vadd.xlane.f32.xlu0 %v52
  %v54 = vpop.xlane.xlu0 %53
  %v55 = vsel %vm33, %v24, 0.0
  %56 = vadd.xlane.f32.xlu0 %v55
  %v57 = vpop.xlane.xlu0 %56
  %v58 = vsel %vm33, %v25, 0.0
  %59 = vadd.xlane.f32.xlu0 %v58
  %v60 = vpop.xlane.xlu0 %59
  %v61 = vsel %vm33, %v26, 0.0
  %62 = vadd.xlane.f32.xlu0 %v61
  %v63 = vpop.xlane.xlu0 %62
  %v64 = vsel %vm33, %v27, 0.0
  %65 = vadd.xlane.f32.xlu0 %v64
  %v66 = vpop.xlane.xlu0 %65
  %v67 = vsel %vm33, %v28, 0.0
  %68 = vadd.xlane.f32.xlu0 %v67
  %v69 = vpop.xlane.xlu0 %68
  %v70 = vsel %vm33, %v29, 0.0
  %71 = vadd.xlane.f32.xlu0 %v70
  %v72 = vpop.xlane.xlu0 %71
  %v73 = vsel %vm33, %v30, 0.0
  %74 = vadd.xlane.f32.xlu0 %v73
  %v75 = vpop.xlane.xlu0 %74
  %v76 = vsel %vm33, %v31, 0.0
  %77 = vadd.xlane.f32.xlu0 %v76
  %v78 = vpop.xlane.xlu0 %77
  %v79 = vsel %vm33, %v32, 0.0
  %80 = vadd.xlane.f32.xlu0 %v79
  %v81 = vpop.xlane.xlu0 %80
  %v82 = vrcp.pop 16.0
  %v83 = vmul.f32 %v36, %v82
  %v84 = vmul.f32 %v39, %v82
  %v85 = vmul.f32 %v42, %v82
  %v86 = vmul.f32 %v45, %v82
  %v87 = vmul.f32 %v48, %v82
  %v88 = vmul.f32 %v51, %v82
  %v89 = vmul.f32 %v54, %v82
  %v90 = vmul.f32 %v57, %v82
  %v91 = vmul.f32 %v60, %v82
  %v92 = vmul.f32 %v63, %v82
  %v93 = vmul.f32 %v66, %v82
  %v94 = vmul.f32 %v69, %v82
  %v95 = vmul.f32 %v72, %v82
  %v96 = vmul.f32 %v75, %v82
  %v97 = vmul.f32 %v78, %v82
  %v98 = vmul.f32 %v81, %v82
  %v99 = vsub.f32 %v17, %v83
  %v100 = vsub.f32 %v18, %v84
  %v101 = vsub.f32 %v19, %v85
  %v102 = vsub.f32 %v20, %v86
  %v103 = vsub.f32 %v21, %v87
  %v104 = vsub.f32 %v22, %v88
  %v105 = vsub.f32 %v23, %v89
  %v106 = vsub.f32 %v24, %v90
  %v107 = vsub.f32 %v25, %v91
  %v108 = vsub.f32 %v26, %v92
  %v109 = vsub.f32 %v27, %v93
  %v110 = vsub.f32 %v28, %v94
  %v111 = vsub.f32 %v29, %v95
  %v112 = vsub.f32 %v30, %v96
  %v113 = vsub.f32 %v31, %v97
  %v114 = vsub.f32 %v32, %v98
  %v115 = vmul.f32 %v99, %v99
  %v116 = vmul.f32 %v100, %v100
  %v117 = vmul.f32 %v101, %v101
  %v118 = vmul.f32 %v102, %v102
  %v119 = vmul.f32 %v103, %v103
  %v120 = vmul.f32 %v104, %v104
  %v121 = vmul.f32 %v105, %v105
  %v122 = vmul.f32 %v106, %v106
  %v123 = vmul.f32 %v107, %v107
  %v124 = vmul.f32 %v108, %v108
  %v125 = vmul.f32 %v109, %v109
  %v126 = vmul.f32 %v110, %v110
  %v127 = vmul.f32 %v111, %v111
  %v128 = vmul.f32 %v112, %v112
  %v129 = vmul.f32 %v113, %v113
  %v130 = vmul.f32 %v114, %v114
  %v131 = vsel %vm33, %v115, 0.0
  %132 = vadd.xlane.f32.xlu0 %v131
  %v133 = vpop.xlane.xlu0 %132
  %v134 = vsel %vm33, %v116, 0.0
  %135 = vadd.xlane.f32.xlu0 %v134
  %v136 = vpop.xlane.xlu0 %135
  %v137 = vsel %vm33, %v117, 0.0
  %138 = vadd.xlane.f32.xlu0 %v137
  %v139 = vpop.xlane.xlu0 %138
  %v140 = vsel %vm33, %v118, 0.0
  %141 = vadd.xlane.f32.xlu0 %v140
  %v142 = vpop.xlane.xlu0 %141
  %v143 = vsel %vm33, %v119, 0.0
  %144 = vadd.xlane.f32.xlu0 %v143
  %v145 = vpop.xlane.xlu0 %144
  %v146 = vsel %vm33, %v120, 0.0
  %147 = vadd.xlane.f32.xlu0 %v146
  %v148 = vpop.xlane.xlu0 %147
  %v149 = vsel %vm33, %v121, 0.0
  %150 = vadd.xlane.f32.xlu0 %v149
  %v151 = vpop.xlane.xlu0 %150
  %v152 = vsel %vm33, %v122, 0.0
  %153 = vadd.xlane.f32.xlu0 %v152
  %v154 = vpop.xlane.xlu0 %153
  %v155 = vsel %vm33, %v123, 0.0
  %156 = vadd.xlane.f32.xlu0 %v155
  %v157 = vpop.xlane.xlu0 %156
  %v158 = vsel %vm33, %v124, 0.0
  %159 = vadd.xlane.f32.xlu0 %v158
  %v160 = vpop.xlane.xlu0 %159
  %v161 = vsel %vm33, %v125, 0.0
  %162 = vadd.xlane.f32.xlu0 %v161
  %v163 = vpop.xlane.xlu0 %162
  %v164 = vsel %vm33, %v126, 0.0
  %165 = vadd.xlane.f32.xlu0 %v164
  %v166 = vpop.xlane.xlu0 %165
  %v167 = vsel %vm33, %v127, 0.0
  %168 = vadd.xlane.f32.xlu0 %v167
  %v169 = vpop.xlane.xlu0 %168
  %v170 = vsel %vm33, %v128, 0.0
  %171 = vadd.xlane.f32.xlu0 %v170
  %v172 = vpop.xlane.xlu0 %171
  %v173 = vsel %vm33, %v129, 0.0
  %174 = vadd.xlane.f32.xlu0 %v173
  %v175 = vpop.xlane.xlu0 %174
  %v176 = vsel %vm33, %v130, 0.0
  %177 = vadd.xlane.f32.xlu0 %v176
  %v178 = vpop.xlane.xlu0 %177
  %v179 = vmul.f32 %v133, %v82
  %v180 = vmul.f32 %v136, %v82
  %v181 = vmul.f32 %v139, %v82
  %v182 = vmul.f32 %v142, %v82
  %v183 = vmul.f32 %v145, %v82
  %v184 = vmul.f32 %v148, %v82
  %v185 = vmul.f32 %v151, %v82
  %v186 = vmul.f32 %v154, %v82
  %v187 = vmul.f32 %v157, %v82
  %v188 = vmul.f32 %v160, %v82
  %v189 = vmul.f32 %v163, %v82
  %v190 = vmul.f32 %v166, %v82
  %v191 = vmul.f32 %v169, %v82
  %v192 = vmul.f32 %v172, %v82
  %v193 = vmul.f32 %v175, %v82
  %v194 = vmul.f32 %v178, %v82
  %v195 = vadd.f32 %v179, 1e-05
  %v196 = vadd.f32 %v180, 1e-05
  %v197 = vadd.f32 %v181, 1e-05
  %v198 = vadd.f32 %v182, 1e-05
  %v199 = vadd.f32 %v183, 1e-05
  %v200 = vadd.f32 %v184, 1e-05
  %v201 = vadd.f32 %v185, 1e-05
  %v202 = vadd.f32 %v186, 1e-05
  %v203 = vadd.f32 %v187, 1e-05
  %v204 = vadd.f32 %v188, 1e-05
  %v205 = vadd.f32 %v189, 1e-05
  %v206 = vadd.f32 %v190, 1e-05
  %v207 = vadd.f32 %v191, 1e-05
  %v208 = vadd.f32 %v192, 1e-05
  %v209 = vadd.f32 %v193, 1e-05
  %v210 = vadd.f32 %v194, 1e-05
  %v211 = vrsqrt.pop %v195
  %v212 = vmul.f32 %v195, %v211
  %vm213 = vcmp.eq.f32.partialorder %v195, inf
  %v214 = vsel %vm213, %v195, %v212
  %vm215 = vcmp.eq.f32.partialorder %v195, 0.0
  %v216 = vand.u32 %v195, 2147483648
  %v217 = vsel %vm215, %v216, %v214
  %v218 = vrsqrt.pop %v196
  %v219 = vmul.f32 %v196, %v218
  %vm220 = vcmp.eq.f32.partialorder %v196, inf
  %v221 = vsel %vm220, %v196, %v219
  %vm222 = vcmp.eq.f32.partialorder %v196, 0.0
  %v223 = vand.u32 %v196, 2147483648
  %v224 = vsel %vm222, %v223, %v221
  %v225 = vrsqrt.pop %v197
  %v226 = vmul.f32 %v197, %v225
  %vm227 = vcmp.eq.f32.partialorder %v197, inf
  %v228 = vsel %vm227, %v197, %v226
  %vm229 = vcmp.eq.f32.partialorder %v197, 0.0
  %v230 = vand.u32 %v197, 2147483648
  %v231 = vsel %vm229, %v230, %v228
  %v232 = vrsqrt.pop %v198
  %v233 = vmul.f32 %v198, %v232
  %vm234 = vcmp.eq.f32.partialorder %v198, inf
  %v235 = vsel %vm234, %v198, %v233
  %vm236 = vcmp.eq.f32.partialorder %v198, 0.0
  %v237 = vand.u32 %v198, 2147483648
  %v238 = vsel %vm236, %v237, %v235
  %v239 = vrsqrt.pop %v199
  %v240 = vmul.f32 %v199, %v239
  %vm241 = vcmp.eq.f32.partialorder %v199, inf
  %v242 = vsel %vm241, %v199, %v240
  %vm243 = vcmp.eq.f32.partialorder %v199, 0.0
  %v244 = vand.u32 %v199, 2147483648
  %v245 = vsel %vm243, %v244, %v242
  %v246 = vrsqrt.pop %v200
  %v247 = vmul.f32 %v200, %v246
  %vm248 = vcmp.eq.f32.partialorder %v200, inf
  %v249 = vsel %vm248, %v200, %v247
  %vm250 = vcmp.eq.f32.partialorder %v200, 0.0
  %v251 = vand.u32 %v200, 2147483648
  %v252 = vsel %vm250, %v251, %v249
  %v253 = vrsqrt.pop %v201
  %v254 = vmul.f32 %v201, %v253
  %vm255 = vcmp.eq.f32.partialorder %v201, inf
  %v256 = vsel %vm255, %v201, %v254
  %vm257 = vcmp.eq.f32.partialorder %v201, 0.0
  %v258 = vand.u32 %v201, 2147483648
  %v259 = vsel %vm257, %v258, %v256
  %v260 = vrsqrt.pop %v202
  %v261 = vmul.f32 %v202, %v260
  %vm262 = vcmp.eq.f32.partialorder %v202, inf
  %v263 = vsel %vm262, %v202, %v261
  %vm264 = vcmp.eq.f32.partialorder %v202, 0.0
  %v265 = vand.u32 %v202, 2147483648
  %v266 = vsel %vm264, %v265, %v263
  %v267 = vrsqrt.pop %v203
  %v268 = vmul.f32 %v203, %v267
  %vm269 = vcmp.eq.f32.partialorder %v203, inf
  %v270 = vsel %vm269, %v203, %v268
  %vm271 = vcmp.eq.f32.partialorder %v203, 0.0
  %v272 = vand.u32 %v203, 2147483648
  %v273 = vsel %vm271, %v272, %v270
  %v274 = vrsqrt.pop %v204
  %v275 = vmul.f32 %v204, %v274
  %vm276 = vcmp.eq.f32.partialorder %v204, inf
  %v277 = vsel %vm276, %v204, %v275
  %vm278 = vcmp.eq.f32.partialorder %v204, 0.0
  %v279 = vand.u32 %v204, 2147483648
  %v280 = vsel %vm278, %v279, %v277
  %v281 = vrsqrt.pop %v205
  %v282 = vmul.f32 %v205, %v281
  %vm283 = vcmp.eq.f32.partialorder %v205, inf
  %v284 = vsel %vm283, %v205, %v282
  %vm285 = vcmp.eq.f32.partialorder %v205, 0.0
  %v286 = vand.u32 %v205, 2147483648
  %v287 = vsel %vm285, %v286, %v284
  %v288 = vrsqrt.pop %v206
  %v289 = vmul.f32 %v206, %v288
  %vm290 = vcmp.eq.f32.partialorder %v206, inf
  %v291 = vsel %vm290, %v206, %v289
  %vm292 = vcmp.eq.f32.partialorder %v206, 0.0
  %v293 = vand.u32 %v206, 2147483648
  %v294 = vsel %vm292, %v293, %v291
  %v295 = vrsqrt.pop %v207
  %v296 = vmul.f32 %v207, %v295
  %vm297 = vcmp.eq.f32.partialorder %v207, inf
  %v298 = vsel %vm297, %v207, %v296
  %vm299 = vcmp.eq.f32.partialorder %v207, 0.0
  %v300 = vand.u32 %v207, 2147483648
  %v301 = vsel %vm299, %v300, %v298
  %v302 = vrsqrt.pop %v208
  %v303 = vmul.f32 %v208, %v302
  %vm304 = vcmp.eq.f32.partialorder %v208, inf
  %v305 = vsel %vm304, %v208, %v303
  %vm306 = vcmp.eq.f32.partialorder %v208, 0.0
  %v307 = vand.u32 %v208, 2147483648
  %v308 = vsel %vm306, %v307, %v305
  %v309 = vrsqrt.pop %v209
  %v310 = vmul.f32 %v209, %v309
  %vm311 = vcmp.eq.f32.partialorder %v209, inf
  %v312 = vsel %vm311, %v209, %v310
  %vm313 = vcmp.eq.f32.partialorder %v209, 0.0
  %v314 = vand.u32 %v209, 2147483648
  %v315 = vsel %vm313, %v314, %v312
  %v316 = vrsqrt.pop %v210
  %v317 = vmul.f32 %v210, %v316
  %vm318 = vcmp.eq.f32.partialorder %v210, inf
  %v319 = vsel %vm318, %v210, %v317
  %vm320 = vcmp.eq.f32.partialorder %v210, 0.0
  %v321 = vand.u32 %v210, 2147483648
  %v322 = vsel %vm320, %v321, %v319
  %v323 = vrcp.pop %v217
  %v324 = vmul.f32 %v99, %v323
  %v325 = vrcp.pop %v224
  %v326 = vmul.f32 %v100, %v325
  %v327 = vrcp.pop %v231
  %v328 = vmul.f32 %v101, %v327
  %v329 = vrcp.pop %v238
  %v330 = vmul.f32 %v102, %v329
  %v331 = vrcp.pop %v245
  %v332 = vmul.f32 %v103, %v331
  %v333 = vrcp.pop %v252
  %v334 = vmul.f32 %v104, %v333
  %v335 = vrcp.pop %v259
  %v336 = vmul.f32 %v105, %v335
  %v337 = vrcp.pop %v266
  %v338 = vmul.f32 %v106, %v337
  %v339 = vrcp.pop %v273
  %v340 = vmul.f32 %v107, %v339
  %v341 = vrcp.pop %v280
  %v342 = vmul.f32 %v108, %v341
  %v343 = vrcp.pop %v287
  %v344 = vmul.f32 %v109, %v343
  %v345 = vrcp.pop %v294
  %v346 = vmul.f32 %v110, %v345
  %v347 = vrcp.pop %v301
  %v348 = vmul.f32 %v111, %v347
  %v349 = vrcp.pop %v308
  %v350 = vmul.f32 %v112, %v349
  %v351 = vrcp.pop %v315
  %v352 = vmul.f32 %v113, %v351
  %v353 = vrcp.pop %v322
  %v354 = vmul.f32 %v114, %v353
  %v355 = vld [vmem:[%s1] sm:$0x1]
  %v357 = vlaneseq
  %v358 = vshrl.u32 %v357, 7
  %v359 = vsub.s32 0, %v358
  %v360 = vrot.slane %v355, %v359
  %v362 = vmul.f32 %v324, %v360
  %v363 = vmul.f32 %v326, %v360
  %v364 = vmul.f32 %v328, %v360
  %v365 = vmul.f32 %v330, %v360
  %v366 = vmul.f32 %v332, %v360
  %v367 = vmul.f32 %v334, %v360
  %v368 = vmul.f32 %v336, %v360
  %v369 = vmul.f32 %v338, %v360
  %v370 = vmul.f32 %v340, %v360
  %v371 = vmul.f32 %v342, %v360
  %v372 = vmul.f32 %v344, %v360
  %v373 = vmul.f32 %v346, %v360
  %v374 = vmul.f32 %v348, %v360
  %v375 = vmul.f32 %v350, %v360
  %v376 = vmul.f32 %v352, %v360
  %v377 = vmul.f32 %v354, %v360
  %v378 = vld [vmem:[%s2] sm:$0x1]
  %v380 = vlaneseq
  %v381 = vshrl.u32 %v380, 7
  %v382 = vsub.s32 0, %v381
  %v383 = vrot.slane %v378, %v382
  %v385 = vadd.f32 %v362, %v383
  %v386 = vadd.f32 %v363, %v383
  %v387 = vadd.f32 %v364, %v383
  %v388 = vadd.f32 %v365, %v383
  %v389 = vadd.f32 %v366, %v383
  %v390 = vadd.f32 %v367, %v383
  %v391 = vadd.f32 %v368, %v383
  %v392 = vadd.f32 %v369, %v383
  %v393 = vadd.f32 %v370, %v383
  %v394 = vadd.f32 %v371, %v383
  %v395 = vadd.f32 %v372, %v383
  %v396 = vadd.f32 %v373, %v383
  %v397 = vadd.f32 %v374, %v383
  %v398 = vadd.f32 %v375, %v383
  %v399 = vadd.f32 %v376, %v383
  %v400 = vadd.f32 %v377, %v383
  %v401 = vld [vmem:[%s3] sm:$0xff]
  %v402 = vld [vmem:[%s3 + $0x8] sm:$0xff]
  %v404 = vsel %vm33, %v385, 0
  %v407 = vsel %vm33, %v386, 0
  %v410 = vsel %vm33, %v387, 0
  %v413 = vsel %vm33, %v388, 0
  %v416 = vsel %vm33, %v389, 0
  %v419 = vsel %vm33, %v390, 0
  %v422 = vsel %vm33, %v391, 0
  %v425 = vsel %vm33, %v392, 0
  %v428 = vsel %vm33, %v393, 0
  %v431 = vsel %vm33, %v394, 0
  %v434 = vsel %vm33, %v395, 0
  %v437 = vsel %vm33, %v396, 0
  %v440 = vsel %vm33, %v397, 0
  %v443 = vsel %vm33, %v398, 0
  %v446 = vsel %vm33, %v399, 0
  %v449 = vsel %vm33, %v400, 0
  %451 = vmatprep.subr.mxu0 0.0
  %452 = vmatpush1.msra.mxu0 %v401
  %453 = vmatprep.subr.mxu0 0.0
  %454 = vmatpush1.msra.mxu0 %v402
  %455 = vmatprep.subr.mxu0 0.0
  %456 = vmatpush1.msra.mxu0 0.0
  %457 = vmatprep.subr.mxu0 0.0
  %458 = vmatpush1.msra.mxu0 0.0
  %459 = vmatprep.subr.mxu0 0.0
  %460 = vmatpush1.msra.mxu0 0.0
  %461 = vmatprep.subr.mxu0 0.0
  %462 = vmatpush1.msra.mxu0 0.0
  %463 = vmatprep.subr.mxu0 0.0
  %464 = vmatpush1.msra.mxu0 0.0
  %465 = vmatprep.subr.mxu0 0.0
  %466 = vmatpush1.msra.mxu0 0.0
  %467 = vmatprep.subr.mxu0 0.0
  %468 = vmatpush1.msra.mxu0 0.0
  %469 = vmatprep.subr.mxu0 0.0
  %470 = vmatpush1.msra.mxu0 0.0
  %471 = vmatprep.subr.mxu0 0.0
  %472 = vmatpush1.msra.mxu0 0.0
  %473 = vmatprep.subr.mxu0 0.0
  %474 = vmatpush1.msra.mxu0 0.0
  %475 = vmatprep.subr.mxu0 0.0
  %476 = vmatpush1.msra.mxu0 0.0
  %477 = vmatprep.subr.mxu0 0.0
  %478 = vmatpush1.msra.mxu0 0.0
  %479 = vmatprep.subr.mxu0 0.0
  %480 = vmatpush1.msra.mxu0 0.0
  %481 = vmatprep.subr.mxu0 0.0
  %482 = vmatpush1.msra.mxu0 0.0
  %483 = vmatprep.subr.mxu0 0.0
  %484 = vmatpush1.msra.mxu0 0.0
  %485 = vmatprep.subr.mxu0 0.0
  %486 = vmatpush1.msra.mxu0 0.0
  %487 = vmatprep.subr.mxu0 0.0
  %488 = vmatpush1.msra.mxu0 0.0
  %489 = vmatprep.subr.mxu0 0.0
  %490 = vmatpush1.msra.mxu0 0.0
  %491 = vmatprep.subr.mxu0 0.0
  %492 = vmatpush1.msra.mxu0 0.0
  %493 = vmatprep.subr.mxu0 0.0
  %494 = vmatpush1.msra.mxu0 0.0
  %495 = vmatprep.subr.mxu0 0.0
  %496 = vmatpush1.msra.mxu0 0.0
  %497 = vmatprep.subr.mxu0 0.0
  %498 = vmatpush1.msra.mxu0 0.0
  %499 = vmatprep.subr.mxu0 0.0
  %500 = vmatpush1.msra.mxu0 0.0
  %501 = vmatprep.subr.mxu0 0.0
  %502 = vmatpush1.msra.mxu0 0.0
  %503 = vmatprep.subr.mxu0 0.0
  %504 = vmatpush1.msra.mxu0 0.0
  %505 = vmatprep.subr.mxu0 0.0
  %506 = vmatpush1.msra.mxu0 0.0
  %507 = vmatprep.subr.mxu0 0.0
  %508 = vmatpush1.msra.mxu0 0.0
  %509 = vmatprep.subr.mxu0 0.0
  %510 = vmatpush1.msra.mxu0 0.0
  %511 = vmatprep.subr.mxu0 0.0
  %512 = vmatpush1.msra.mxu0 0.0
  %513 = vmatprep.subr.mxu0 0.0
  %514 = vmatpush1.msra.mxu0 0.0
  %515 = vmatprep.mubr.f32.mxu0 0.0
  %516 = vmatmul.mubr.f32.gmra.mrb[0].mxu0 %v404
  %v517 = vpop.f32.mrb[0].mxu0
  %v518 = vadd.f32 0.0, %v517
  %v519 = vpop.f32.mrb[0].mxu0
  %520 = vmatprep.mubr.f32.mxu0 0.0
  %521 = vmatmul.mubr.f32.gmra.mrb[0].mxu0 %v407
  %v522 = vpop.f32.mrb[0].mxu0
  %v523 = vadd.f32 0.0, %v522
  %v524 = vpop.f32.mrb[0].mxu0
  %525 = vmatprep.mubr.f32.mxu0 0.0
  %526 = vmatmul.mubr.f32.gmra.mrb[0].mxu0 %v410
  %v527 = vpop.f32.mrb[0].mxu0
  %v528 = vadd.f32 0.0, %v527
  %v529 = vpop.f32.mrb[0].mxu0
  %530 = vmatprep.mubr.f32.mxu0 0.0
  %531 = vmatmul.mubr.f32.gmra.mrb[0].mxu0 %v413
  %v532 = vpop.f32.mrb[0].mxu0
  %v533 = vadd.f32 0.0, %v532
  %v534 = vpop.f32.mrb[0].mxu0
  %535 = vmatprep.mubr.f32.mxu0 0.0
  %536 = vmatmul.mubr.f32.gmra.mrb[0].mxu0 %v416
  %v537 = vpop.f32.mrb[0].mxu0
  %v538 = vadd.f32 0.0, %v537
  %v539 = vpop.f32.mrb[0].mxu0
  %540 = vmatprep.mubr.f32.mxu0 0.0
  %541 = vmatmul.mubr.f32.gmra.mrb[0].mxu0 %v419
  %v542 = vpop.f32.mrb[0].mxu0
  %v543 = vadd.f32 0.0, %v542
  %v544 = vpop.f32.mrb[0].mxu0
  %545 = vmatprep.mubr.f32.mxu0 0.0
  %546 = vmatmul.mubr.f32.gmra.mrb[0].mxu0 %v422
  %v547 = vpop.f32.mrb[0].mxu0
  %v548 = vadd.f32 0.0, %v547
  %v549 = vpop.f32.mrb[0].mxu0
  %550 = vmatprep.mubr.f32.mxu0 0.0
  %551 = vmatmul.mubr.f32.gmra.mrb[0].mxu0 %v425
  %v552 = vpop.f32.mrb[0].mxu0
  %v553 = vadd.f32 0.0, %v552
  %v554 = vpop.f32.mrb[0].mxu0
  %555 = vmatprep.mubr.f32.mxu0 0.0
  %556 = vmatmul.mubr.f32.gmra.mrb[0].mxu0 %v428
  %v557 = vpop.f32.mrb[0].mxu0
  %v558 = vadd.f32 0.0, %v557
  %v559 = vpop.f32.mrb[0].mxu0
  %560 = vmatprep.mubr.f32.mxu0 0.0
  %561 = vmatmul.mubr.f32.gmra.mrb[0].mxu0 %v431
  %v562 = vpop.f32.mrb[0].mxu0
  %v563 = vadd.f32 0.0, %v562
  %v564 = vpop.f32.mrb[0].mxu0
  %565 = vmatprep.mubr.f32.mxu0 0.0
  %566 = vmatmul.mubr.f32.gmra.mrb[0].mxu0 %v434
  %v567 = vpop.f32.mrb[0].mxu0
  %v568 = vadd.f32 0.0, %v567
  %v569 = vpop.f32.mrb[0].mxu0
  %570 = vmatprep.mubr.f32.mxu0 0.0
  %571 = vmatmul.mubr.f32.gmra.mrb[0].mxu0 %v437
  %v572 = vpop.f32.mrb[0].mxu0
  %v573 = vadd.f32 0.0, %v572
  %v574 = vpop.f32.mrb[0].mxu0
  %575 = vmatprep.mubr.f32.mxu0 0.0
  %576 = vmatmul.mubr.f32.gmra.mrb[0].mxu0 %v440
  %v577 = vpop.f32.mrb[0].mxu0
  %v578 = vadd.f32 0.0, %v577
  %v579 = vpop.f32.mrb[0].mxu0
  %580 = vmatprep.mubr.f32.mxu0 0.0
  %581 = vmatmul.mubr.f32.gmra.mrb[0].mxu0 %v443
  %v582 = vpop.f32.mrb[0].mxu0
  %v583 = vadd.f32 0.0, %v582
  %v584 = vpop.f32.mrb[0].mxu0
  %585 = vmatprep.mubr.f32.mxu0 0.0
  %586 = vmatmul.mubr.f32.gmra.mrb[0].mxu0 %v446
  %v587 = vpop.f32.mrb[0].mxu0
  %v588 = vadd.f32 0.0, %v587
  %v589 = vpop.f32.mrb[0].mxu0
  %590 = vmatprep.mubr.f32.mxu0 0.0
  %591 = vmatmul.mubr.f32.gmra.mrb[0].mxu0 %v449
  %v592 = vpop.f32.mrb[0].mxu0
  %v593 = vadd.f32 0.0, %v592
  %v594 = vpop.f32.mrb[0].mxu0
  %595 = vdwg.mxu0
  %vm596 = vcmask 523264
  %597 = vst.msk [vmem:[%s4] sm:$0xff] %vm596, %v518
  %598 = vst.msk [vmem:[%s4 + $0x8] sm:$0xff] %vm596, %v523
  %599 = vst.msk [vmem:[%s4 + $0x10] sm:$0xff] %vm596, %v528
  %600 = vst.msk [vmem:[%s4 + $0x18] sm:$0xff] %vm596, %v533
  %601 = vst.msk [vmem:[%s4 + $0x20] sm:$0xff] %vm596, %v538
  %602 = vst.msk [vmem:[%s4 + $0x28] sm:$0xff] %vm596, %v543
  %603 = vst.msk [vmem:[%s4 + $0x30] sm:$0xff] %vm596, %v548
  %604 = vst.msk [vmem:[%s4 + $0x38] sm:$0xff] %vm596, %v553
  %605 = vst.msk [vmem:[%s4 + $0x40] sm:$0xff] %vm596, %v558
  %606 = vst.msk [vmem:[%s4 + $0x48] sm:$0xff] %vm596, %v563
  %607 = vst.msk [vmem:[%s4 + $0x50] sm:$0xff] %vm596, %v568
  %608 = vst.msk [vmem:[%s4 + $0x58] sm:$0xff] %vm596, %v573
  %609 = vst.msk [vmem:[%s4 + $0x60] sm:$0xff] %vm596, %v578
  %610 = vst.msk [vmem:[%s4 + $0x68] sm:$0xff] %vm596, %v583
  %611 = vst.msk [vmem:[%s4 + $0x70] sm:$0xff] %vm596, %v588
  %612 = vst.msk [vmem:[%s4 + $0x78] sm:$0xff] %vm596, %v593
  // Predicated region
  $region18: #{transformer_block_forward.9} parent=0 // pred_check
    _
  $region19: #{transformer_block_forward.9} parent=0 // pred_check_branch
    %614 = sbr.rel (0) target = $region21
  $region20: #{transformer_block_forward.9} parent=0 // pred_region
    _
  $region21: #{transformer_block_forward.9} parent=0 // pred_fallthru
    _
  // Predicated region
  $region22: #{transformer_block_forward.9} parent=0 // pred_check
    _
  $region23: #{transformer_block_forward.9} parent=0 // pred_check_branch
    %616 = sbr.rel (0) target = $region25
  $region24: #{transformer_block_forward.9} parent=0 // pred_region
    _
  $region25: #{transformer_block_forward.9} parent=0 // pred_fallthru
    _

// kernel: transformer_block_forward.8
$region0: #{transformer_block_forward.8}
  #allocation0 [shape = 'u32[]', space=smem, size = 0x4, offset = 0x4, fixed_abs, tag = 'smem constant byte address 0x4 - core index']
  #allocation1 [shape = 'u32[144,128]{1,0:T(1,128)}', space=vmem, size = 0x12000, scoped, tag = 'internal scratch']
  %s0 = inlined_call_operand.vmem [shape: f32[2], index: 0, kind: input, shape index: {}]
  %s1 = inlined_call_operand.vmem [shape: f32[4,64,48], index: 1, kind: input, shape index: {}, may-alias: {1,2}]
  %s2 = inlined_call_operand.vmem [shape: f32[4,64,48], index: 2, kind: input, shape index: {}, may-alias: {1,2}]
  %s3 = inlined_call_operand.vmem [shape: f32[2,64,16], index: 3, kind: input, shape index: {}]
  %s4 = inlined_call_operand.vmem [shape: f32[16,16], index: 4, kind: input, shape index: {}]
  %s5 = inlined_call_operand.vmem [shape: f32[2,64,16], index: 5, kind: output, shape index: {}]
  %s6 = sld [smem:[#allocation0]]
  $region57: #{transformer_block_forward.8} parent=0
    _
  %s8 = ssub.s32 1, %s6
  %s9 = scalar_select 0, %s8, %s6
  $region1: #{transformer_block_forward.8} parent=0
    #allocation2 [shape = 'u8[512]{0}', space=smem, size = 0x200, scoped, tag = 'input window, operand 0, single buffered']
    #allocation3 [shape = 's32[2]{0}', space=sflag, size = 0x8, scoped, tag = 'scoped memory for transformer_block_forward.8']
    %10 = vsyncpa [#allocation3], 0
    loop: start=0, step=1, limit=4
    $region2: #{transformer_block_forward.8} parent=1 // loop_pre_header
      _
    $region3: #{transformer_block_forward.8} parent=1 // loop_header
      %s12 = sphi 0, %s16
      %p13 = scmp.ge.s32.totalorder %s12, 4
      %s20 = sphi 0, %s20
      %s22 = sphi 0, %s20
      %s23 = sphi 0, %s22
      %s37 = sphi 0, %s23
      %s43 = sphi 0, %s45
      %s46 = sphi 0, %s43
      %s47 = sphi 0, %s46
      %s63 = sphi 0, %s47
      %s71 = sphi 0, %s73
      %s74 = sphi 0, %s71
      %s75 = sphi 0, %s74
      %s91 = sphi 0, %s75
      %s97 = sphi 0, %s99
      %s100 = sphi 0, %s97
      %s101 = sphi 0, %s100
      %s117 = sphi 0, %s101
      %s121 = sphi 0, %s121
      %s123 = sphi 0, %s121
      %s124 = sphi 0, %s123
      %s138 = sphi 0, %s124
      %s144 = sphi 0, %s146
      %s147 = sphi 0, %s144
      %s148 = sphi 0, %s147
      %s164 = sphi 0, %s148
    $region4: #{transformer_block_forward.8} parent=1 // loop_header_branch
      %15 = sbr.rel (%p13) target = $region8
    $region5: #{transformer_block_forward.8} parent=1 // loop_body
      %s17 = ssub.s32 %s12, 1
      %s18 = ssub.s32 %s12, 2
      %s19 = sadd.s32 %s12, 1
      %s21 = sadd.s32 %s20, 1
      %p24 = scmp.eq.s32.totalorder %s12, 1
      %p25 = scmp.ne.s32.totalorder %s20, %s22
      %p26 = scmp.eq.s32.totalorder %s12, 0
      %p27 = por %p25, %p26
      %p28 = scmp.ne.s32.totalorder %s20, %s22
      %p29 = scmp.eq.s32.totalorder %s17, 1
      %p30 = por %p28, %p29
      %p31 = scmp.ne.s32.totalorder %s22, %s23
      %p32 = scmp.eq.s32.totalorder %s17, 0
      %p33 = por %p31, %p32
      %p34 = scmp.ne.s32.totalorder %s22, %s23
      %p35 = scmp.eq.s32.totalorder %s18, 1
      %p36 = por %p34, %p35
      %p38 = scmp.ne.s32.totalorder %s23, %s37
      %p39 = scmp.eq.s32.totalorder %s18, 0
      %p40 = por %p38, %p39
      %s41 = ssub.s32 %s12, %s19
      %p42 = scmp.eq.s32.totalorder %s41, 0
      %s44 = sadd.s32 %s43, 1
      %s45 = scalar_select %p42, %s43, %s44
      %p48 = pneg %p42
      %p49 = scmp.eq.s32.totalorder %s12, 1
      %p50 = por %p48, %p49
      %p51 = scmp.ne.s32.totalorder %s43, %s46
      %p52 = scmp.eq.s32.totalorder %s12, 0
      %p53 = por %p51, %p52
      %p54 = scmp.ne.s32.totalorder %s43, %s46
      %p55 = scmp.eq.s32.totalorder %s17, 1
      %p56 = por %p54, %p55
      %p57 = scmp.ne.s32.totalorder %s46, %s47
      %p58 = scmp.eq.s32.totalorder %s17, 0
      %p59 = por %p57, %p58
      %p60 = scmp.ne.s32.totalorder %s46, %s47
      %p61 = scmp.eq.s32.totalorder %s18, 1
      %p62 = por %p60, %p61
      %p64 = scmp.ne.s32.totalorder %s47, %s63
      %p65 = scmp.eq.s32.totalorder %s18, 0
      %p66 = por %p64, %p65
      %s67 = sadd.s32 %s12, 2
      %s68 = sadd.s32 %s19, 2
      %s69 = ssub.s32 %s67, %s68
      %p70 = scmp.eq.s32.totalorder %s69, 0
      %s72 = sadd.s32 %s71, 1
      %s73 = scalar_select %p70, %s71, %s72
      %p76 = pneg %p70
      %p77 = scmp.eq.s32.totalorder %s12, 1
      %p78 = por %p76, %p77
      %p79 = scmp.ne.s32.totalorder %s71, %s74
      %p80 = scmp.eq.s32.totalorder %s12, 0
      %p81 = por %p79, %p80
      %p82 = scmp.ne.s32.totalorder %s71, %s74
      %p83 = scmp.eq.s32.totalorder %s17, 1
      %p84 = por %p82, %p83
      %p85 = scmp.ne.s32.totalorder %s74, %s75
      %p86 = scmp.eq.s32.totalorder %s17, 0
      %p87 = por %p85, %p86
      %p88 = scmp.ne.s32.totalorder %s74, %s75
      %p89 = scmp.eq.s32.totalorder %s18, 1
      %p90 = por %p88, %p89
      %p92 = scmp.ne.s32.totalorder %s75, %s91
      %p93 = scmp.eq.s32.totalorder %s18, 0
      %p94 = por %p92, %p93
      %s95 = ssub.s32 %s12, %s19
      %p96 = scmp.eq.s32.totalorder %s95, 0
      %s98 = sadd.s32 %s97, 1
      %s99 = scalar_select %p96, %s97, %s98
      %p102 = pneg %p96
      %p103 = scmp.eq.s32.totalorder %s12, 1
      %p104 = por %p102, %p103
      %p105 = scmp.ne.s32.totalorder %s97, %s100
      %p106 = scmp.eq.s32.totalorder %s12, 0
      %p107 = por %p105, %p106
      %p108 = scmp.ne.s32.totalorder %s97, %s100
      %p109 = scmp.eq.s32.totalorder %s17, 1
      %p110 = por %p108, %p109
      %p111 = scmp.ne.s32.totalorder %s100, %s101
      %p112 = scmp.eq.s32.totalorder %s17, 0
      %p113 = por %p111, %p112
      %p114 = scmp.ne.s32.totalorder %s100, %s101
      %p115 = scmp.eq.s32.totalorder %s18, 1
      %p116 = por %p114, %p115
      %p118 = scmp.ne.s32.totalorder %s101, %s117
      %p119 = scmp.eq.s32.totalorder %s18, 0
      %p120 = por %p118, %p119
      %s122 = sadd.s32 %s121, 1
      %p125 = scmp.eq.s32.totalorder %s12, 1
      %p126 = scmp.ne.s32.totalorder %s121, %s123
      %p127 = scmp.eq.s32.totalorder %s12, 0
      %p128 = por %p126, %p127
      %p129 = scmp.ne.s32.totalorder %s121, %s123
      %p130 = scmp.eq.s32.totalorder %s17, 1
      %p131 = por %p129, %p130
      %p132 = scmp.ne.s32.totalorder %s123, %s124
      %p133 = scmp.eq.s32.totalorder %s17, 0
      %p134 = por %p132, %p133
      %p135 = scmp.ne.s32.totalorder %s123, %s124
      %p136 = scmp.eq.s32.totalorder %s18, 1
      %p137 = por %p135, %p136
      %p139 = scmp.ne.s32.totalorder %s124, %s138
      %p140 = scmp.eq.s32.totalorder %s18, 0
      %p141 = por %p139, %p140
      %s142 = ssub.s32 %s12, %s19
      %p143 = scmp.eq.s32.totalorder %s142, 0
      %s145 = sadd.s32 %s144, 1
      %s146 = scalar_select %p143, %s144, %s145
      %p149 = pneg %p143
      %p150 = scmp.eq.s32.totalorder %s12, 1
      %p151 = por %p149, %p150
      %p152 = scmp.ne.s32.totalorder %s144, %s147
      %p153 = scmp.eq.s32.totalorder %s12, 0
      %p154 = por %p152, %p153
      %p155 = scmp.ne.s32.totalorder %s144, %s147
      %p156 = scmp.eq.s32.totalorder %s17, 1
      %p157 = por %p155, %p156
      %p158 = scmp.ne.s32.totalorder %s147, %s148
      %p159 = scmp.eq.s32.totalorder %s17, 0
      %p160 = por %p158, %p159
      %p161 = scmp.ne.s32.totalorder %s147, %s148
      %p162 = scmp.eq.s32.totalorder %s18, 1
      %p163 = por %p161, %p162
      %p165 = scmp.ne.s32.totalorder %s148, %s164
      %p166 = scmp.eq.s32.totalorder %s18, 0
      %p167 = por %p165, %p166
      %p168 = scmp.le.s32.totalorder 1, %s12
      %p169 = scmp.lt.s32.totalorder %s12, 3
      %p170 = pnand %p168, %p169
      %p171 = pneg %p170
      // Predicated region
      $region9: #{transformer_block_forward.8} parent=5 // pred_check
        _
      $region10: #{transformer_block_forward.8} parent=5 // pred_check_branch
        %173 = sbr.rel (%p170) target = $region12
      $region11: #{transformer_block_forward.8} parent=5 // pred_region
        %s174 = ssub.s32 %s12, 1
        // Predicated region
        $region13: #{transformer_block_forward.8} parent=11 // pred_check
          %p175 = pneg %p33
        $region14: #{transformer_block_forward.8} parent=11 // pred_check_branch
          %177 = sbr.rel (%p175) target = $region16
        $region15: #{transformer_block_forward.8} parent=11 // pred_region
          %s179 = ssub.s32 16, 16
          %180 = vsyncadd [#allocation3], %s179
          %s182 = sshll.u32 %s0, 4
          %s183 = int_to_ptr.vmem [resolvable:$true] %s182
          %185 = dma.vmem_to_smem %s183, 16, [#allocation2], [#allocation3]
        $region16: #{transformer_block_forward.8} parent=11 // pred_fallthru
          _
        // Predicated region
        $region17: #{transformer_block_forward.8} parent=11 // pred_check
          %p186 = pneg %p134
        $region18: #{transformer_block_forward.8} parent=11 // pred_check_branch
          %188 = sbr.rel (%p186) target = $region20
        $region19: #{transformer_block_forward.8} parent=11 // pred_region
          _
        $region20: #{transformer_block_forward.8} parent=11 // pred_fallthru
          _
      $region12: #{transformer_block_forward.8} parent=5 // pred_fallthru
        _
      %p189 = scmp.lt.s32.totalorder %s12, 2
      // Predicated region
      $region21: #{transformer_block_forward.8} parent=5 // pred_check
        %p190 = pneg %p189
      $region22: #{transformer_block_forward.8} parent=5 // pred_check_branch
        %192 = sbr.rel (%p190) target = $region24
      $region23: #{transformer_block_forward.8} parent=5 // pred_region
        // Predicated region
        $region25: #{transformer_block_forward.8} parent=23 // pred_check
          %p193 = pneg %p53
        $region26: #{transformer_block_forward.8} parent=23 // pred_check_branch
          %195 = sbr.rel (%p193) target = $region28
        $region27: #{transformer_block_forward.8} parent=23 // pred_region
          %p196 = scmp.lt.s32.totalorder %s12, 3
          %s197 = scalar_select %p196, %s12, 3
          %s198 = smul.addr %s197, 8
          %s199 = smul.addr %s198, 8
          %s200 = scalar_lea.vmem %s1, %s199
        $region28: #{transformer_block_forward.8} parent=23 // pred_fallthru
          _
        // Predicated region
        $region29: #{transformer_block_forward.8} parent=23 // pred_check
          %p201 = pneg %p81
        $region30: #{transformer_block_forward.8} parent=23 // pred_check_branch
          %203 = sbr.rel (%p201) target = $region32
        $region31: #{transformer_block_forward.8} parent=23 // pred_region
          %s204 = sadd.s32 %s12, 2
          %p205 = scmp.lt.s32.totalorder %s204, 3
          %s206 = scalar_select %p205, %s204, 3
          %s207 = smul.addr %s206, 8
          %s208 = smul.addr %s207, 8
          %s209 = scalar_lea.vmem %s2, %s208
          %s210 = sadd.s32 %s12, 2
        $region32: #{transformer_block_forward.8} parent=23 // pred_fallthru
          _
        // Predicated region
        $region33: #{transformer_block_forward.8} parent=23 // pred_check
          %p211 = pneg %p107
        $region34: #{transformer_block_forward.8} parent=23 // pred_check_branch
          %213 = sbr.rel (%p211) target = $region36
        $region35: #{transformer_block_forward.8} parent=23 // pred_region
          %p214 = scmp.lt.s32.totalorder %s12, 1
          %s215 = scalar_select %p214, %s12, 1
          %s216 = smul.addr %s215, 8
          %s217 = smul.addr %s216, 8
          %s218 = scalar_lea.vmem %s3, %s217
        $region36: #{transformer_block_forward.8} parent=23 // pred_fallthru
          _
      $region24: #{transformer_block_forward.8} parent=5 // pred_fallthru
        _
      %p219 = scmp.le.s32.totalorder 1, %s12
      %p220 = scmp.lt.s32.totalorder %s12, 3
      %p221 = pnand %p219, %p220
      %p222 = pneg %p221
      // Predicated region
      $region37: #{transformer_block_forward.8} parent=5 // pred_check
        _
      $region38: #{transformer_block_forward.8} parent=5 // pred_check_branch
        %224 = sbr.rel (%p221) target = $region40
      $region39: #{transformer_block_forward.8} parent=5 // pred_region
        %s225 = ssub.s32 %s12, 1
        // Predicated region
        $region41: #{transformer_block_forward.8} parent=39 // pred_check
          %p226 = pneg %p33
        $region42: #{transformer_block_forward.8} parent=39 // pred_check_branch
          %228 = sbr.rel (%p226) target = $region44
        $region43: #{transformer_block_forward.8} parent=39 // pred_region
          %229 = dma.done [#allocation3], 16
        $region44: #{transformer_block_forward.8} parent=39 // pred_fallthru
          _
        %230 = sfence
        %p231 = pneg %p33
        %p232 = pneg %p30
        %p233 = scmp.lt.s32.totalorder %s17, 3
        %s234 = scalar_select %p233, %s17, 3
        %s235 = smul.addr %s234, 8
        %s236 = smul.addr %s235, 8
        %s237 = scalar_lea.vmem %s1, %s236
        %p238 = pneg %p59
        %p239 = pneg %p56
        %s240 = sadd.s32 %s17, 2
        %p241 = scmp.lt.s32.totalorder %s240, 3
        %s242 = scalar_select %p241, %s240, 3
        %s243 = smul.addr %s242, 8
        %s244 = smul.addr %s243, 8
        %s245 = scalar_lea.vmem %s2, %s244
        %p246 = pneg %p87
        %p247 = pneg %p84
        %p248 = scmp.lt.s32.totalorder %s17, 1
        %s249 = scalar_select %p248, %s17, 1
        %s250 = smul.addr %s249, 8
        %s251 = smul.addr %s250, 8
        %s252 = scalar_lea.vmem %s3, %s251
        %p253 = pneg %p113
        %p254 = pneg %p110
        %p255 = pneg %p134
        %p256 = pneg %p131
        %p257 = pneg %p160
        %p258 = pneg %p157
        %p259 = scmp.lt.s32.totalorder %s17, 1
        %s260 = scalar_select %p259, %s17, 1
        %s261 = smul.addr %s260, 8
        %s262 = smul.addr %s261, 8
        %s263 = scalar_lea.vmem %s5, %s262
        %p264 = scmp.lt.s32.totalorder %s17, 3
        %s265 = scalar_select %p264, %s17, 3
        %s266 = smul.addr %s265, 8
        %s267 = smul.addr %s266, 8
        %s268 = scalar_lea.vmem %s1, %s267
        %s269 = sadd.s32 %s17, 2
        %p270 = scmp.lt.s32.totalorder %s269, 3
        %s271 = scalar_select %p270, %s269, 3
        %s272 = smul.addr %s271, 8
        %s273 = smul.addr %s272, 8
        %s274 = scalar_lea.vmem %s2, %s273
        %s275 = sadd.s32 %s17, 2
        %p276 = scmp.lt.s32.totalorder %s17, 1
        %s277 = scalar_select %p276, %s17, 1
        %s278 = smul.addr %s277, 8
        %s279 = smul.addr %s278, 8
        %s280 = scalar_lea.vmem %s3, %s279
        %p281 = scmp.lt.s32.totalorder %s17, 1
        %s282 = scalar_select %p281, %s17, 1
        %s283 = smul.addr %s282, 8
        %s284 = smul.addr %s283, 8
        %s285 = scalar_lea.vmem %s5, %s284
        %v286 = vld [vmem:[%s268] sm:$0xff]
        %v287 = vld [vmem:[%s268 + $0x8] sm:$0xff]
        %v288 = vld [vmem:[%s268 + $0x10] sm:$0xff]
        %v289 = vld [vmem:[%s268 + $0x18] sm:$0xff]
        %v290 = vld [vmem:[%s268 + $0x20] sm:$0xff]
        %v291 = vld [vmem:[%s268 + $0x28] sm:$0xff]
        %v292 = vld [vmem:[%s268 + $0x30] sm:$0xff]
        %v293 = vld [vmem:[%s268 + $0x38] sm:$0xff]
        %v294 = vld [vmem:[%s274] sm:$0xff]
        %v295 = vld [vmem:[%s274 + $0x8] sm:$0xff]
        %v296 = vld [vmem:[%s274 + $0x10] sm:$0xff]
        %v297 = vld [vmem:[%s274 + $0x18] sm:$0xff]
        %v298 = vld [vmem:[%s274 + $0x20] sm:$0xff]
        %v299 = vld [vmem:[%s274 + $0x28] sm:$0xff]
        %v300 = vld [vmem:[%s274 + $0x30] sm:$0xff]
        %v301 = vld [vmem:[%s274 + $0x38] sm:$0xff]
        %302 = vxpose.xlu0.b32.start [1/16] %v294, 128
        %303 = vxpose.xlu0.b32.cont [2/16] %v295, 128
        %304 = vxpose.xlu0.b32.cont [3/16] %v296, 128
        %305 = vxpose.xlu0.b32.cont [4/16] %v297, 128
        %306 = vxpose.xlu0.b32.cont [5/16] %v298, 128
        %307 = vxpose.xlu0.b32.cont [6/16] %v299, 128
        %308 = vxpose.xlu0.b32.cont [7/16] %v300, 128
        %309 = vxpose.xlu0.b32.cont [8/16] %v301, 128
        %310 = vxpose.xlu0.b32.cont [9/16] 0.0, 128
        %311 = vxpose.xlu0.b32.cont [10/16] 0.0, 128
        %312 = vxpose.xlu0.b32.cont [11/16] 0.0, 128
        %313 = vxpose.xlu0.b32.cont [12/16] 0.0, 128
        %314 = vxpose.xlu0.b32.cont [13/16] 0.0, 128
        %315 = vxpose.xlu0.b32.cont [14/16] 0.0, 128
        %316 = vxpose.xlu0.b32.cont [15/16] 0.0, 128
        %317 = vxpose.xlu0.b32.end [16/16] 0.0, 128
        %v318 = vpop.trf.xlu0
        %v319 = vpop.trf.xlu0
        %v320 = vpop.trf.xlu0
        %v321 = vpop.trf.xlu0
        %v322 = vpop.trf.xlu0
        %v323 = vpop.trf.xlu0
        %v324 = vpop.trf.xlu0
        %v325 = vpop.trf.xlu0
        %v326 = vpop.trf.xlu0
        %v327 = vpop.trf.xlu0
        %v328 = vpop.trf.xlu0
        %v329 = vpop.trf.xlu0
        %v330 = vpop.trf.xlu0
        %v331 = vpop.trf.xlu0
        %v332 = vpop.trf.xlu0
        %v333 = vpop.trf.xlu0
        %342 = vrot.lane.b32.xlu0 %v286, 112
        %v343 = vpop.permute.xlu0 %342
        %344 = vrot.lane.b32.xlu0 %v287, 112
        %v345 = vpop.permute.xlu0 %344
        %346 = vrot.lane.b32.xlu0 %v288, 112
        %v347 = vpop.permute.xlu0 %346
        %348 = vrot.lane.b32.xlu0 %v289, 112
        %v349 = vpop.permute.xlu0 %348
        %350 = vrot.lane.b32.xlu0 %v290, 112
        %v351 = vpop.permute.xlu0 %350
        %352 = vrot.lane.b32.xlu0 %v291, 112
        %v353 = vpop.permute.xlu0 %352
        %354 = vrot.lane.b32.xlu0 %v292, 112
        %v355 = vpop.permute.xlu0 %354
        %356 = vrot.lane.b32.xlu0 %v293, 112
        %v357 = vpop.permute.xlu0 %356
        %366 = vxpose.xlu0.b32.start [1/16] %v343, 128
        %367 = vxpose.xlu0.b32.cont [2/16] %v345, 128
        %368 = vxpose.xlu0.b32.cont [3/16] %v347, 128
        %369 = vxpose.xlu0.b32.cont [4/16] %v349, 128
        %370 = vxpose.xlu0.b32.cont [5/16] %v351, 128
        %371 = vxpose.xlu0.b32.cont [6/16] %v353, 128
        %372 = vxpose.xlu0.b32.cont [7/16] %v355, 128
        %373 = vxpose.xlu0.b32.cont [8/16] %v357, 128
        %374 = vxpose.xlu0.b32.cont [9/16] 0.0, 128
        %375 = vxpose.xlu0.b32.cont [10/16] 0.0, 128
        %376 = vxpose.xlu0.b32.cont [11/16] 0.0, 128
        %377 = vxpose.xlu0.b32.cont [12/16] 0.0, 128
        %378 = vxpose.xlu0.b32.cont [13/16] 0.0, 128
        %379 = vxpose.xlu0.b32.cont [14/16] 0.0, 128
        %380 = vxpose.xlu0.b32.cont [15/16] 0.0, 128
        %381 = vxpose.xlu0.b32.end [16/16] 0.0, 128
        %v382 = vpop.trf.xlu0
        %v383 = vpop.trf.xlu0
        %v384 = vpop.trf.xlu0
        %v385 = vpop.trf.xlu0
        %v386 = vpop.trf.xlu0
        %v387 = vpop.trf.xlu0
        %v388 = vpop.trf.xlu0
        %v389 = vpop.trf.xlu0
        %v390 = vpop.trf.xlu0
        %v391 = vpop.trf.xlu0
        %v392 = vpop.trf.xlu0
        %v393 = vpop.trf.xlu0
        %v394 = vpop.trf.xlu0
        %v395 = vpop.trf.xlu0
        %v396 = vpop.trf.xlu0
        %v397 = vpop.trf.xlu0
        %v398 = vmul.f32 %v318, %v318
        %vm399 = vcmask 523264
        %v400 = vsel %vm399, %v398, 0.0
        %401 = vadd.xlane.f32.xlu0 %v400
        %v402 = vpop.xlane.xlu0 %401
        %v403 = vrsqrt.pop %v402
        %v404 = vmul.f32 %v402, %v403
        %vm405 = vcmp.eq.f32.partialorder %v402, inf
        %v406 = vsel %vm405, %v402, %v404
        %vm407 = vcmp.eq.f32.partialorder %v402, 0.0
        %v408 = vand.u32 %v402, 2147483648
        %v409 = vsel %vm407, %v408, %v406
        %v410 = vmax.f32 %v409, 1e-12
        %v411 = vrcp.pop %v410
        %v412 = vmul.f32 %v318, %v411
        %v413 = vmul.f32 %v382, %v382
        %v414 = vsel %vm399, %v413, 0.0
        %415 = vadd.xlane.f32.xlu0 %v414
        %v416 = vpop.xlane.xlu0 %415
        %v417 = vrsqrt.pop %v416
        %v418 = vmul.f32 %v416, %v417
        %vm419 = vcmp.eq.f32.partialorder %v416, inf
        %v420 = vsel %vm419, %v416, %v418
        %vm421 = vcmp.eq.f32.partialorder %v416, 0.0
        %v422 = vand.u32 %v416, 2147483648
        %v423 = vsel %vm421, %v422, %v420
        %v424 = vmax.f32 %v423, 1e-12
        %v425 = vrcp.pop %v424
        %v426 = vmul.f32 %v382, %v425
        %v428 = vsel %vm399, %v412, 0
        %v431 = vsel %vm399, %v426, 0
        %433 = vmatprep.subr.mxu0 0.0
        %434 = vmatpush1.xpose.msra.mxu0 %v431
        %435 = vmatprep.subr.mxu0 0.0
        %436 = vmatpush1.xpose.msra.mxu0 0.0
        %437 = vmatprep.subr.mxu0 0.0
        %438 = vmatpush1.xpose.msra.mxu0 0.0
        %439 = vmatprep.subr.mxu0 0.0
        %440 = vmatpush1.xpose.msra.mxu0 0.0
        %441 = vmatprep.subr.mxu0 0.0
        %442 = vmatpush1.xpose.msra.mxu0 0.0
        %443 = vmatprep.subr.mxu0 0.0
        %444 = vmatpush1.xpose.msra.mxu0 0.0
        %445 = vmatprep.subr.mxu0 0.0
        %446 = vmatpush1.xpose.msra.mxu0 0.0
        %447 = vmatprep.subr.mxu0 0.0
        %448 = vmatpush1.xpose.msra.mxu0 0.0
        %449 = vmatprep.subr.mxu0 0.0
        %450 = vmatpush1.xpose.msra.mxu0 0.0
        %451 = vmatprep.subr.mxu0 0.0
        %452 = vmatpush1.xpose.msra.mxu0 0.0
        %453 = vmatprep.subr.mxu0 0.0
        %454 = vmatpush1.xpose.msra.mxu0 0.0
        %455 = vmatprep.subr.mxu0 0.0
        %456 = vmatpush1.xpose.msra.mxu0 0.0
        %457 = vmatprep.subr.mxu0 0.0
        %458 = vmatpush1.xpose.msra.mxu0 0.0
        %459 = vmatprep.subr.mxu0 0.0
        %460 = vmatpush1.xpose.msra.mxu0 0.0
        %461 = vmatprep.subr.mxu0 0.0
        %462 = vmatpush1.xpose.msra.mxu0 0.0
        %463 = vmatprep.subr.mxu0 0.0
        %464 = vmatpush1.xpose.msra.mxu0 0.0
        %465 = vmatprep.subr.mxu0 0.0
        %466 = vmatpush1.xpose.msra.mxu0 0.0
        %467 = vmatprep.subr.mxu0 0.0
        %468 = vmatpush1.xpose.msra.mxu0 0.0
        %469 = vmatprep.subr.mxu0 0.0
        %470 = vmatpush1.xpose.msra.mxu0 0.0
        %471 = vmatprep.subr.mxu0 0.0
        %472 = vmatpush1.xpose.msra.mxu0 0.0
        %473 = vmatprep.subr.mxu0 0.0
        %474 = vmatpush1.xpose.msra.mxu0 0.0
        %475 = vmatprep.subr.mxu0 0.0
        %476 = vmatpush1.xpose.msra.mxu0 0.0
        %477 = vmatprep.subr.mxu0 0.0
        %478 = vmatpush1.xpose.msra.mxu0 0.0
        %479 = vmatprep.subr.mxu0 0.0
        %480 = vmatpush1.xpose.msra.mxu0 0.0
        %481 = vmatprep.subr.mxu0 0.0
        %482 = vmatpush1.xpose.msra.mxu0 0.0
        %483 = vmatprep.subr.mxu0 0.0
        %484 = vmatpush1.xpose.msra.mxu0 0.0
        %485 = vmatprep.subr.mxu0 0.0
        %486 = vmatpush1.xpose.msra.mxu0 0.0
        %487 = vmatprep.subr.mxu0 0.0
        %488 = vmatpush1.xpose.msra.mxu0 0.0
        %489 = vmatprep.subr.mxu0 0.0
        %490 = vmatpush1.xpose.msra.mxu0 0.0
        %491 = vmatprep.subr.mxu0 0.0
        %492 = vmatpush1.xpose.msra.mxu0 0.0
        %493 = vmatprep.subr.mxu0 0.0
        %494 = vmatpush1.xpose.msra.mxu0 0.0
        %495 = vmatprep.subr.mxu0 0.0
        %496 = vmatpush1.xpose.msra.mxu0 0.0
        %497 = vmatprep.mubr.f32.mxu0 0.0
        %498 = vmatmul.mubr.f32.gmra.mrb[0].mxu0 %v428
        %v499 = vpop.f32.mrb[0].mxu0
        %v500 = vadd.f32 0.0, %v499
        %v501 = vpop.f32.mrb[0].mxu0
        %502 = vdwg.mxu0
        %s503 = sld [smem:[#allocation2]]
        %v504 = vstv %s503
        %v505 = vmul.f32 %v500, %v504
        %vm506 = vcmask 64512
        %v507 = vsel %vm506, %v505, -inf
        %508 = vmax.xlane.f32.xlu0 %v507
        %v509 = vpop.xlane.xlu0 %508
        %v510 = vsub.f32 %v505, %v509
        %v511 = vmul.f32 %v510, 1.442695
        %v512 = vpow.pop %v511
        %v513 = vsel %vm506, %v512, 0.0
        %514 = vadd.xlane.f32.xlu0 %v513
        %v515 = vpop.xlane.xlu0 %514
        %v516 = vrcp.pop %v515
        %v517 = vmul.f32 %v512, %v516
        %518 = vrot.lane.b32.xlu0 %v286, 96
        %v519 = vpop.permute.xlu0 %518
        %520 = vrot.lane.b32.xlu0 %v287, 96
        %v521 = vpop.permute.xlu0 %520
        %522 = vrot.lane.b32.xlu0 %v288, 96
        %v523 = vpop.permute.xlu0 %522
        %524 = vrot.lane.b32.xlu0 %v289, 96
        %v525 = vpop.permute.xlu0 %524
        %526 = vrot.lane.b32.xlu0 %v290, 96
        %v527 = vpop.permute.xlu0 %526
        %528 = vrot.lane.b32.xlu0 %v291, 96
        %v529 = vpop.permute.xlu0 %528
        %530 = vrot.lane.b32.xlu0 %v292, 96
        %v531 = vpop.permute.xlu0 %530
        %532 = vrot.lane.b32.xlu0 %v293, 96
        %v533 = vpop.permute.xlu0 %532
        %v535 = vsel %vm506, %v517, 0
        %v537 = vsel %vm506, %v519, 0
        %v539 = vsel %vm506, %v521, 0
        %v541 = vsel %vm506, %v523, 0
        %v543 = vsel %vm506, %v525, 0
        %v545 = vsel %vm506, %v527, 0
        %v547 = vsel %vm506, %v529, 0
        %v549 = vsel %vm506, %v531, 0
        %v551 = vsel %vm506, %v533, 0
        %553 = vmatprep.subr.mxu0 0.0
        %554 = vmatpush1.xpose.msra.mxu0 %v537
        %555 = vmatprep.subr.mxu0 0.0
        %556 = vmatpush1.xpose.msra.mxu0 %v539
        %557 = vmatprep.subr.mxu0 0.0
        %558 = vmatpush1.xpose.msra.mxu0 %v541
        %559 = vmatprep.subr.mxu0 0.0
        %560 = vmatpush1.xpose.msra.mxu0 %v543
        %561 = vmatprep.subr.mxu0 0.0
        %562 = vmatpush1.xpose.msra.mxu0 %v545
        %563 = vmatprep.subr.mxu0 0.0
        %564 = vmatpush1.xpose.msra.mxu0 %v547
        %565 = vmatprep.subr.mxu0 0.0
        %566 = vmatpush1.xpose.msra.mxu0 %v549
        %567 = vmatprep.subr.mxu0 0.0
        %568 = vmatpush1.xpose.msra.mxu0 %v551
        %569 = vmatprep.subr.mxu0 0.0
        %570 = vmatpush1.xpose.msra.mxu0 0.0
        %571 = vmatprep.subr.mxu0 0.0
        %572 = vmatpush1.xpose.msra.mxu0 0.0
        %573 = vmatprep.subr.mxu0 0.0
        %574 = vmatpush1.xpose.msra.mxu0 0.0
        %575 = vmatprep.subr.mxu0 0.0
        %576 = vmatpush1.xpose.msra.mxu0 0.0
        %577 = vmatprep.subr.mxu0 0.0
        %578 = vmatpush1.xpose.msra.mxu0 0.0
        %579 = vmatprep.subr.mxu0 0.0
        %580 = vmatpush1.xpose.msra.mxu0 0.0
        %581 = vmatprep.subr.mxu0 0.0
        %582 = vmatpush1.xpose.msra.mxu0 0.0
        %583 = vmatprep.subr.mxu0 0.0
        %584 = vmatpush1.xpose.msra.mxu0 0.0
        %585 = vmatprep.subr.mxu0 0.0
        %586 = vmatpush1.xpose.msra.mxu0 0.0
        %587 = vmatprep.subr.mxu0 0.0
        %588 = vmatpush1.xpose.msra.mxu0 0.0
        %589 = vmatprep.subr.mxu0 0.0
        %590 = vmatpush1.xpose.msra.mxu0 0.0
        %591 = vmatprep.subr.mxu0 0.0
        %592 = vmatpush1.xpose.msra.mxu0 0.0
        %593 = vmatprep.subr.mxu0 0.0
        %594 = vmatpush1.xpose.msra.mxu0 0.0
        %595 = vmatprep.subr.mxu0 0.0
        %596 = vmatpush1.xpose.msra.mxu0 0.0
        %597 = vmatprep.subr.mxu0 0.0
        %598 = vmatpush1.xpose.msra.mxu0 0.0
        %599 = vmatprep.subr.mxu0 0.0
        %600 = vmatpush1.xpose.msra.mxu0 0.0
        %601 = vmatprep.subr.mxu0 0.0
        %602 = vmatpush1.xpose.msra.mxu0 0.0
        %603 = vmatprep.subr.mxu0 0.0
        %604 = vmatpush1.xpose.msra.mxu0 0.0
        %605 = vmatprep.subr.mxu0 0.0
        %606 = vmatpush1.xpose.msra.mxu0 0.0
        %607 = vmatprep.subr.mxu0 0.0
        %608 = vmatpush1.xpose.msra.mxu0 0.0
        %609 = vmatprep.subr.mxu0 0.0
        %610 = vmatpush1.xpose.msra.mxu0 0.0
        %611 = vmatprep.subr.mxu0 0.0
        %612 = vmatpush1.xpose.msra.mxu0 0.0
        %613 = vmatprep.subr.mxu0 0.0
        %614 = vmatpush1.xpose.msra.mxu0 0.0
        %615 = vmatprep.subr.mxu0 0.0
        %616 = vmatpush1.xpose.msra.mxu0 0.0
        %617 = vmatprep.mubr.f32.mxu0 0.0
        %618 = vmatmul.mubr.f32.gmra.mrb[0].mxu0 %v535
        %v619 = vpop.f32.mrb[0].mxu0
        %v620 = vadd.f32 0.0, %v619
        %v621 = vpop.f32.mrb[0].mxu0
        %622 = vdwg.mxu0
        %631 = vrot.lane.b32.xlu0 %v294, 120
        %v632 = vpop.permute.xlu0 %631
        %633 = vrot.lane.b32.xlu0 %v295, 120
        %v634 = vpop.permute.xlu0 %633
        %635 = vrot.lane.b32.xlu0 %v296, 120
        %v636 = vpop.permute.xlu0 %635
        %637 = vrot.lane.b32.xlu0 %v297, 120
        %v638 = vpop.permute.xlu0 %637
        %639 = vrot.lane.b32.xlu0 %v298, 120
        %v640 = vpop.permute.xlu0 %639
        %641 = vrot.lane.b32.xlu0 %v299, 120
        %v642 = vpop.permute.xlu0 %641
        %643 = vrot.lane.b32.xlu0 %v300, 120
        %v644 = vpop.permute.xlu0 %643
        %645 = vrot.lane.b32.xlu0 %v301, 120
        %v646 = vpop.permute.xlu0 %645
        %655 = vxpose.xlu0.b32.start [1/16] %v632, 128
        %656 = vxpose.xlu0.b32.cont [2/16] %v634, 128
        %657 = vxpose.xlu0.b32.cont [3/16] %v636, 128
        %658 = vxpose.xlu0.b32.cont [4/16] %v638, 128
        %659 = vxpose.xlu0.b32.cont [5/16] %v640, 128
        %660 = vxpose.xlu0.b32.cont [6/16] %v642, 128
        %661 = vxpose.xlu0.b32.cont [7/16] %v644, 128
        %662 = vxpose.xlu0.b32.cont [8/16] %v646, 128
        %663 = vxpose.xlu0.b32.cont [9/16] 0.0, 128
        %664 = vxpose.xlu0.b32.cont [10/16] 0.0, 128
        %665 = vxpose.xlu0.b32.cont [11/16] 0.0, 128
        %666 = vxpose.xlu0.b32.cont [12/16] 0.0, 128
        %667 = vxpose.xlu0.b32.cont [13/16] 0.0, 128
        %668 = vxpose.xlu0.b32.cont [14/16] 0.0, 128
        %669 = vxpose.xlu0.b32.cont [15/16] 0.0, 128
        %670 = vxpose.xlu0.b32.end [16/16] 0.0, 128
        %v671 = vpop.trf.xlu0
        %v672 = vpop.trf.xlu0
        %v673 = vpop.trf.xlu0
        %v674 = vpop.trf.xlu0
        %v675 = vpop.trf.xlu0
        %v676 = vpop.trf.xlu0
        %v677 = vpop.trf.xlu0
        %v678 = vpop.trf.xlu0
        %v679 = vpop.trf.xlu0
        %v680 = vpop.trf.xlu0
        %v681 = vpop.trf.xlu0
        %v682 = vpop.trf.xlu0
        %v683 = vpop.trf.xlu0
        %v684 = vpop.trf.xlu0
        %v685 = vpop.trf.xlu0
        %v686 = vpop.trf.xlu0
        %687 = vrot.lane.b32.xlu0 %v286, 104
        %v688 = vpop.permute.xlu0 %687
        %689 = vrot.lane.b32.xlu0 %v287, 104
        %v690 = vpop.permute.xlu0 %689
        %691 = vrot.lane.b32.xlu0 %v288, 104
        %v692 = vpop.permute.xlu0 %691
        %693 = vrot.lane.b32.xlu0 %v289, 104
        %v694 = vpop.permute.xlu0 %693
        %695 = vrot.lane.b32.xlu0 %v290, 104
        %v696 = vpop.permute.xlu0 %695
        %697 = vrot.lane.b32.xlu0 %v291, 104
        %v698 = vpop.permute.xlu0 %697
        %699 = vrot.lane.b32.xlu0 %v292, 104
        %v700 = vpop.permute.xlu0 %699
        %701 = vrot.lane.b32.xlu0 %v293, 104
        %v702 = vpop.permute.xlu0 %701
        %711 = vxpose.xlu0.b32.start [1/16] %v688, 128
        %712 = vxpose.xlu0.b32.cont [2/16] %v690, 128
        %713 = vxpose.xlu0.b32.cont [3/16] %v692, 128
        %714 = vxpose.xlu0.b32.cont [4/16] %v694, 128
        %715 = vxpose.xlu0.b32.cont [5/16] %v696, 128
        %716 = vxpose.xlu0.b32.cont [6/16] %v698, 128
        %717 = vxpose.xlu0.b32.cont [7/16] %v700, 128
        %718 = vxpose.xlu0.b32.cont [8/16] %v702, 128
        %719 = vxpose.xlu0.b32.cont [9/16] 0.0, 128
        %720 = vxpose.xlu0.b32.cont [10/16] 0.0, 128
        %721 = vxpose.xlu0.b32.cont [11/16] 0.0, 128
        %722 = vxpose.xlu0.b32.cont [12/16] 0.0, 128
        %723 = vxpose.xlu0.b32.cont [13/16] 0.0, 128
        %724 = vxpose.xlu0.b32.cont [14/16] 0.0, 128
        %725 = vxpose.xlu0.b32.cont [15/16] 0.0, 128
        %726 = vxpose.xlu0.b32.end [16/16] 0.0, 128
        %v727 = vpop.trf.xlu0
        %v728 = vpop.trf.xlu0
        %v729 = vpop.trf.xlu0
        %v730 = vpop.trf.xlu0
        %v731 = vpop.trf.xlu0
        %v732 = vpop.trf.xlu0
        %v733 = vpop.trf.xlu0
        %v734 = vpop.trf.xlu0
        %v735 = vpop.trf.xlu0
        %v736 = vpop.trf.xlu0
        %v737 = vpop.trf.xlu0
        %v738 = vpop.trf.xlu0
        %v739 = vpop.trf.xlu0
        %v740 = vpop.trf.xlu0
        %v741 = vpop.trf.xlu0
        %v742 = vpop.trf.xlu0
        %v743 = vmul.f32 %v671, %v671
        %v744 = vsel %vm399, %v743, 0.0
        %745 = vadd.xlane.f32.xlu0 %v744
        %v746 = vpop.xlane.xlu0 %745
        %v747 = vrsqrt.pop %v746
        %v748 = vmul.f32 %v746, %v747
        %vm749 = vcmp.eq.f32.partialorder %v746, inf
        %v750 = vsel %vm749, %v746, %v748
        %vm751 = vcmp.eq.f32.partialorder %v746, 0.0
        %v752 = vand.u32 %v746, 2147483648
        %v753 = vsel %vm751, %v752, %v750
        %v754 = vmax.f32 %v753, 1e-12
        %v755 = vrcp.pop %v754
        %v756 = vmul.f32 %v671, %v755
        %v757 = vmul.f32 %v727, %v727
        %v758 = vsel %vm399, %v757, 0.0
        %759 = vadd.xlane.f32.xlu0 %v758
        %v760 = vpop.xlane.xlu0 %759
        %v761 = vrsqrt.pop %v760
        %v762 = vmul.f32 %v760, %v761
        %vm763 = vcmp.eq.f32.partialorder %v760, inf
        %v764 = vsel %vm763, %v760, %v762
        %vm765 = vcmp.eq.f32.partialorder %v760, 0.0
        %v766 = vand.u32 %v760, 2147483648
        %v767 = vsel %vm765, %v766, %v764
        %v768 = vmax.f32 %v767, 1e-12
        %v769 = vrcp.pop %v768
        %v770 = vmul.f32 %v727, %v769
        %v772 = vsel %vm399, %v756, 0
        %v775 = vsel %vm399, %v770, 0
        %777 = vmatprep.subr.mxu0 0.0
        %778 = vmatpush1.xpose.msra.mxu0 %v775
        %779 = vmatprep.subr.mxu0 0.0
        %780 = vmatpush1.xpose.msra.mxu0 0.0
        %781 = vmatprep.subr.mxu0 0.0
        %782 = vmatpush1.xpose.msra.mxu0 0.0
        %783 = vmatprep.subr.mxu0 0.0
        %784 = vmatpush1.xpose.msra.mxu0 0.0
        %785 = vmatprep.subr.mxu0 0.0
        %786 = vmatpush1.xpose.msra.mxu0 0.0
        %787 = vmatprep.subr.mxu0 0.0
        %788 = vmatpush1.xpose.msra.mxu0 0.0
        %789 = vmatprep.subr.mxu0 0.0
        %790 = vmatpush1.xpose.msra.mxu0 0.0
        %791 = vmatprep.subr.mxu0 0.0
        %792 = vmatpush1.xpose.msra.mxu0 0.0
        %793 = vmatprep.subr.mxu0 0.0
        %794 = vmatpush1.xpose.msra.mxu0 0.0
        %795 = vmatprep.subr.mxu0 0.0
        %796 = vmatpush1.xpose.msra.mxu0 0.0
        %797 = vmatprep.subr.mxu0 0.0
        %798 = vmatpush1.xpose.msra.mxu0 0.0
        %799 = vmatprep.subr.mxu0 0.0
        %800 = vmatpush1.xpose.msra.mxu0 0.0
        %801 = vmatprep.subr.mxu0 0.0
        %802 = vmatpush1.xpose.msra.mxu0 0.0
        %803 = vmatprep.subr.mxu0 0.0
        %804 = vmatpush1.xpose.msra.mxu0 0.0
        %805 = vmatprep.subr.mxu0 0.0
        %806 = vmatpush1.xpose.msra.mxu0 0.0
        %807 = vmatprep.subr.mxu0 0.0
        %808 = vmatpush1.xpose.msra.mxu0 0.0
        %809 = vmatprep.subr.mxu0 0.0
        %810 = vmatpush1.xpose.msra.mxu0 0.0
        %811 = vmatprep.subr.mxu0 0.0
        %812 = vmatpush1.xpose.msra.mxu0 0.0
        %813 = vmatprep.subr.mxu0 0.0
        %814 = vmatpush1.xpose.msra.mxu0 0.0
        %815 = vmatprep.subr.mxu0 0.0
        %816 = vmatpush1.xpose.msra.mxu0 0.0
        %817 = vmatprep.subr.mxu0 0.0
        %818 = vmatpush1.xpose.msra.mxu0 0.0
        %819 = vmatprep.subr.mxu0 0.0
        %820 = vmatpush1.xpose.msra.mxu0 0.0
        %821 = vmatprep.subr.mxu0 0.0
        %822 = vmatpush1.xpose.msra.mxu0 0.0
        %823 = vmatprep.subr.mxu0 0.0
        %824 = vmatpush1.xpose.msra.mxu0 0.0
        %825 = vmatprep.subr.mxu0 0.0
        %826 = vmatpush1.xpose.msra.mxu0 0.0
        %827 = vmatprep.subr.mxu0 0.0
        %828 = vmatpush1.xpose.msra.mxu0 0.0
        %829 = vmatprep.subr.mxu0 0.0
        %830 = vmatpush1.xpose.msra.mxu0 0.0
        %831 = vmatprep.subr.mxu0 0.0
        %832 = vmatpush1.xpose.msra.mxu0 0.0
        %833 = vmatprep.subr.mxu0 0.0
        %834 = vmatpush1.xpose.msra.mxu0 0.0
        %835 = vmatprep.subr.mxu0 0.0
        %836 = vmatpush1.xpose.msra.mxu0 0.0
        %837 = vmatprep.subr.mxu0 0.0
        %838 = vmatpush1.xpose.msra.mxu0 0.0
        %839 = vmatprep.subr.mxu0 0.0
        %840 = vmatpush1.xpose.msra.mxu0 0.0
        %841 = vmatprep.mubr.f32.mxu0 0.0
        %842 = vmatmul.mubr.f32.gmra.mrb[0].mxu0 %v772
        %v843 = vpop.f32.mrb[0].mxu0
        %v844 = vadd.f32 0.0, %v843
        %v845 = vpop.f32.mrb[0].mxu0
        %846 = vdwg.mxu0
        %s847 = sld [smem:[#allocation2 + $0x1]]
        %v848 = vstv %s847
        %v849 = vmul.f32 %v844, %v848
        %v850 = vsel %vm506, %v849, -inf
        %851 = vmax.xlane.f32.xlu0 %v850
        %v852 = vpop.xlane.xlu0 %851
        %v853 = vsub.f32 %v849, %v852
        %v854 = vmul.f32 %v853, 1.442695
        %v855 = vpow.pop %v854
        %v856 = vsel %vm506, %v855, 0.0
        %857 = vadd.xlane.f32.xlu0 %v856
        %v858 = vpop.xlane.xlu0 %857
        %v859 = vrcp.pop %v858
        %v860 = vmul.f32 %v855, %v859
        %861 = vrot.lane.b32.xlu0 %v286, 88
        %v862 = vpop.permute.xlu0 %861
        %863 = vrot.lane.b32.xlu0 %v287, 88
        %v864 = vpop.permute.xlu0 %863
        %865 = vrot.lane.b32.xlu0 %v288, 88
        %v866 = vpop.permute.xlu0 %865
        %867 = vrot.lane.b32.xlu0 %v289, 88
        %v868 = vpop.permute.xlu0 %867
        %869 = vrot.lane.b32.xlu0 %v290, 88
        %v870 = vpop.permute.xlu0 %869
        %871 = vrot.lane.b32.xlu0 %v291, 88
        %v872 = vpop.permute.xlu0 %871
        %873 = vrot.lane.b32.xlu0 %v292, 88
        %v874 = vpop.permute.xlu0 %873
        %875 = vrot.lane.b32.xlu0 %v293, 88
        %v876 = vpop.permute.xlu0 %875
        %v878 = vsel %vm506, %v860, 0
        %v880 = vsel %vm506, %v862, 0
        %v882 = vsel %vm506, %v864, 0
        %v884 = vsel %vm506, %v866, 0
        %v886 = vsel %vm506, %v868, 0
        %v888 = vsel %vm506, %v870, 0
        %v890 = vsel %vm506, %v872, 0
        %v892 = vsel %vm506, %v874, 0
        %v894 = vsel %vm506, %v876, 0
        %896 = vmatprep.subr.mxu0 0.0
        %897 = vmatpush1.xpose.msra.mxu0 %v880
        %898 = vmatprep.subr.mxu0 0.0
        %899 = vmatpush1.xpose.msra.mxu0 %v882
        %900 = vmatprep.subr.mxu0 0.0
        %901 = vmatpush1.xpose.msra.mxu0 %v884
        %902 = vmatprep.subr.mxu0 0.0
        %903 = vmatpush1.xpose.msra.mxu0 %v886
        %904 = vmatprep.subr.mxu0 0.0
        %905 = vmatpush1.xpose.msra.mxu0 %v888
        %906 = vmatprep.subr.mxu0 0.0
        %907 = vmatpush1.xpose.msra.mxu0 %v890
        %908 = vmatprep.subr.mxu0 0.0
        %909 = vmatpush1.xpose.msra.mxu0 %v892
        %910 = vmatprep.subr.mxu0 0.0
        %911 = vmatpush1.xpose.msra.mxu0 %v894
        %912 = vmatprep.subr.mxu0 0.0
        %913 = vmatpush1.xpose.msra.mxu0 0.0
        %914 = vmatprep.subr.mxu0 0.0
        %915 = vmatpush1.xpose.msra.mxu0 0.0
        %916 = vmatprep.subr.mxu0 0.0
        %917 = vmatpush1.xpose.msra.mxu0 0.0
        %918 = vmatprep.subr.mxu0 0.0
        %919 = vmatpush1.xpose.msra.mxu0 0.0
        %920 = vmatprep.subr.mxu0 0.0
        %921 = vmatpush1.xpose.msra.mxu0 0.0
        %922 = vmatprep.subr.mxu0 0.0
        %923 = vmatpush1.xpose.msra.mxu0 0.0
        %924 = vmatprep.subr.mxu0 0.0
        %925 = vmatpush1.xpose.msra.mxu0 0.0
        %926 = vmatprep.subr.mxu0 0.0
        %927 = vmatpush1.xpose.msra.mxu0 0.0
        %928 = vmatprep.subr.mxu0 0.0
        %929 = vmatpush1.xpose.msra.mxu0 0.0
        %930 = vmatprep.subr.mxu0 0.0
        %931 = vmatpush1.xpose.msra.mxu0 0.0
        %932 = vmatprep.subr.mxu0 0.0
        %933 = vmatpush1.xpose.msra.mxu0 0.0
        %934 = vmatprep.subr.mxu0 0.0
        %935 = vmatpush1.xpose.msra.mxu0 0.0
        %936 = vmatprep.subr.mxu0 0.0
        %937 = vmatpush1.xpose.msra.mxu0 0.0
        %938 = vmatprep.subr.mxu0 0.0
        %939 = vmatpush1.xpose.msra.mxu0 0.0
        %940 = vmatprep.subr.mxu0 0.0
        %941 = vmatpush1.xpose.msra.mxu0 0.0
        %942 = vmatprep.subr.mxu0 0.0
        %943 = vmatpush1.xpose.msra.mxu0 0.0
        %944 = vmatprep.subr.mxu0 0.0
        %945 = vmatpush1.xpose.msra.mxu0 0.0
        %946 = vmatprep.subr.mxu0 0.0
        %947 = vmatpush1.xpose.msra.mxu0 0.0
        %948 = vmatprep.subr.mxu0 0.0
        %949 = vmatpush1.xpose.msra.mxu0 0.0
        %950 = vmatprep.subr.mxu0 0.0
        %951 = vmatpush1.xpose.msra.mxu0 0.0
        %952 = vmatprep.subr.mxu0 0.0
        %953 = vmatpush1.xpose.msra.mxu0 0.0
        %954 = vmatprep.subr.mxu0 0.0
        %955 = vmatpush1.xpose.msra.mxu0 0.0
        %956 = vmatprep.subr.mxu0 0.0
        %957 = vmatpush1.xpose.msra.mxu0 0.0
        %958 = vmatprep.subr.mxu0 0.0
        %959 = vmatpush1.xpose.msra.mxu0 0.0
        %960 = vmatprep.mubr.f32.mxu0 0.0
        %961 = vmatmul.mubr.f32.gmra.mrb[0].mxu0 %v878
        %v962 = vpop.f32.mrb[0].mxu0
        %v963 = vadd.f32 0.0, %v962
        %v964 = vpop.f32.mrb[0].mxu0
        %965 = vdwg.mxu0
        %966 = vxpose.xlu0.b32.start [1/16] %v620, 128
        %967 = vxpose.xlu0.b32.cont [2/16] %v963, 128
        %968 = vxpose.xlu0.b32.cont [3/16] 0.0, 128
        %969 = vxpose.xlu0.b32.cont [4/16] 0.0, 128
        %970 = vxpose.xlu0.b32.cont [5/16] 0.0, 128
        %971 = vxpose.xlu0.b32.cont [6/16] 0.0, 128
        %972 = vxpose.xlu0.b32.cont [7/16] 0.0, 128
        %973 = vxpose.xlu0.b32.cont [8/16] 0.0, 128
        %974 = vxpose.xlu0.b32.cont [9/16] 0.0, 128
        %975 = vxpose.xlu0.b32.cont [10/16] 0.0, 128
        %976 = vxpose.xlu0.b32.cont [11/16] 0.0, 128
        %977 = vxpose.xlu0.b32.cont [12/16] 0.0, 128
        %978 = vxpose.xlu0.b32.cont [13/16] 0.0, 128
        %979 = vxpose.xlu0.b32.cont [14/16] 0.0, 128
        %980 = vxpose.xlu0.b32.cont [15/16] 0.0, 128
        %981 = vxpose.xlu0.b32.end [16/16] 0.0, 128
        %v982 = vpop.trf.xlu0
        %v983 = vpop.trf.xlu0
        %v984 = vpop.trf.xlu0
        %v985 = vpop.trf.xlu0
        %v986 = vpop.trf.xlu0
        %v987 = vpop.trf.xlu0
        %v988 = vpop.trf.xlu0
        %v989 = vpop.trf.xlu0
        %v990 = vpop.trf.xlu0
        %v991 = vpop.trf.xlu0
        %v992 = vpop.trf.xlu0
        %v993 = vpop.trf.xlu0
        %v994 = vpop.trf.xlu0
        %v995 = vpop.trf.xlu0
        %v996 = vpop.trf.xlu0
        %v997 = vpop.trf.xlu0
        %v998 = vld [vmem:[%s4] sm:$0xff]
        %v999 = vld [vmem:[%s4 + $0x8] sm:$0xff]
        %vm1000 = vcmask 130048
        %v1002 = vsel %vm1000, %v982, 0
        %v1005 = vsel %vm1000, %v983, 0
        %v1008 = vsel %vm1000, %v984, 0
        %v1011 = vsel %vm1000, %v985, 0
        %v1014 = vsel %vm1000, %v986, 0
        %v1017 = vsel %vm1000, %v987, 0
        %v1020 = vsel %vm1000, %v988, 0
        %v1023 = vsel %vm1000, %v989, 0
        %1025 = vmatprep.subr.mxu0 0.0
        %1026 = vmatpush1.msra.mxu0 %v998
        %1027 = vmatprep.subr.mxu0 0.0
        %1028 = vmatpush1.msra.mxu0 %v999
        %1029 = vmatprep.subr.mxu0 0.0
        %1030 = vmatpush1.msra.mxu0 0.0
        %1031 = vmatprep.subr.mxu0 0.0
        %1032 = vmatpush1.msra.mxu0 0.0
        %1033 = vmatprep.subr.mxu0 0.0
        %1034 = vmatpush1.msra.mxu0 0.0
        %1035 = vmatprep.subr.mxu0 0.0
        %1036 = vmatpush1.msra.mxu0 0.0
        %1037 = vmatprep.subr.mxu0 0.0
        %1038 = vmatpush1.msra.mxu0 0.0
        %1039 = vmatprep.subr.mxu0 0.0
        %1040 = vmatpush1.msra.mxu0 0.0
        %1041 = vmatprep.subr.mxu0 0.0
        %1042 = vmatpush1.msra.mxu0 0.0
        %1043 = vmatprep.subr.mxu0 0.0
        %1044 = vmatpush1.msra.mxu0 0.0
        %1045 = vmatprep.subr.mxu0 0.0
        %1046 = vmatpush1.msra.mxu0 0.0
        %1047 = vmatprep.subr.mxu0 0.0
        %1048 = vmatpush1.msra.mxu0 0.0
        %1049 = vmatprep.subr.mxu0 0.0
        %1050 = vmatpush1.msra.mxu0 0.0
        %1051 = vmatprep.subr.mxu0 0.0
        %1052 = vmatpush1.msra.mxu0 0.0
        %1053 = vmatprep.subr.mxu0 0.0
        %1054 = vmatpush1.msra.mxu0 0.0
        %1055 = vmatprep.subr.mxu0 0.0
        %1056 = vmatpush1.msra.mxu0 0.0
        %1057 = vmatprep.subr.mxu0 0.0
        %1058 = vmatpush1.msra.mxu0 0.0
        %1059 = vmatprep.subr.mxu0 0.0
        %1060 = vmatpush1.msra.mxu0 0.0
        %1061 = vmatprep.subr.mxu0 0.0
        %1062 = vmatpush1.msra.mxu0 0.0
        %1063 = vmatprep.subr.mxu0 0.0
        %1064 = vmatpush1.msra.mxu0 0.0
        %1065 = vmatprep.subr.mxu0 0.0
        %1066 = vmatpush1.msra.mxu0 0.0
        %1067 = vmatprep.subr.mxu0 0.0
        %1068 = vmatpush1.msra.mxu0 0.0
        %1069 = vmatprep.subr.mxu0 0.0
        %1070 = vmatpush1.msra.mxu0 0.0
        %1071 = vmatprep.subr.mxu0 0.0
        %1072 = vmatpush1.msra.mxu0 0.0
        %1073 = vmatprep.subr.mxu0 0.0
        %1074 = vmatpush1.msra.mxu0 0.0
        %1075 = vmatprep.subr.mxu0 0.0
        %1076 = vmatpush1.msra.mxu0 0.0
        %1077 = vmatprep.subr.mxu0 0.0
        %1078 = vmatpush1.msra.mxu0 0.0
        %1079 = vmatprep.subr.mxu0 0.0
        %1080 = vmatpush1.msra.mxu0 0.0
        %1081 = vmatprep.subr.mxu0 0.0
        %1082 = vmatpush1.msra.mxu0 0.0
        %1083 = vmatprep.subr.mxu0 0.0
        %1084 = vmatpush1.msra.mxu0 0.0
        %1085 = vmatprep.subr.mxu0 0.0
        %1086 = vmatpush1.msra.mxu0 0.0
        %1087 = vmatprep.subr.mxu0 0.0
        %1088 = vmatpush1.msra.mxu0 0.0
        %1089 = vmatprep.mubr.f32.mxu0 0.0
        %1090 = vmatmul.mubr.f32.gmra.mrb[0].mxu0 %v1002
        %v1091 = vpop.f32.mrb[0].mxu0
        %v1092 = vadd.f32 0.0, %v1091
        %v1093 = vpop.f32.mrb[0].mxu0
        %1094 = vmatprep.mubr.f32.mxu0 0.0
        %1095 = vmatmul.mubr.f32.gmra.mrb[0].mxu0 %v1005
        %v1096 = vpop.f32.mrb[0].mxu0
        %v1097 = vadd.f32 0.0, %v1096
        %v1098 = vpop.f32.mrb[0].mxu0
        %1099 = vmatprep.mubr.f32.mxu0 0.0
        %1100 = vmatmul.mubr.f32.gmra.mrb[0].mxu0 %v1008
        %v1101 = vpop.f32.mrb[0].mxu0
        %v1102 = vadd.f32 0.0, %v1101
        %v1103 = vpop.f32.mrb[0].mxu0
        %1104 = vmatprep.mubr.f32.mxu0 0.0
        %1105 = vmatmul.mubr.f32.gmra.mrb[0].mxu0 %v1011
        %v1106 = vpop.f32.mrb[0].mxu0
        %v1107 = vadd.f32 0.0, %v1106
        %v1108 = vpop.f32.mrb[0].mxu0
        %1109 = vmatprep.mubr.f32.mxu0 0.0
        %1110 = vmatmul.mubr.f32.gmra.mrb[0].mxu0 %v1014
        %v1111 = vpop.f32.mrb[0].mxu0
        %v1112 = vadd.f32 0.0, %v1111
        %v1113 = vpop.f32.mrb[0].mxu0
        %1114 = vmatprep.mubr.f32.mxu0 0.0
        %1115 = vmatmul.mubr.f32.gmra.mrb[0].mxu0 %v1017
        %v1116 = vpop.f32.mrb[0].mxu0
        %v1117 = vadd.f32 0.0, %v1116
        %v1118 = vpop.f32.mrb[0].mxu0
        %1119 = vmatprep.mubr.f32.mxu0 0.0
        %1120 = vmatmul.mubr.f32.gmra.mrb[0].mxu0 %v1020
        %v1121 = vpop.f32.mrb[0].mxu0
        %v1122 = vadd.f32 0.0, %v1121
        %v1123 = vpop.f32.mrb[0].mxu0
        %1124 = vmatprep.mubr.f32.mxu0 0.0
        %1125 = vmatmul.mubr.f32.gmra.mrb[0].mxu0 %v1023
        %v1126 = vpop.f32.mrb[0].mxu0
        %v1127 = vadd.f32 0.0, %v1126
        %v1128 = vpop.f32.mrb[0].mxu0
        %1129 = vdwg.mxu0
        %v1130 = vld [vmem:[%s280] sm:$0xff]
        %v1131 = vld [vmem:[%s280 + $0x8] sm:$0xff]
        %v1132 = vld [vmem:[%s280 + $0x10] sm:$0xff]
        %v1133 = vld [vmem:[%s280 + $0x18] sm:$0xff]
        %v1134 = vld [vmem:[%s280 + $0x20] sm:$0xff]
        %v1135 = vld [vmem:[%s280 + $0x28] sm:$0xff]
        %v1136 = vld [vmem:[%s280 + $0x30] sm:$0xff]
        %v1137 = vld [vmem:[%s280 + $0x38] sm:$0xff]
        %v1138 = vadd.f32 %v1130, %v1092
        %v1139 = vadd.f32 %v1131, %v1097
        %v1140 = vadd.f32 %v1132, %v1102
        %v1141 = vadd.f32 %v1133, %v1107
        %v1142 = vadd.f32 %v1134, %v1112
        %v1143 = vadd.f32 %v1135, %v1117
        %v1144 = vadd.f32 %v1136, %v1122
        %v1145 = vadd.f32 %v1137, %v1127
        %1146 = vst.msk [vmem:[%s285] sm:$0xff] %vm1000, %v1138
        %1147 = vst.msk [vmem:[%s285 + $0x8] sm:$0xff] %vm1000, %v1139
        %1148 = vst.msk [vmem:[%s285 + $0x10] sm:$0xff] %vm1000, %v1140
        %1149 = vst.msk [vmem:[%s285 + $0x18] sm:$0xff] %vm1000, %v1141
        %1150 = vst.msk [vmem:[%s285 + $0x20] sm:$0xff] %vm1000, %v1142
        %1151 = vst.msk [vmem:[%s285 + $0x28] sm:$0xff] %vm1000, %v1143
        %1152 = vst.msk [vmem:[%s285 + $0x30] sm:$0xff] %vm1000, %v1144
        %1153 = vst.msk [vmem:[%s285 + $0x38] sm:$0xff] %vm1000, %v1145
        %p1154 = scmp.lt.s32.totalorder %s17, 1
        %s1155 = scalar_select %p1154, %s17, 1
        %s1156 = smul.addr %s1155, 8
        %s1157 = smul.addr %s1156, 8
        %s1158 = scalar_lea.vmem %s5, %s1157
        // Predicated region
        $region45: #{transformer_block_forward.8} parent=39 // pred_check
          %p1159 = pneg %p157
        $region46: #{transformer_block_forward.8} parent=39 // pred_check_branch
          %1161 = sbr.rel (%p1159) target = $region48
        $region47: #{transformer_block_forward.8} parent=39 // pred_region
          _
        $region48: #{transformer_block_forward.8} parent=39 // pred_fallthru
          _
      $region40: #{transformer_block_forward.8} parent=5 // pred_fallthru
        _
      %p1162 = scmp.le.s32.totalorder 2, %s12
      // Predicated region
      $region49: #{transformer_block_forward.8} parent=5 // pred_check
        %p1163 = pneg %p1162
      $region50: #{transformer_block_forward.8} parent=5 // pred_check_branch
        %1165 = sbr.rel (%p1163) target = $region52
      $region51: #{transformer_block_forward.8} parent=5 // pred_region
        %s1166 = ssub.s32 %s12, 2
        // Predicated region
        $region53: #{transformer_block_forward.8} parent=51 // pred_check
          %p1167 = pneg %p163
        $region54: #{transformer_block_forward.8} parent=51 // pred_check_branch
          %1169 = sbr.rel (%p1167) target = $region56
        $region55: #{transformer_block_forward.8} parent=51 // pred_region
          %p1170 = scmp.lt.s32.totalorder %s18, 1
          %s1171 = scalar_select %p1170, %s18, 1
          %s1172 = smul.addr %s1171, 8
          %s1173 = smul.addr %s1172, 8
          %s1174 = scalar_lea.vmem %s5, %s1173
        $region56: #{transformer_block_forward.8} parent=51 // pred_fallthru
          _
      $region52: #{transformer_block_forward.8} parent=5 // pred_fallthru
        _
    $region6: #{transformer_block_forward.8} parent=1 // loop_footer
      %s16 = sadd.s32 1, %s12
    $region7: #{transformer_block_forward.8} parent=1 // loop_footer_branch
      %11 = sbr.rel target = $region3
    $region8: #{transformer_block_forward.8} parent=1 // loop_exit
      _
    %1175 = vsyncpa [#allocation3], 1
    %s1176 = scalar_lea.sflag [#allocation3], 1
    %1177 = vsyncpa %s1176, 1

// kernel: transformer_block_forward.10
$region0: #{transformer_block_forward.10}
  #allocation0 [shape = 'u32[]', space=smem, size = 0x4, offset = 0x4, fixed_abs, tag = 'smem constant byte address 0x4 - core index']
  #allocation1 [shape = 'u32[144,128]{1,0:T(1,128)}', space=vmem, size = 0x12000, scoped, tag = 'internal scratch']
  %s0 = inlined_call_operand.vmem [shape: f32[2,10,10,64], index: 0, kind: input, shape index: {}]
  %s1 = inlined_call_operand.vmem [shape: f32[9,64], index: 1, kind: input, shape index: {}]
  %s2 = inlined_call_operand.vmem [shape: f32[2,8,8,64], index: 2, kind: output, shape index: {}]
  %s3 = sld [smem:[#allocation0]]
  $region41: #{transformer_block_forward.10} parent=0
    _
  %s5 = ssub.s32 1, %s3
  %s6 = scalar_select 0, %s5, %s3
  loop: start=0, step=1, limit=4
  $region2: #{transformer_block_forward.10} parent=0 // loop_pre_header
    _
  $region3: #{transformer_block_forward.10} parent=0 // loop_header
    %s8 = sphi 0, %s12
    %p9 = scmp.ge.s32.totalorder %s8, 4
    %s18 = sphi 0, %s20
    %s21 = sphi 0, %s18
    %s22 = sphi 0, %s21
    %s38 = sphi 0, %s22
    %s42 = sphi 0, %s42
    %s44 = sphi 0, %s42
    %s45 = sphi 0, %s44
    %s59 = sphi 0, %s45
    %s65 = sphi 0, %s67
    %s68 = sphi 0, %s65
    %s69 = sphi 0, %s68
    %s85 = sphi 0, %s69
  $region4: #{transformer_block_forward.10} parent=0 // loop_header_branch
    %11 = sbr.rel (%p9) target = $region8
  $region5: #{transformer_block_forward.10} parent=0 // loop_body
    %s13 = ssub.s32 %s8, 1
    %s14 = ssub.s32 %s8, 2
    %s15 = sadd.s32 %s8, 1
    %s16 = ssub.s32 %s8, %s15
    %p17 = scmp.eq.s32.totalorder %s16, 0
    %s19 = sadd.s32 %s18, 1
    %s20 = scalar_select %p17, %s18, %s19
    %p23 = pneg %p17
    %p24 = scmp.eq.s32.totalorder %s8, 1
    %p25 = por %p23, %p24
    %p26 = scmp.ne.s32.totalorder %s18, %s21
    %p27 = scmp.eq.s32.totalorder %s8, 0
    %p28 = por %p26, %p27
    %p29 = scmp.ne.s32.totalorder %s18, %s21
    %p30 = scmp.eq.s32.totalorder %s13, 1
    %p31 = por %p29, %p30
    %p32 = scmp.ne.s32.totalorder %s21, %s22
    %p33 = scmp.eq.s32.totalorder %s13, 0
    %p34 = por %p32, %p33
    %p35 = scmp.ne.s32.totalorder %s21, %s22
    %p36 = scmp.eq.s32.totalorder %s14, 1
    %p37 = por %p35, %p36
    %p39 = scmp.ne.s32.totalorder %s22, %s38
    %p40 = scmp.eq.s32.totalorder %s14, 0
    %p41 = por %p39, %p40
    %s43 = sadd.s32 %s42, 1
    %p46 = scmp.eq.s32.totalorder %s8, 1
    %p47 = scmp.ne.s32.totalorder %s42, %s44
    %p48 = scmp.eq.s32.totalorder %s8, 0
    %p49 = por %p47, %p48
    %p50 = scmp.ne.s32.totalorder %s42, %s44
    %p51 = scmp.eq.s32.totalorder %s13, 1
    %p52 = por %p50, %p51
    %p53 = scmp.ne.s32.totalorder %s44, %s45
    %p54 = scmp.eq.s32.totalorder %s13, 0
    %p55 = por %p53, %p54
    %p56 = scmp.ne.s32.totalorder %s44, %s45
    %p57 = scmp.eq.s32.totalorder %s14, 1
    %p58 = por %p56, %p57
    %p60 = scmp.ne.s32.totalorder %s45, %s59
    %p61 = scmp.eq.s32.totalorder %s14, 0
    %p62 = por %p60, %p61
    %s63 = ssub.s32 %s8, %s15
    %p64 = scmp.eq.s32.totalorder %s63, 0
    %s66 = sadd.s32 %s65, 1
    %s67 = scalar_select %p64, %s65, %s66
    %p70 = pneg %p64
    %p71 = scmp.eq.s32.totalorder %s8, 1
    %p72 = por %p70, %p71
    %p73 = scmp.ne.s32.totalorder %s65, %s68
    %p74 = scmp.eq.s32.totalorder %s8, 0
    %p75 = por %p73, %p74
    %p76 = scmp.ne.s32.totalorder %s65, %s68
    %p77 = scmp.eq.s32.totalorder %s13, 1
    %p78 = por %p76, %p77
    %p79 = scmp.ne.s32.totalorder %s68, %s69
    %p80 = scmp.eq.s32.totalorder %s13, 0
    %p81 = por %p79, %p80
    %p82 = scmp.ne.s32.totalorder %s68, %s69
    %p83 = scmp.eq.s32.totalorder %s14, 1
    %p84 = por %p82, %p83
    %p86 = scmp.ne.s32.totalorder %s69, %s85
    %p87 = scmp.eq.s32.totalorder %s14, 0
    %p88 = por %p86, %p87
    %p89 = scmp.le.s32.totalorder 1, %s8
    %p90 = scmp.lt.s32.totalorder %s8, 3
    %p91 = pnand %p89, %p90
    %p92 = pneg %p91
    // Predicated region
    $region9: #{transformer_block_forward.10} parent=5 // pred_check
      _
    $region10: #{transformer_block_forward.10} parent=5 // pred_check_branch
      %94 = sbr.rel (%p91) target = $region12
    $region11: #{transformer_block_forward.10} parent=5 // pred_region
      %s95 = ssub.s32 %s8, 1
      // Predicated region
      $region13: #{transformer_block_forward.10} parent=11 // pred_check
        %p96 = pneg %p55
      $region14: #{transformer_block_forward.10} parent=11 // pred_check_branch
        %98 = sbr.rel (%p96) target = $region16
      $region15: #{transformer_block_forward.10} parent=11 // pred_region
        _
      $region16: #{transformer_block_forward.10} parent=11 // pred_fallthru
        _
    $region12: #{transformer_block_forward.10} parent=5 // pred_fallthru
      _
    %p99 = scmp.lt.s32.totalorder %s8, 2
    // Predicated region
    $region17: #{transformer_block_forward.10} parent=5 // pred_check
      %p100 = pneg %p99
    $region18: #{transformer_block_forward.10} parent=5 // pred_check_branch
      %102 = sbr.rel (%p100) target = $region20
    $region19: #{transformer_block_forward.10} parent=5 // pred_region
      // Predicated region
      $region21: #{transformer_block_forward.10} parent=19 // pred_check
        %p103 = pneg %p28
      $region22: #{transformer_block_forward.10} parent=19 // pred_check_branch
        %105 = sbr.rel (%p103) target = $region24
      $region23: #{transformer_block_forward.10} parent=19 // pred_region
        %p106 = scmp.lt.s32.totalorder %s8, 1
        %s107 = scalar_select %p106, %s8, 1
        %s108 = smul.addr %s107, 20
        %s109 = smul.addr %s108, 8
        %s110 = scalar_lea.vmem %s0, %s109
      $region24: #{transformer_block_forward.10} parent=19 // pred_fallthru
        _
    $region20: #{transformer_block_forward.10} parent=5 // pred_fallthru
      _
    %p111 = scmp.le.s32.totalorder 1, %s8
    %p112 = scmp.lt.s32.totalorder %s8, 3
    %p113 = pnand %p111, %p112
    %p114 = pneg %p113
    // Predicated region
    $region25: #{transformer_block_forward.10} parent=5 // pred_check
      _
    $region26: #{transformer_block_forward.10} parent=5 // pred_check_branch
      %116 = sbr.rel (%p113) target = $region28
    $region27: #{transformer_block_forward.10} parent=5 // pred_region
      %s117 = ssub.s32 %s8, 1
      %p118 = scmp.lt.s32.totalorder %s13, 1
      %s119 = scalar_select %p118, %s13, 1
      %s120 = smul.addr %s119, 20
      %s121 = smul.addr %s120, 8
      %s122 = scalar_lea.vmem %s0, %s121
      %p123 = pneg %p34
      %p124 = pneg %p31
      %p125 = pneg %p55
      %p126 = pneg %p52
      %p127 = pneg %p81
      %p128 = pneg %p78
      %p129 = scmp.lt.s32.totalorder %s13, 1
      %s130 = scalar_select %p129, %s13, 1
      %s131 = smul.addr %s130, 8
      %s132 = smul.addr %s131, 8
      %s133 = scalar_lea.vmem %s2, %s132
      %p134 = scmp.lt.s32.totalorder %s13, 1
      %s135 = scalar_select %p134, %s13, 1
      %s136 = smul.addr %s135, 20
      %s137 = smul.addr %s136, 8
      %s138 = scalar_lea.vmem %s0, %s137
      %p139 = scmp.lt.s32.totalorder %s13, 1
      %s140 = scalar_select %p139, %s13, 1
      %s141 = smul.addr %s140, 8
      %s142 = smul.addr %s141, 8
      %s143 = scalar_lea.vmem %s2, %s142
      %v144 = vld [vmem:[%s138] sm:$0xff]
      %v145 = vld [vmem:[%s138 + $0x8] sm:$0x3]
      %v146 = vld [vmem:[%s138 + $0x10] sm:$0xff]
      %v147 = vld [vmem:[%s138 + $0x18] sm:$0x3]
      %v148 = vld [vmem:[%s138 + $0x20] sm:$0xff]
      %v149 = vld [vmem:[%s138 + $0x28] sm:$0x3]
      %v150 = vld [vmem:[%s138 + $0x30] sm:$0xff]
      %v151 = vld [vmem:[%s138 + $0x38] sm:$0x3]
      %v152 = vld [vmem:[%s138 + $0x40] sm:$0xff]
      %v153 = vld [vmem:[%s138 + $0x48] sm:$0x3]
      %v154 = vld [vmem:[%s138 + $0x50] sm:$0xff]
      %v155 = vld [vmem:[%s138 + $0x58] sm:$0x3]
      %v156 = vld [vmem:[%s138 + $0x60] sm:$0xff]
      %v157 = vld [vmem:[%s138 + $0x68] sm:$0x3]
      %v158 = vld [vmem:[%s138 + $0x70] sm:$0xff]
      %v159 = vld [vmem:[%s138 + $0x78] sm:$0x3]
      %v160 = vld [vmem:[%s138 + $0x80] sm:$0xff]
      %v161 = vld [vmem:[%s138 + $0x88] sm:$0x3]
      %v162 = vld [vmem:[%s138 + $0x90] sm:$0xff]
      %v163 = vld [vmem:[%s138 + $0x98] sm:$0x3]
      %v164 = vld [vmem:[%s1] sm:$0x1]
      %v165 = vlaneseq
      %v166 = vshrl.u32 %v165, 7
      %v167 = vsub.s32 0, %v166
      %v168 = vrot.slane %v164, %v167
      %v169 = vmul.f32 %v144, %v168
      %v170 = vmul.f32 %v146, %v168
      %v171 = vmul.f32 %v148, %v168
      %v172 = vmul.f32 %v150, %v168
      %v173 = vmul.f32 %v152, %v168
      %v174 = vmul.f32 %v154, %v168
      %v175 = vmul.f32 %v156, %v168
      %v176 = vmul.f32 %v158, %v168
      %v177 = vadd.f32 %v169, 0.0
      %v178 = vadd.f32 %v170, 0.0
      %v179 = vadd.f32 %v171, 0.0
      %v180 = vadd.f32 %v172, 0.0
      %v181 = vadd.f32 %v173, 0.0
      %v182 = vadd.f32 %v174, 0.0
      %v183 = vadd.f32 %v175, 0.0
      %v184 = vadd.f32 %v176, 0.0
      %v185 = vld [vmem:[%s1 + $0x1] sm:$0x1]
      %v186 = vlaneseq
      %v187 = vshrl.u32 %v186, 7
      %v188 = vsub.s32 0, %v187
      %v189 = vrot.slane %v185, %v188
      %v190 = vmul.f32 %v144, %v189
      %v191 = vmul.f32 %v145, %v189
      %v192 = vmul.f32 %v146, %v189
      %v193 = vmul.f32 %v147, %v189
      %v194 = vmul.f32 %v148, %v189
      %v195 = vmul.f32 %v149, %v189
      %v196 = vmul.f32 %v150, %v189
      %v197 = vmul.f32 %v151, %v189
      %v198 = vmul.f32 %v152, %v189
      %v199 = vmul.f32 %v153, %v189
      %v200 = vmul.f32 %v154, %v189
      %v201 = vmul.f32 %v155, %v189
      %v202 = vmul.f32 %v156, %v189
      %v203 = vmul.f32 %v157, %v189
      %v204 = vmul.f32 %v158, %v189
      %v205 = vmul.f32 %v159, %v189
      %vm222 = vcmask 1046528
      %v223 = vrot.slane %v190, 1
      %v224 = vrot.slane %v191, 1
      %v225 = vsel %vm222, %v223, %v224
      %v226 = vrot.slane %v192, 1
      %v227 = vrot.slane %v193, 1
      %v228 = vsel %vm222, %v226, %v227
      %v229 = vrot.slane %v194, 1
      %v230 = vrot.slane %v195, 1
      %v231 = vsel %vm222, %v229, %v230
      %v232 = vrot.slane %v196, 1
      %v233 = vrot.slane %v197, 1
      %v234 = vsel %vm222, %v232, %v233
      %v235 = vrot.slane %v198, 1
      %v236 = vrot.slane %v199, 1
      %v237 = vsel %vm222, %v235, %v236
      %v238 = vrot.slane %v200, 1
      %v239 = vrot.slane %v201, 1
      %v240 = vsel %vm222, %v238, %v239
      %v241 = vrot.slane %v202, 1
      %v242 = vrot.slane %v203, 1
      %v243 = vsel %vm222, %v241, %v242
      %v244 = vrot.slane %v204, 1
      %v245 = vrot.slane %v205, 1
      %v246 = vsel %vm222, %v244, %v245
      %v255 = vadd.f32 %v177, %v225
      %v256 = vadd.f32 %v178, %v228
      %v257 = vadd.f32 %v179, %v231
      %v258 = vadd.f32 %v180, %v234
      %v259 = vadd.f32 %v181, %v237
      %v260 = vadd.f32 %v182, %v240
      %v261 = vadd.f32 %v183, %v243
      %v262 = vadd.f32 %v184, %v246
      %v263 = vld [vmem:[%s1 + $0x2] sm:$0x1]
      %v264 = vlaneseq
      %v265 = vshrl.u32 %v264, 7
      %v266 = vsub.s32 0, %v265
      %v267 = vrot.slane %v263, %v266
      %v268 = vmul.f32 %v144, %v267
      %v269 = vmul.f32 %v145, %v267
      %v270 = vmul.f32 %v146, %v267
      %v271 = vmul.f32 %v147, %v267
      %v272 = vmul.f32 %v148, %v267
      %v273 = vmul.f32 %v149, %v267
      %v274 = vmul.f32 %v150, %v267
      %v275 = vmul.f32 %v151, %v267
      %v276 = vmul.f32 %v152, %v267
      %v277 = vmul.f32 %v153, %v267
      %v278 = vmul.f32 %v154, %v267
      %v279 = vmul.f32 %v155, %v267
      %v280 = vmul.f32 %v156, %v267
      %v281 = vmul.f32 %v157, %v267
      %v282 = vmul.f32 %v158, %v267
      %v283 = vmul.f32 %v159, %v267
      %vm300 = vcmask 1045504
      %v301 = vrot.slane %v268, 2
      %v302 = vrot.slane %v269, 2
      %v303 = vsel %vm300, %v301, %v302
      %v304 = vrot.slane %v270, 2
      %v305 = vrot.slane %v271, 2
      %v306 = vsel %vm300, %v304, %v305
      %v307 = vrot.slane %v272, 2
      %v308 = vrot.slane %v273, 2
      %v309 = vsel %vm300, %v307, %v308
      %v310 = vrot.slane %v274, 2
      %v311 = vrot.slane %v275, 2
      %v312 = vsel %vm300, %v310, %v311
      %v313 = vrot.slane %v276, 2
      %v314 = vrot.slane %v277, 2
      %v315 = vsel %vm300, %v313, %v314
      %v316 = vrot.slane %v278, 2
      %v317 = vrot.slane %v279, 2
      %v318 = vsel %vm300, %v316, %v317
      %v319 = vrot.slane %v280, 2
      %v320 = vrot.slane %v281, 2
      %v321 = vsel %vm300, %v319, %v320
      %v322 = vrot.slane %v282, 2
      %v323 = vrot.slane %v283, 2
      %v324 = vsel %vm300, %v322, %v323
      %v333 = vadd.f32 %v255, %v303
      %v334 = vadd.f32 %v256, %v306
      %v335 = vadd.f32 %v257, %v309
      %v336 = vadd.f32 %v258, %v312
      %v337 = vadd.f32 %v259, %v315
      %v338 = vadd.f32 %v260, %v318
      %v339 = vadd.f32 %v261, %v321
      %v340 = vadd.f32 %v262, %v324
      %v341 = vld [vmem:[%s1 + $0x3] sm:$0x1]
      %v342 = vlaneseq
      %v343 = vshrl.u32 %v342, 7
      %v344 = vsub.s32 0, %v343
      %v345 = vrot.slane %v341, %v344
      %v346 = vmul.f32 %v146, %v345
      %v347 = vmul.f32 %v148, %v345
      %v348 = vmul.f32 %v150, %v345
      %v349 = vmul.f32 %v152, %v345
      %v350 = vmul.f32 %v154, %v345
      %v351 = vmul.f32 %v156, %v345
      %v352 = vmul.f32 %v158, %v345
      %v353 = vmul.f32 %v160, %v345
      %v354 = vadd.f32 %v333, %v346
      %v355 = vadd.f32 %v334, %v347
      %v356 = vadd.f32 %v335, %v348
      %v357 = vadd.f32 %v336, %v349
      %v358 = vadd.f32 %v337, %v350
      %v359 = vadd.f32 %v338, %v351
      %v360 = vadd.f32 %v339, %v352
      %v361 = vadd.f32 %v340, %v353
      %v362 = vld [vmem:[%s1 + $0x4] sm:$0x1]
      %v363 = vlaneseq
      %v364 = vshrl.u32 %v363, 7
      %v365 = vsub.s32 0, %v364
      %v366 = vrot.slane %v362, %v365
      %v367 = vmul.f32 %v146, %v366
      %v368 = vmul.f32 %v147, %v366
      %v369 = vmul.f32 %v148, %v366
      %v370 = vmul.f32 %v149, %v366
      %v371 = vmul.f32 %v150, %v366
      %v372 = vmul.f32 %v151, %v366
      %v373 = vmul.f32 %v152, %v366
      %v374 = vmul.f32 %v153, %v366
      %v375 = vmul.f32 %v154, %v366
      %v376 = vmul.f32 %v155, %v366
      %v377 = vmul.f32 %v156, %v366
      %v378 = vmul.f32 %v157, %v366
      %v379 = vmul.f32 %v158, %v366
      %v380 = vmul.f32 %v159, %v366
      %v381 = vmul.f32 %v160, %v366
      %v382 = vmul.f32 %v161, %v366
      %v399 = vrot.slane %v367, 1
      %v400 = vrot.slane %v368, 1
      %v401 = vsel %vm222, %v399, %v400
      %v402 = vrot.slane %v369, 1
      %v403 = vrot.slane %v370, 1
      %v404 = vsel %vm222, %v402, %v403
      %v405 = vrot.slane %v371, 1
      %v406 = vrot.slane %v372, 1
      %v407 = vsel %vm222, %v405, %v406
      %v408 = vrot.slane %v373, 1
      %v409 = vrot.slane %v374, 1
      %v410 = vsel %vm222, %v408, %v409
      %v411 = vrot.slane %v375, 1
      %v412 = vrot.slane %v376, 1
      %v413 = vsel %vm222, %v411, %v412
      %v414 = vrot.slane %v377, 1
      %v415 = vrot.slane %v378, 1
      %v416 = vsel %vm222, %v414, %v415
      %v417 = vrot.slane %v379, 1
      %v418 = vrot.slane %v380, 1
      %v419 = vsel %vm222, %v417, %v418
      %v420 = vrot.slane %v381, 1
      %v421 = vrot.slane %v382, 1
      %v422 = vsel %vm222, %v420, %v421
      %v431 = vadd.f32 %v354, %v401
      %v432 = vadd.f32 %v355, %v404
      %v433 = vadd.f32 %v356, %v407
      %v434 = vadd.f32 %v357, %v410
      %v435 = vadd.f32 %v358, %v413
      %v436 = vadd.f32 %v359, %v416
      %v437 = vadd.f32 %v360, %v419
      %v438 = vadd.f32 %v361, %v422
      %v439 = vld [vmem:[%s1 + $0x5] sm:$0x1]
      %v440 = vlaneseq
      %v441 = vshrl.u32 %v440, 7
      %v442 = vsub.s32 0, %v441
      %v443 = vrot.slane %v439, %v442
      %v444 = vmul.f32 %v146, %v443
      %v445 = vmul.f32 %v147, %v443
      %v446 = vmul.f32 %v148, %v443
      %v447 = vmul.f32 %v149, %v443
      %v448 = vmul.f32 %v150, %v443
      %v449 = vmul.f32 %v151, %v443
      %v450 = vmul.f32 %v152, %v443
      %v451 = vmul.f32 %v153, %v443
      %v452 = vmul.f32 %v154, %v443
      %v453 = vmul.f32 %v155, %v443
      %v454 = vmul.f32 %v156, %v443
      %v455 = vmul.f32 %v157, %v443
      %v456 = vmul.f32 %v158, %v443
      %v457 = vmul.f32 %v159, %v443
      %v458 = vmul.f32 %v160, %v443
      %v459 = vmul.f32 %v161, %v443
      %v476 = vrot.slane %v444, 2
      %v477 = vrot.slane %v445, 2
      %v478 = vsel %vm300, %v476, %v477
      %v479 = vrot.slane %v446, 2
      %v480 = vrot.slane %v447, 2
      %v481 = vsel %vm300, %v479, %v480
      %v482 = vrot.slane %v448, 2
      %v483 = vrot.slane %v449, 2
      %v484 = vsel %vm300, %v482, %v483
      %v485 = vrot.slane %v450, 2
      %v486 = vrot.slane %v451, 2
      %v487 = vsel %vm300, %v485, %v486
      %v488 = vrot.slane %v452, 2
      %v489 = vrot.slane %v453, 2
      %v490 = vsel %vm300, %v488, %v489
      %v491 = vrot.slane %v454, 2
      %v492 = vrot.slane %v455, 2
      %v493 = vsel %vm300, %v491, %v492
      %v494 = vrot.slane %v456, 2
      %v495 = vrot.slane %v457, 2
      %v496 = vsel %vm300, %v494, %v495
      %v497 = vrot.slane %v458, 2
      %v498 = vrot.slane %v459, 2
      %v499 = vsel %vm300, %v497, %v498
      %v508 = vadd.f32 %v431, %v478
      %v509 = vadd.f32 %v432, %v481
      %v510 = vadd.f32 %v433, %v484
      %v511 = vadd.f32 %v434, %v487
      %v512 = vadd.f32 %v435, %v490
      %v513 = vadd.f32 %v436, %v493
      %v514 = vadd.f32 %v437, %v496
      %v515 = vadd.f32 %v438, %v499
      %v516 = vld [vmem:[%s1 + $0x6] sm:$0x1]
      %v517 = vlaneseq
      %v518 = vshrl.u32 %v517, 7
      %v519 = vsub.s32 0, %v518
      %v520 = vrot.slane %v516, %v519
      %v521 = vmul.f32 %v148, %v520
      %v522 = vmul.f32 %v150, %v520
      %v523 = vmul.f32 %v152, %v520
      %v524 = vmul.f32 %v154, %v520
      %v525 = vmul.f32 %v156, %v520
      %v526 = vmul.f32 %v158, %v520
      %v527 = vmul.f32 %v160, %v520
      %v528 = vmul.f32 %v162, %v520
      %v529 = vadd.f32 %v508, %v521
      %v530 = vadd.f32 %v509, %v522
      %v531 = vadd.f32 %v510, %v523
      %v532 = vadd.f32 %v511, %v524
      %v533 = vadd.f32 %v512, %v525
      %v534 = vadd.f32 %v513, %v526
      %v535 = vadd.f32 %v514, %v527
      %v536 = vadd.f32 %v515, %v528
      %v537 = vld [vmem:[%s1 + $0x7] sm:$0x1]
      %v538 = vlaneseq
      %v539 = vshrl.u32 %v538, 7
      %v540 = vsub.s32 0, %v539
      %v541 = vrot.slane %v537, %v540
      %v542 = vmul.f32 %v148, %v541
      %v543 = vmul.f32 %v149, %v541
      %v544 = vmul.f32 %v150, %v541
      %v545 = vmul.f32 %v151, %v541
      %v546 = vmul.f32 %v152, %v541
      %v547 = vmul.f32 %v153, %v541
      %v548 = vmul.f32 %v154, %v541
      %v549 = vmul.f32 %v155, %v541
      %v550 = vmul.f32 %v156, %v541
      %v551 = vmul.f32 %v157, %v541
      %v552 = vmul.f32 %v158, %v541
      %v553 = vmul.f32 %v159, %v541
      %v554 = vmul.f32 %v160, %v541
      %v555 = vmul.f32 %v161, %v541
      %v556 = vmul.f32 %v162, %v541
      %v557 = vmul.f32 %v163, %v541
      %v574 = vrot.slane %v542, 1
      %v575 = vrot.slane %v543, 1
      %v576 = vsel %vm222, %v574, %v575
      %v577 = vrot.slane %v544, 1
      %v578 = vrot.slane %v545, 1
      %v579 = vsel %vm222, %v577, %v578
      %v580 = vrot.slane %v546, 1
      %v581 = vrot.slane %v547, 1
      %v582 = vsel %vm222, %v580, %v581
      %v583 = vrot.slane %v548, 1
      %v584 = vrot.slane %v549, 1
      %v585 = vsel %vm222, %v583, %v584
      %v586 = vrot.slane %v550, 1
      %v587 = vrot.slane %v551, 1
      %v588 = vsel %vm222, %v586, %v587
      %v589 = vrot.slane %v552, 1
      %v590 = vrot.slane %v553, 1
      %v591 = vsel %vm222, %v589, %v590
      %v592 = vrot.slane %v554, 1
      %v593 = vrot.slane %v555, 1
      %v594 = vsel %vm222, %v592, %v593
      %v595 = vrot.slane %v556, 1
      %v596 = vrot.slane %v557, 1
      %v597 = vsel %vm222, %v595, %v596
      %v606 = vadd.f32 %v529, %v576
      %v607 = vadd.f32 %v530, %v579
      %v608 = vadd.f32 %v531, %v582
      %v609 = vadd.f32 %v532, %v585
      %v610 = vadd.f32 %v533, %v588
      %v611 = vadd.f32 %v534, %v591
      %v612 = vadd.f32 %v535, %v594
      %v613 = vadd.f32 %v536, %v597
      %v614 = vld [vmem:[%s1 + $0x8] sm:$0x1]
      %v615 = vlaneseq
      %v616 = vshrl.u32 %v615, 7
      %v617 = vsub.s32 0, %v616
      %v618 = vrot.slane %v614, %v617
      %v619 = vmul.f32 %v148, %v618
      %v620 = vmul.f32 %v149, %v618
      %v621 = vmul.f32 %v150, %v618
      %v622 = vmul.f32 %v151, %v618
      %v623 = vmul.f32 %v152, %v618
      %v624 = vmul.f32 %v153, %v618
      %v625 = vmul.f32 %v154, %v618
      %v626 = vmul.f32 %v155, %v618
      %v627 = vmul.f32 %v156, %v618
      %v628 = vmul.f32 %v157, %v618
      %v629 = vmul.f32 %v158, %v618
      %v630 = vmul.f32 %v159, %v618
      %v631 = vmul.f32 %v160, %v618
      %v632 = vmul.f32 %v161, %v618
      %v633 = vmul.f32 %v162, %v618
      %v634 = vmul.f32 %v163, %v618
      %v651 = vrot.slane %v619, 2
      %v652 = vrot.slane %v620, 2
      %v653 = vsel %vm300, %v651, %v652
      %v654 = vrot.slane %v621, 2
      %v655 = vrot.slane %v622, 2
      %v656 = vsel %vm300, %v654, %v655
      %v657 = vrot.slane %v623, 2
      %v658 = vrot.slane %v624, 2
      %v659 = vsel %vm300, %v657, %v658
      %v660 = vrot.slane %v625, 2
      %v661 = vrot.slane %v626, 2
      %v662 = vsel %vm300, %v660, %v661
      %v663 = vrot.slane %v627, 2
      %v664 = vrot.slane %v628, 2
      %v665 = vsel %vm300, %v663, %v664
      %v666 = vrot.slane %v629, 2
      %v667 = vrot.slane %v630, 2
      %v668 = vsel %vm300, %v666, %v667
      %v669 = vrot.slane %v631, 2
      %v670 = vrot.slane %v632, 2
      %v671 = vsel %vm300, %v669, %v670
      %v672 = vrot.slane %v633, 2
      %v673 = vrot.slane %v634, 2
      %v674 = vsel %vm300, %v672, %v673
      %v683 = vadd.f32 %v606, %v653
      %v684 = vadd.f32 %v607, %v656
      %v685 = vadd.f32 %v608, %v659
      %v686 = vadd.f32 %v609, %v662
      %v687 = vadd.f32 %v610, %v665
      %v688 = vadd.f32 %v611, %v668
      %v689 = vadd.f32 %v612, %v671
      %v690 = vadd.f32 %v613, %v674
      %vm691 = vcmask 523264
      %692 = vst.msk [vmem:[%s143] sm:$0xff] %vm691, %v683
      %693 = vst.msk [vmem:[%s143 + $0x8] sm:$0xff] %vm691, %v684
      %694 = vst.msk [vmem:[%s143 + $0x10] sm:$0xff] %vm691, %v685
      %695 = vst.msk [vmem:[%s143 + $0x18] sm:$0xff] %vm691, %v686
      %696 = vst.msk [vmem:[%s143 + $0x20] sm:$0xff] %vm691, %v687
      %697 = vst.msk [vmem:[%s143 + $0x28] sm:$0xff] %vm691, %v688
      %698 = vst.msk [vmem:[%s143 + $0x30] sm:$0xff] %vm691, %v689
      %699 = vst.msk [vmem:[%s143 + $0x38] sm:$0xff] %vm691, %v690
      %p700 = scmp.lt.s32.totalorder %s13, 1
      %s701 = scalar_select %p700, %s13, 1
      %s702 = smul.addr %s701, 8
      %s703 = smul.addr %s702, 8
      %s704 = scalar_lea.vmem %s2, %s703
      // Predicated region
      $region29: #{transformer_block_forward.10} parent=27 // pred_check
        %p705 = pneg %p78
      $region30: #{transformer_block_forward.10} parent=27 // pred_check_branch
        %707 = sbr.rel (%p705) target = $region32
      $region31: #{transformer_block_forward.10} parent=27 // pred_region
        _
      $region32: #{transformer_block_forward.10} parent=27 // pred_fallthru
        _
    $region28: #{transformer_block_forward.10} parent=5 // pred_fallthru
      _
    %p708 = scmp.le.s32.totalorder 2, %s8
    // Predicated region
    $region33: #{transformer_block_forward.10} parent=5 // pred_check
      %p709 = pneg %p708
    $region34: #{transformer_block_forward.10} parent=5 // pred_check_branch
      %711 = sbr.rel (%p709) target = $region36
    $region35: #{transformer_block_forward.10} parent=5 // pred_region
      %s712 = ssub.s32 %s8, 2
      // Predicated region
      $region37: #{transformer_block_forward.10} parent=35 // pred_check
        %p713 = pneg %p84
      $region38: #{transformer_block_forward.10} parent=35 // pred_check_branch
        %715 = sbr.rel (%p713) target = $region40
      $region39: #{transformer_block_forward.10} parent=35 // pred_region
        %p716 = scmp.lt.s32.totalorder %s14, 1
        %s717 = scalar_select %p716, %s14, 1
        %s718 = smul.addr %s717, 8
        %s719 = smul.addr %s718, 8
        %s720 = scalar_lea.vmem %s2, %s719
      $region40: #{transformer_block_forward.10} parent=35 // pred_fallthru
        _
    $region36: #{transformer_block_forward.10} parent=5 // pred_fallthru
      _
  $region6: #{transformer_block_forward.10} parent=0 // loop_footer
    %s12 = sadd.s32 1, %s8
  $region7: #{transformer_block_forward.10} parent=0 // loop_footer_branch
    %7 = sbr.rel target = $region3
  $region8: #{transformer_block_forward.10} parent=0 // loop_exit
    _

// kernel: transformer_block_forward.11
$region0: #{transformer_block_forward.11}
  #allocation0 [shape = 'u32[]', space=smem, size = 0x4, offset = 0x4, fixed_abs, tag = 'smem constant byte address 0x4 - core index']
  #allocation1 [shape = 'u32[144,128]{1,0:T(1,128)}', space=vmem, size = 0x12000, scoped, tag = 'internal scratch']
  %s0 = inlined_call_operand.vmem [shape: f32[128,64], index: 0, kind: input, shape index: {}]
  %s1 = inlined_call_operand.vmem [shape: f32[128,16], index: 1, kind: input, shape index: {}]
  %s2 = inlined_call_operand.vmem [shape: f32[32,16], index: 2, kind: input, shape index: {}]
  %s3 = inlined_call_operand.hbm [shape: f32[128,16], index: 3, kind: output, shape index: {}]
  %s4 = sld [smem:[#allocation0]]
  $region22: #{transformer_block_forward.11} parent=0
    _
  %s6 = ssub.s32 1, %s4
  %s7 = scalar_select 0, %s6, %s4
  $region1: #{transformer_block_forward.11} parent=0
    #allocation2 [shape = 'u8[65536]{0}', space=vmem, size = 0x10000, scoped, tag = 'output window, operand 0, single buffered']
    #allocation3 [shape = 's32[1]{0}', space=sflag, size = 0x4, scoped, tag = 'scoped memory for transformer_block_forward.11']
    %8 = vsyncpa [#allocation3], 0
    // Predicated region
    $region2: #{transformer_block_forward.11} parent=1 // pred_check
      _
    $region3: #{transformer_block_forward.11} parent=1 // pred_check_branch
      %10 = sbr.rel (0) target = $region5
    $region4: #{transformer_block_forward.11} parent=1 // pred_region
      _
    $region5: #{transformer_block_forward.11} parent=1 // pred_fallthru
      _
    // Predicated region
    $region6: #{transformer_block_forward.11} parent=1 // pred_check
      _
    $region7: #{transformer_block_forward.11} parent=1 // pred_check_branch
      %12 = sbr.rel (0) target = $region9
    $region8: #{transformer_block_forward.11} parent=1 // pred_region
      _
    $region9: #{transformer_block_forward.11} parent=1 // pred_fallthru
      _
    // Predicated region
    $region10: #{transformer_block_forward.11} parent=1 // pred_check
      _
    $region11: #{transformer_block_forward.11} parent=1 // pred_check_branch
      %14 = sbr.rel (0) target = $region13
    $region12: #{transformer_block_forward.11} parent=1 // pred_region
      _
    $region13: #{transformer_block_forward.11} parent=1 // pred_fallthru
      _
    %v15 = vld [vmem:[%s0] sm:$0xff]
    %v16 = vld [vmem:[%s0 + $0x8] sm:$0xff]
    %v17 = vld [vmem:[%s0 + $0x10] sm:$0xff]
    %v18 = vld [vmem:[%s0 + $0x18] sm:$0xff]
    %v19 = vld [vmem:[%s0 + $0x20] sm:$0xff]
    %v20 = vld [vmem:[%s0 + $0x28] sm:$0xff]
    %v21 = vld [vmem:[%s0 + $0x30] sm:$0xff]
    %v22 = vld [vmem:[%s0 + $0x38] sm:$0xff]
    %v23 = vld [vmem:[%s0 + $0x40] sm:$0xff]
    %v24 = vld [vmem:[%s0 + $0x48] sm:$0xff]
    %v25 = vld [vmem:[%s0 + $0x50] sm:$0xff]
    %v26 = vld [vmem:[%s0 + $0x58] sm:$0xff]
    %v27 = vld [vmem:[%s0 + $0x60] sm:$0xff]
    %v28 = vld [vmem:[%s0 + $0x68] sm:$0xff]
    %v29 = vld [vmem:[%s0 + $0x70] sm:$0xff]
    %v30 = vld [vmem:[%s0 + $0x78] sm:$0xff]
    %v31 = vmul.f32 %v15, 0.5
    %v32 = vmul.f32 %v16, 0.5
    %v33 = vmul.f32 %v17, 0.5
    %v34 = vmul.f32 %v18, 0.5
    %v35 = vmul.f32 %v19, 0.5
    %v36 = vmul.f32 %v20, 0.5
    %v37 = vmul.f32 %v21, 0.5
    %v38 = vmul.f32 %v22, 0.5
    %v39 = vmul.f32 %v23, 0.5
    %v40 = vmul.f32 %v24, 0.5
    %v41 = vmul.f32 %v25, 0.5
    %v42 = vmul.f32 %v26, 0.5
    %v43 = vmul.f32 %v27, 0.5
    %v44 = vmul.f32 %v28, 0.5
    %v45 = vmul.f32 %v29, 0.5
    %v46 = vmul.f32 %v30, 0.5
    %v47 = vmul.f32 %v15, 0.70710677
    %v48 = vmul.f32 %v16, 0.70710677
    %v49 = vmul.f32 %v17, 0.70710677
    %v50 = vmul.f32 %v18, 0.70710677
    %v51 = vmul.f32 %v19, 0.70710677
    %v52 = vmul.f32 %v20, 0.70710677
    %v53 = vmul.f32 %v21, 0.70710677
    %v54 = vmul.f32 %v22, 0.70710677
    %v55 = vmul.f32 %v23, 0.70710677
    %v56 = vmul.f32 %v24, 0.70710677
    %v57 = vmul.f32 %v25, 0.70710677
    %v58 = vmul.f32 %v26, 0.70710677
    %v59 = vmul.f32 %v27, 0.70710677
    %v60 = vmul.f32 %v28, 0.70710677
    %v61 = vmul.f32 %v29, 0.70710677
    %v62 = vmul.f32 %v30, 0.70710677
    %v63 = verf.f32.pop %v47
    %v64 = verf.f32.pop %v48
    %v65 = verf.f32.pop %v49
    %v66 = verf.f32.pop %v50
    %v67 = verf.f32.pop %v51
    %v68 = verf.f32.pop %v52
    %v69 = verf.f32.pop %v53
    %v70 = verf.f32.pop %v54
    %v71 = verf.f32.pop %v55
    %v72 = verf.f32.pop %v56
    %v73 = verf.f32.pop %v57
    %v74 = verf.f32.pop %v58
    %v75 = verf.f32.pop %v59
    %v76 = verf.f32.pop %v60
    %v77 = verf.f32.pop %v61
    %v78 = verf.f32.pop %v62
    %v79 = vadd.f32 %v63, 1.0
    %v80 = vadd.f32 %v64, 1.0
    %v81 = vadd.f32 %v65, 1.0
    %v82 = vadd.f32 %v66, 1.0
    %v83 = vadd.f32 %v67, 1.0
    %v84 = vadd.f32 %v68, 1.0
    %v85 = vadd.f32 %v69, 1.0
    %v86 = vadd.f32 %v70, 1.0
    %v87 = vadd.f32 %v71, 1.0
    %v88 = vadd.f32 %v72, 1.0
    %v89 = vadd.f32 %v73, 1.0
    %v90 = vadd.f32 %v74, 1.0
    %v91 = vadd.f32 %v75, 1.0
    %v92 = vadd.f32 %v76, 1.0
    %v93 = vadd.f32 %v77, 1.0
    %v94 = vadd.f32 %v78, 1.0
    %v95 = vmul.f32 %v31, %v79
    %v96 = vmul.f32 %v32, %v80
    %v97 = vmul.f32 %v33, %v81
    %v98 = vmul.f32 %v34, %v82
    %v99 = vmul.f32 %v35, %v83
    %v100 = vmul.f32 %v36, %v84
    %v101 = vmul.f32 %v37, %v85
    %v102 = vmul.f32 %v38, %v86
    %v103 = vmul.f32 %v39, %v87
    %v104 = vmul.f32 %v40, %v88
    %v105 = vmul.f32 %v41, %v89
    %v106 = vmul.f32 %v42, %v90
    %v107 = vmul.f32 %v43, %v91
    %v108 = vmul.f32 %v44, %v92
    %v109 = vmul.f32 %v45, %v93
    %v110 = vmul.f32 %v46, %v94
    %127 = vrot.lane.b32.xlu0 %v15, 96
    %v128 = vpop.permute.xlu0 %127
    %129 = vrot.lane.b32.xlu0 %v16, 96
    %v130 = vpop.permute.xlu0 %129
    %131 = vrot.lane.b32.xlu0 %v17, 96
    %v132 = vpop.permute.xlu0 %131
    %133 = vrot.lane.b32.xlu0 %v18, 96
    %v134 = vpop.permute.xlu0 %133
    %135 = vrot.lane.b32.xlu0 %v19, 96
    %v136 = vpop.permute.xlu0 %135
    %137 = vrot.lane.b32.xlu0 %v20, 96
    %v138 = vpop.permute.xlu0 %137
    %139 = vrot.lane.b32.xlu0 %v21, 96
    %v140 = vpop.permute.xlu0 %139
    %141 = vrot.lane.b32.xlu0 %v22, 96
    %v142 = vpop.permute.xlu0 %141
    %143 = vrot.lane.b32.xlu0 %v23, 96
    %v144 = vpop.permute.xlu0 %143
    %145 = vrot.lane.b32.xlu0 %v24, 96
    %v146 = vpop.permute.xlu0 %145
    %147 = vrot.lane.b32.xlu0 %v25, 96
    %v148 = vpop.permute.xlu0 %147
    %149 = vrot.lane.b32.xlu0 %v26, 96
    %v150 = vpop.permute.xlu0 %149
    %151 = vrot.lane.b32.xlu0 %v27, 96
    %v152 = vpop.permute.xlu0 %151
    %153 = vrot.lane.b32.xlu0 %v28, 96
    %v154 = vpop.permute.xlu0 %153
    %155 = vrot.lane.b32.xlu0 %v29, 96
    %v156 = vpop.permute.xlu0 %155
    %157 = vrot.lane.b32.xlu0 %v30, 96
    %v158 = vpop.permute.xlu0 %157
    %v175 = vmul.f32 %v95, %v128
    %v176 = vmul.f32 %v96, %v130
    %v177 = vmul.f32 %v97, %v132
    %v178 = vmul.f32 %v98, %v134
    %v179 = vmul.f32 %v99, %v136
    %v180 = vmul.f32 %v100, %v138
    %v181 = vmul.f32 %v101, %v140
    %v182 = vmul.f32 %v102, %v142
    %v183 = vmul.f32 %v103, %v144
    %v184 = vmul.f32 %v104, %v146
    %v185 = vmul.f32 %v105, %v148
    %v186 = vmul.f32 %v106, %v150
    %v187 = vmul.f32 %v107, %v152
    %v188 = vmul.f32 %v108, %v154
    %v189 = vmul.f32 %v109, %v156
    %v190 = vmul.f32 %v110, %v158
    %v191 = vld [vmem:[%s2] sm:$0xff]
    %v192 = vld [vmem:[%s2 + $0x8] sm:$0xff]
    %v193 = vld [vmem:[%s2 + $0x10] sm:$0xff]
    %v194 = vld [vmem:[%s2 + $0x18] sm:$0xff]
    %vm195 = vcmask 261120
    %v197 = vsel %vm195, %v175, 0
    %v200 = vsel %vm195, %v176, 0
    %v203 = vsel %vm195, %v177, 0
    %v206 = vsel %vm195, %v178, 0
    %v209 = vsel %vm195, %v179, 0
    %v212 = vsel %vm195, %v180, 0
    %v215 = vsel %vm195, %v181, 0
    %v218 = vsel %vm195, %v182, 0
    %v221 = vsel %vm195, %v183, 0
    %v224 = vsel %vm195, %v184, 0
    %v227 = vsel %vm195, %v185, 0
    %v230 = vsel %vm195, %v186, 0
    %v233 = vsel %vm195, %v187, 0
    %v236 = vsel %vm195, %v188, 0
    %v239 = vsel %vm195, %v189, 0
    %v242 = vsel %vm195, %v190, 0
    %244 = vmatprep.subr.mxu0 0.0
    %245 = vmatpush1.msra.mxu0 %v191
    %246 = vmatprep.subr.mxu0 0.0
    %247 = vmatpush1.msra.mxu0 %v192
    %248 = vmatprep.subr.mxu0 0.0
    %249 = vmatpush1.msra.mxu0 %v193
    %250 = vmatprep.subr.mxu0 0.0
    %251 = vmatpush1.msra.mxu0 %v194
    %252 = vmatprep.subr.mxu0 0.0
    %253 = vmatpush1.msra.mxu0 0.0
    %254 = vmatprep.subr.mxu0 0.0
    %255 = vmatpush1.msra.mxu0 0.0
    %256 = vmatprep.subr.mxu0 0.0
    %257 = vmatpush1.msra.mxu0 0.0
    %258 = vmatprep.subr.mxu0 0.0
    %259 = vmatpush1.msra.mxu0 0.0
    %260 = vmatprep.subr.mxu0 0.0
    %261 = vmatpush1.msra.mxu0 0.0
    %262 = vmatprep.subr.mxu0 0.0
    %263 = vmatpush1.msra.mxu0 0.0
    %264 = vmatprep.subr.mxu0 0.0
    %265 = vmatpush1.msra.mxu0 0.0
    %266 = vmatprep.subr.mxu0 0.0
    %267 = vmatpush1.msra.mxu0 0.0
    %268 = vmatprep.subr.mxu0 0.0
    %269 = vmatpush1.msra.mxu0 0.0
    %270 = vmatprep.subr.mxu0 0.0
    %271 = vmatpush1.msra.mxu0 0.0
    %272 = vmatprep.subr.mxu0 0.0
    %273 = vmatpush1.msra.mxu0 0.0
    %274 = vmatprep.subr.mxu0 0.0
    %275 = vmatpush1.msra.mxu0 0.0
    %276 = vmatprep.subr.mxu0 0.0
    %277 = vmatpush1.msra.mxu0 0.0
    %278 = vmatprep.subr.mxu0 0.0
    %279 = vmatpush1.msra.mxu0 0.0
    %280 = vmatprep.subr.mxu0 0.0
    %281 = vmatpush1.msra.mxu0 0.0
    %282 = vmatprep.subr.mxu0 0.0
    %283 = vmatpush1.msra.mxu0 0.0
    %284 = vmatprep.subr.mxu0 0.0
    %285 = vmatpush1.msra.mxu0 0.0
    %286 = vmatprep.subr.mxu0 0.0
    %287 = vmatpush1.msra.mxu0 0.0
    %288 = vmatprep.subr.mxu0 0.0
    %289 = vmatpush1.msra.mxu0 0.0
    %290 = vmatprep.subr.mxu0 0.0
    %291 = vmatpush1.msra.mxu0 0.0
    %292 = vmatprep.subr.mxu0 0.0
    %293 = vmatpush1.msra.mxu0 0.0
    %294 = vmatprep.subr.mxu0 0.0
    %295 = vmatpush1.msra.mxu0 0.0
    %296 = vmatprep.subr.mxu0 0.0
    %297 = vmatpush1.msra.mxu0 0.0
    %298 = vmatprep.subr.mxu0 0.0
    %299 = vmatpush1.msra.mxu0 0.0
    %300 = vmatprep.subr.mxu0 0.0
    %301 = vmatpush1.msra.mxu0 0.0
    %302 = vmatprep.subr.mxu0 0.0
    %303 = vmatpush1.msra.mxu0 0.0
    %304 = vmatprep.subr.mxu0 0.0
    %305 = vmatpush1.msra.mxu0 0.0
    %306 = vmatprep.subr.mxu0 0.0
    %307 = vmatpush1.msra.mxu0 0.0
    %308 = vmatprep.mubr.f32.mxu0 0.0
    %309 = vmatmul.mubr.f32.gmra.mrb[0].mxu0 %v197
    %v310 = vpop.f32.mrb[0].mxu0
    %v311 = vadd.f32 0.0, %v310
    %v312 = vpop.f32.mrb[0].mxu0
    %313 = vmatprep.mubr.f32.mxu0 0.0
    %314 = vmatmul.mubr.f32.gmra.mrb[0].mxu0 %v200
    %v315 = vpop.f32.mrb[0].mxu0
    %v316 = vadd.f32 0.0, %v315
    %v317 = vpop.f32.mrb[0].mxu0
    %318 = vmatprep.mubr.f32.mxu0 0.0
    %319 = vmatmul.mubr.f32.gmra.mrb[0].mxu0 %v203
    %v320 = vpop.f32.mrb[0].mxu0
    %v321 = vadd.f32 0.0, %v320
    %v322 = vpop.f32.mrb[0].mxu0
    %323 = vmatprep.mubr.f32.mxu0 0.0
    %324 = vmatmul.mubr.f32.gmra.mrb[0].mxu0 %v206
    %v325 = vpop.f32.mrb[0].mxu0
    %v326 = vadd.f32 0.0, %v325
    %v327 = vpop.f32.mrb[0].mxu0
    %328 = vmatprep.mubr.f32.mxu0 0.0
    %329 = vmatmul.mubr.f32.gmra.mrb[0].mxu0 %v209
    %v330 = vpop.f32.mrb[0].mxu0
    %v331 = vadd.f32 0.0, %v330
    %v332 = vpop.f32.mrb[0].mxu0
    %333 = vmatprep.mubr.f32.mxu0 0.0
    %334 = vmatmul.mubr.f32.gmra.mrb[0].mxu0 %v212
    %v335 = vpop.f32.mrb[0].mxu0
    %v336 = vadd.f32 0.0, %v335
    %v337 = vpop.f32.mrb[0].mxu0
    %338 = vmatprep.mubr.f32.mxu0 0.0
    %339 = vmatmul.mubr.f32.gmra.mrb[0].mxu0 %v215
    %v340 = vpop.f32.mrb[0].mxu0
    %v341 = vadd.f32 0.0, %v340
    %v342 = vpop.f32.mrb[0].mxu0
    %343 = vmatprep.mubr.f32.mxu0 0.0
    %344 = vmatmul.mubr.f32.gmra.mrb[0].mxu0 %v218
    %v345 = vpop.f32.mrb[0].mxu0
    %v346 = vadd.f32 0.0, %v345
    %v347 = vpop.f32.mrb[0].mxu0
    %348 = vmatprep.mubr.f32.mxu0 0.0
    %349 = vmatmul.mubr.f32.gmra.mrb[0].mxu0 %v221
    %v350 = vpop.f32.mrb[0].mxu0
    %v351 = vadd.f32 0.0, %v350
    %v352 = vpop.f32.mrb[0].mxu0
    %353 = vmatprep.mubr.f32.mxu0 0.0
    %354 = vmatmul.mubr.f32.gmra.mrb[0].mxu0 %v224
    %v355 = vpop.f32.mrb[0].mxu0
    %v356 = vadd.f32 0.0, %v355
    %v357 = vpop.f32.mrb[0].mxu0
    %358 = vmatprep.mubr.f32.mxu0 0.0
    %359 = vmatmul.mubr.f32.gmra.mrb[0].mxu0 %v227
    %v360 = vpop.f32.mrb[0].mxu0
    %v361 = vadd.f32 0.0, %v360
    %v362 = vpop.f32.mrb[0].mxu0
    %363 = vmatprep.mubr.f32.mxu0 0.0
    %364 = vmatmul.mubr.f32.gmra.mrb[0].mxu0 %v230
    %v365 = vpop.f32.mrb[0].mxu0
    %v366 = vadd.f32 0.0, %v365
    %v367 = vpop.f32.mrb[0].mxu0
    %368 = vmatprep.mubr.f32.mxu0 0.0
    %369 = vmatmul.mubr.f32.gmra.mrb[0].mxu0 %v233
    %v370 = vpop.f32.mrb[0].mxu0
    %v371 = vadd.f32 0.0, %v370
    %v372 = vpop.f32.mrb[0].mxu0
    %373 = vmatprep.mubr.f32.mxu0 0.0
    %374 = vmatmul.mubr.f32.gmra.mrb[0].mxu0 %v236
    %v375 = vpop.f32.mrb[0].mxu0
    %v376 = vadd.f32 0.0, %v375
    %v377 = vpop.f32.mrb[0].mxu0
    %378 = vmatprep.mubr.f32.mxu0 0.0
    %379 = vmatmul.mubr.f32.gmra.mrb[0].mxu0 %v239
    %v380 = vpop.f32.mrb[0].mxu0
    %v381 = vadd.f32 0.0, %v380
    %v382 = vpop.f32.mrb[0].mxu0
    %383 = vmatprep.mubr.f32.mxu0 0.0
    %384 = vmatmul.mubr.f32.gmra.mrb[0].mxu0 %v242
    %v385 = vpop.f32.mrb[0].mxu0
    %v386 = vadd.f32 0.0, %v385
    %v387 = vpop.f32.mrb[0].mxu0
    %388 = vdwg.mxu0
    %v389 = vld [vmem:[%s1] sm:$0xff]
    %v390 = vld [vmem:[%s1 + $0x8] sm:$0xff]
    %v391 = vld [vmem:[%s1 + $0x10] sm:$0xff]
    %v392 = vld [vmem:[%s1 + $0x18] sm:$0xff]
    %v393 = vld [vmem:[%s1 + $0x20] sm:$0xff]
    %v394 = vld [vmem:[%s1 + $0x28] sm:$0xff]
    %v395 = vld [vmem:[%s1 + $0x30] sm:$0xff]
    %v396 = vld [vmem:[%s1 + $0x38] sm:$0xff]
    %v397 = vld [vmem:[%s1 + $0x40] sm:$0xff]
    %v398 = vld [vmem:[%s1 + $0x48] sm:$0xff]
    %v399 = vld [vmem:[%s1 + $0x50] sm:$0xff]
    %v400 = vld [vmem:[%s1 + $0x58] sm:$0xff]
    %v401 = vld [vmem:[%s1 + $0x60] sm:$0xff]
    %v402 = vld [vmem:[%s1 + $0x68] sm:$0xff]
    %v403 = vld [vmem:[%s1 + $0x70] sm:$0xff]
    %v404 = vld [vmem:[%s1 + $0x78] sm:$0xff]
    %v405 = vadd.f32 %v389, %v311
    %v406 = vadd.f32 %v390, %v316
    %v407 = vadd.f32 %v391, %v321
    %v408 = vadd.f32 %v392, %v326
    %v409 = vadd.f32 %v393, %v331
    %v410 = vadd.f32 %v394, %v336
    %v411 = vadd.f32 %v395, %v341
    %v412 = vadd.f32 %v396, %v346
    %v413 = vadd.f32 %v397, %v351
    %v414 = vadd.f32 %v398, %v356
    %v415 = vadd.f32 %v399, %v361
    %v416 = vadd.f32 %v400, %v366
    %v417 = vadd.f32 %v401, %v371
    %v418 = vadd.f32 %v402, %v376
    %v419 = vadd.f32 %v403, %v381
    %v420 = vadd.f32 %v404, %v386
    %vm421 = vcmask 130048
    %422 = vst.msk [vmem:[#allocation2] sm:$0xff] %vm421, %v405
    %423 = vst.msk [vmem:[#allocation2 + $0x8] sm:$0xff] %vm421, %v406
    %424 = vst.msk [vmem:[#allocation2 + $0x10] sm:$0xff] %vm421, %v407
    %425 = vst.msk [vmem:[#allocation2 + $0x18] sm:$0xff] %vm421, %v408
    %426 = vst.msk [vmem:[#allocation2 + $0x20] sm:$0xff] %vm421, %v409
    %427 = vst.msk [vmem:[#allocation2 + $0x28] sm:$0xff] %vm421, %v410
    %428 = vst.msk [vmem:[#allocation2 + $0x30] sm:$0xff] %vm421, %v411
    %429 = vst.msk [vmem:[#allocation2 + $0x38] sm:$0xff] %vm421, %v412
    %430 = vst.msk [vmem:[#allocation2 + $0x40] sm:$0xff] %vm421, %v413
    %431 = vst.msk [vmem:[#allocation2 + $0x48] sm:$0xff] %vm421, %v414
    %432 = vst.msk [vmem:[#allocation2 + $0x50] sm:$0xff] %vm421, %v415
    %433 = vst.msk [vmem:[#allocation2 + $0x58] sm:$0xff] %vm421, %v416
    %434 = vst.msk [vmem:[#allocation2 + $0x60] sm:$0xff] %vm421, %v417
    %435 = vst.msk [vmem:[#allocation2 + $0x68] sm:$0xff] %vm421, %v418
    %436 = vst.msk [vmem:[#allocation2 + $0x70] sm:$0xff] %vm421, %v419
    %437 = vst.msk [vmem:[#allocation2 + $0x78] sm:$0xff] %vm421, %v420
    // Predicated region
    $region14: #{transformer_block_forward.11} parent=1 // pred_check
      _
    $region15: #{transformer_block_forward.11} parent=1 // pred_check_branch
      %439 = sbr.rel (0) target = $region17
    $region16: #{transformer_block_forward.11} parent=1 // pred_region
      %s441 = ssub.s32 2048, 2048
      %442 = vsyncadd [#allocation3], %s441
      %s443 = sshll.u32 [#allocation2], 4
      %s444 = int_to_ptr.vmem [resolvable:$true] %s443
      %449 = dma.vmem_to_hbm [thread:$0]  %s444, 2048, %s3, [#allocation3], 128, 128, 8
    $region17: #{transformer_block_forward.11} parent=1 // pred_fallthru
      _
    // Predicated region
    $region18: #{transformer_block_forward.11} parent=1 // pred_check
      _
    $region19: #{transformer_block_forward.11} parent=1 // pred_check_branch
      %451 = sbr.rel (0) target = $region21
    $region20: #{transformer_block_forward.11} parent=1 // pred_region
      %452 = dma.done [#allocation3], 2048
    $region21: #{transformer_block_forward.11} parent=1 // pred_fallthru
      _
    %453 = vsyncpa [#allocation3], 1

</llo_original>
